<compile_context>
chip_gen: v7x
topology: tpu7x:2x2x1
jax: 0.10.0
libtpu: 0.0.40
codegen_flags: <defaults>
</compile_context>

<pallas_src>
import functools

import jax
import jax.numpy as jnp
from jax.experimental import pallas as pl
from jax.experimental.pallas import tpu as pltpu

NEG_SLOPE = 0.01  # nn.LeakyReLU default negative_slope


def _leaky(x):
    return jnp.where(x > 0, x, NEG_SLOPE * x)


def _load_params(layer_refs, n_layers):
    """Load (w, b) refs into vregs once; biases are (1, Fout)."""
    return [(layer_refs[2 * i][...], layer_refs[2 * i + 1][...])
            for i in range(n_layers)]


def _apply_mlp(x, params, final_act=True):
    """Row-wise MLP on a 2-D [rows, Fin] slab, weights already in vregs."""
    n = len(params)
    for i, (w, b) in enumerate(params):
        x = jnp.dot(x, w, preferred_element_type=jnp.float32) + b
        if i < n - 1 or final_act:
            x = _leaky(x)
    return x


# ----------------------------------------------------------------------------
# Single fused kernel: K-channel GCN + concat + merge + switch-sum + f/g MLPs
# ----------------------------------------------------------------------------
def _mgcn_value_kernel(*refs, K, n_prep, n_msg, n_merge, n_f, n_g,
                       n_steps, n_switches):
    idx = 0
    feats_refs = refs[idx:idx + K]; idx += K
    adj_refs = refs[idx:idx + K]; idx += K
    prep_refs, msg_refs = [], []
    for _ in range(K):
        prep_refs.append(refs[idx:idx + 2 * n_prep]); idx += 2 * n_prep
        msg_refs.append(refs[idx:idx + 2 * n_msg]); idx += 2 * n_msg
    merge_refs = refs[idx:idx + 2 * n_merge]; idx += 2 * n_merge
    f_refs = refs[idx:idx + 2 * n_f]; idx += 2 * n_f
    g_refs = refs[idx:idx + 2 * n_g]; idx += 2 * n_g
    o_ref = refs[idx]

    BB, N = feats_refs[0].shape[0], feats_refs[0].shape[1]

    # ---- per-channel GCN: prep MLP + n_steps of h += adj @ msg(h) ----
    hs = []
    for k in range(K):
        feats = feats_refs[k][...]                        # [BB, N, Fk]
        x = feats.reshape(BB * N, feats.shape[-1])        # whole-slab prep matmul
        adj = adj_refs[k][...]                            # [BB, N, N]
        prep_p = _load_params(prep_refs[k], n_prep)
        msg_p = _load_params(msg_refs[k], n_msg)          # loaded once, reused
        h = _apply_mlp(x, prep_p)                         # [BB*N, H]
        for _ in range(n_steps):                          # tiny static trip count
            m = _apply_mlp(h, msg_p)                      # [BB*N, H]
            if BB == 1:
                upd = jnp.dot(adj[0], m, preferred_element_type=jnp.float32)
            else:
                upd = jnp.concatenate(
                    [jnp.dot(adj[b], m[b * N:(b + 1) * N, :],
                             preferred_element_type=jnp.float32)
                     for b in range(BB)], axis=0)
            h = h + upd
        hs.append(h)
    h_cat = jnp.concatenate(hs, axis=-1)                  # [BB*N, K*H] (in vregs)

    # ---- value head ----
    merge_p = _load_params(merge_refs, n_merge)
    f_p = _load_params(f_refs, n_f)
    g_p = _load_params(g_refs, n_g)

    # torch.gather(gcn_out, 1, switch_idx) selects the first n_switches node
    # rows per batch element; merge / f_gcn_out are row-wise MLPs, so applying
    # them only to those rows is exact and cuts their FLOPs by N/n_switches.
    if BB == 1:
        h_sw = h_cat[:n_switches, :]                       # [S, K*H]
    else:
        h_sw = jnp.concatenate(
            [h_cat[b * N:b * N + n_switches, :] for b in range(BB)], axis=0)

    gcn_sw = _apply_mlp(h_sw, merge_p)                     # [BB*S, n_output]
    f_out = _apply_mlp(gcn_sw, f_p)                        # [BB*S, n_output]
    if BB == 1:
        switch_sum = jnp.sum(f_out, axis=0, keepdims=True)            # [1, n_out]
    else:
        switch_sum = jnp.sum(f_out.reshape(BB, n_switches, -1), axis=1)
    value = _apply_mlp(switch_sum, g_p, final_act=False)   # [BB, 1]
    o_ref[...] = value[None]                               # [1, BB, 1]


# ----------------------------------------------------------------------------
# Wrapper: one pallas_call for the whole forward
# ----------------------------------------------------------------------------
def batch_mgcn_value_forward(params, node_feats, adj_mats, n_switches, n_steps):
    K = len(node_feats)
    B, N, _ = node_feats[0].shape
    n_prep = len(params["prep"][0])
    n_msg = len(params["msg"][0])
    n_merge = len(params["merge"])
    n_f = len(params["f_gcn_out"])
    n_g = len(params["g_gcn_out"])

    # Batch is fully independent: split it over >=2 "parallel" grid steps when
    # possible so both v7x TensorCores get work (costs ~0.35us on 1-TC chips).
    n_blk = 2 if (B % 2 == 0 and B >= 2) else 1
    BB = B // n_blk

    args, specs = [], []
    for feats in node_feats:
        args.append(feats)
        specs.append(pl.BlockSpec((BB, N, feats.shape[-1]),
                                  lambda bi: (bi, 0, 0)))
    for adj in adj_mats:
        args.append(adj)
        specs.append(pl.BlockSpec((BB, N, N), lambda bi: (bi, 0, 0)))

    def add_weights(mlp_params):
        for (w, b) in mlp_params:
            args.append(w)
            specs.append(pl.BlockSpec(w.shape, lambda bi: (0, 0)))
            args.append(b.reshape(1, -1))
            specs.append(pl.BlockSpec((1, b.shape[0]), lambda bi: (0, 0)))

    for k in range(K):
        add_weights(params["prep"][k])
        add_weights(params["msg"][k])
    add_weights(params["merge"])
    add_weights(params["f_gcn_out"])
    add_weights(params["g_gcn_out"])

    # rough cost estimate so XLA schedules the custom call sensibly
    def mlp_flops(rows, mlp):
        return sum(2 * rows * w.shape[0] * w.shape[1] for w, _ in mlp)

    H = params["prep"][0][-1][0].shape[1]
    flops = 0
    for k in range(K):
        flops += mlp_flops(B * N, params["prep"][k])
        flops += n_steps * (mlp_flops(B * N, params["msg"][k]) + 2 * B * N * N * H)
    flops += mlp_flops(B * n_switches, params["merge"])
    flops += mlp_flops(B * n_switches, params["f_gcn_out"])
    flops += mlp_flops(B, params["g_gcn_out"])
    bytes_accessed = 4 * (sum(int(a.size) for a in args) + B)

    out3 = pl.pallas_call(
        functools.partial(
            _mgcn_value_kernel, K=K, n_prep=n_prep, n_msg=n_msg,
            n_merge=n_merge, n_f=n_f, n_g=n_g,
            n_steps=n_steps, n_switches=n_switches),
        out_shape=jax.ShapeDtypeStruct((n_blk, BB, 1), jnp.float32),
        grid=(n_blk,),
        in_specs=specs,
        out_specs=pl.BlockSpec((1, BB, 1), lambda bi: (bi, 0, 0)),
        compiler_params=pltpu.CompilerParams(dimension_semantics=("parallel",)),
        cost_estimate=pl.CostEstimate(
            flops=int(flops), transcendentals=0,
            bytes_accessed=int(bytes_accessed)),
    )(*args)
    return out3.reshape(B, 1)


# ----------------------------------------------------------------------------
# Parameter setup (deterministic, in-script)
# ----------------------------------------------------------------------------
def init_mlp(key, n_in, n_hids, n_out):
    dims = [n_in] + list(n_hids) + [n_out]
    params = []
    for i in range(len(dims) - 1):
        key, wk = jax.random.split(key)
        w = jax.random.normal(wk, (dims[i], dims[i + 1]), jnp.float32) / jnp.sqrt(
            float(dims[i]))
        b = jnp.zeros((dims[i + 1],), jnp.float32)
        params.append((w, b))
    return key, params


def init_batch_mgcn_value(key, n_feats, n_output, n_hids, h_size):
    params = {"prep": [], "msg": []}
    for nf in n_feats:
        key, p = init_mlp(key, nf, n_hids, h_size)
        params["prep"].append(p)
        key, p = init_mlp(key, h_size, n_hids, h_size)
        params["msg"].append(p)
    key, params["merge"] = init_mlp(key, h_size * len(n_feats), n_hids, n_output)
    key, params["f_gcn_out"] = init_mlp(key, n_output, n_hids, n_output)
    key, params["g_gcn_out"] = init_mlp(key, n_output, n_hids, 1)
    return params


# ----------------------------------------------------------------------------
if __name__ == "__main__":
    # small, module-consistent shapes
    B = 2             # batch
    N = 8             # nodes per graph
    n_switches = 4
    n_feats = [6, 5]  # two graph "channels" with different feature dims
    n_output = 8
    n_hids = [16, 16]
    h_size = 16
    n_steps = 2

    key = jax.random.PRNGKey(0)
    key, k_params = jax.random.split(key)
    params = init_batch_mgcn_value(k_params, n_feats, n_output, n_hids, h_size)

    node_feats = []
    adj_mats = []
    for nf in n_feats:
        key, kf, ka = jax.random.split(key, 3)
        node_feats.append(jax.random.normal(kf, (B, N, nf), jnp.float32))
        adj_mats.append(
            jax.random.uniform(ka, (B, N, N), jnp.float32, minval=0.0, maxval=1.0))

    out = batch_mgcn_value_forward(params, node_feats, adj_mats, n_switches, n_steps)
    out = jax.block_until_ready(out)
    assert out.shape == (B, 1), out.shape
    print("KERNEL_OK")
</pallas_src>

<mosaic_0001>
module attributes {stable_mosaic.version = 11 : i64} {
  func.func @_mgcn_value_kernel(%arg0: i32, %arg1: memref<1x8x6xf32, #tpu.memory_space<vmem>>, %arg2: memref<1x8x5xf32, #tpu.memory_space<vmem>>, %arg3: memref<1x8x8xf32, #tpu.memory_space<vmem>>, %arg4: memref<1x8x8xf32, #tpu.memory_space<vmem>>, %arg5: memref<6x16xf32, #tpu.memory_space<vmem>>, %arg6: memref<1x16xf32, #tpu.memory_space<vmem>>, %arg7: memref<16x16xf32, #tpu.memory_space<vmem>>, %arg8: memref<1x16xf32, #tpu.memory_space<vmem>>, %arg9: memref<16x16xf32, #tpu.memory_space<vmem>>, %arg10: memref<1x16xf32, #tpu.memory_space<vmem>>, %arg11: memref<16x16xf32, #tpu.memory_space<vmem>>, %arg12: memref<1x16xf32, #tpu.memory_space<vmem>>, %arg13: memref<16x16xf32, #tpu.memory_space<vmem>>, %arg14: memref<1x16xf32, #tpu.memory_space<vmem>>, %arg15: memref<16x16xf32, #tpu.memory_space<vmem>>, %arg16: memref<1x16xf32, #tpu.memory_space<vmem>>, %arg17: memref<5x16xf32, #tpu.memory_space<vmem>>, %arg18: memref<1x16xf32, #tpu.memory_space<vmem>>, %arg19: memref<16x16xf32, #tpu.memory_space<vmem>>, %arg20: memref<1x16xf32, #tpu.memory_space<vmem>>, %arg21: memref<16x16xf32, #tpu.memory_space<vmem>>, %arg22: memref<1x16xf32, #tpu.memory_space<vmem>>, %arg23: memref<16x16xf32, #tpu.memory_space<vmem>>, %arg24: memref<1x16xf32, #tpu.memory_space<vmem>>, %arg25: memref<16x16xf32, #tpu.memory_space<vmem>>, %arg26: memref<1x16xf32, #tpu.memory_space<vmem>>, %arg27: memref<16x16xf32, #tpu.memory_space<vmem>>, %arg28: memref<1x16xf32, #tpu.memory_space<vmem>>, %arg29: memref<32x16xf32, #tpu.memory_space<vmem>>, %arg30: memref<1x16xf32, #tpu.memory_space<vmem>>, %arg31: memref<16x16xf32, #tpu.memory_space<vmem>>, %arg32: memref<1x16xf32, #tpu.memory_space<vmem>>, %arg33: memref<16x8xf32, #tpu.memory_space<vmem>>, %arg34: memref<1x8xf32, #tpu.memory_space<vmem>>, %arg35: memref<8x16xf32, #tpu.memory_space<vmem>>, %arg36: memref<1x16xf32, #tpu.memory_space<vmem>>, %arg37: memref<16x16xf32, #tpu.memory_space<vmem>>, %arg38: memref<1x16xf32, #tpu.memory_space<vmem>>, %arg39: memref<16x8xf32, #tpu.memory_space<vmem>>, %arg40: memref<1x8xf32, #tpu.memory_space<vmem>>, %arg41: memref<8x16xf32, #tpu.memory_space<vmem>>, %arg42: memref<1x16xf32, #tpu.memory_space<vmem>>, %arg43: memref<16x16xf32, #tpu.memory_space<vmem>>, %arg44: memref<1x16xf32, #tpu.memory_space<vmem>>, %arg45: memref<16x1xf32, #tpu.memory_space<vmem>>, %arg46: memref<1x1xf32, #tpu.memory_space<vmem>>, %arg47: memref<1x1x1xf32, #tpu.memory_space<vmem>>) attributes {dimension_semantics = [#tpu.dimension_semantics<parallel>], iteration_bounds = array<i64: 2>, scalar_prefetch = 0 : i64, scratch_operands = 0 : i64, tpu.core_type = #tpu.core_type<tc>, window_params = [{transform_indices = @transform_0, window_bounds = array<i64: 1, 8, 6>}, {transform_indices = @transform_1, window_bounds = array<i64: 1, 8, 5>}, {transform_indices = @transform_2, window_bounds = array<i64: 1, 8, 8>}, {transform_indices = @transform_3, window_bounds = array<i64: 1, 8, 8>}, {pipeline_mode = #tpu.pipeline_mode<synchronous>, transform_indices = @transform_4, window_bounds = array<i64: 6, 16>}, {pipeline_mode = #tpu.pipeline_mode<synchronous>, transform_indices = @transform_5, window_bounds = array<i64: 1, 16>}, {pipeline_mode = #tpu.pipeline_mode<synchronous>, transform_indices = @transform_6, window_bounds = array<i64: 16, 16>}, {pipeline_mode = #tpu.pipeline_mode<synchronous>, transform_indices = @transform_7, window_bounds = array<i64: 1, 16>}, {pipeline_mode = #tpu.pipeline_mode<synchronous>, transform_indices = @transform_8, window_bounds = array<i64: 16, 16>}, {pipeline_mode = #tpu.pipeline_mode<synchronous>, transform_indices = @transform_9, window_bounds = array<i64: 1, 16>}, {pipeline_mode = #tpu.pipeline_mode<synchronous>, transform_indices = @transform_10, window_bounds = array<i64: 16, 16>}, {pipeline_mode = #tpu.pipeline_mode<synchronous>, transform_indices = @transform_11, window_bounds = array<i64: 1, 16>}, {pipeline_mode = #tpu.pipeline_mode<synchronous>, transform_indices = @transform_12, window_bounds = array<i64: 16, 16>}, {pipeline_mode = #tpu.pipeline_mode<synchronous>, transform_indices = @transform_13, window_bounds = array<i64: 1, 16>}, {pipeline_mode = #tpu.pipeline_mode<synchronous>, transform_indices = @transform_14, window_bounds = array<i64: 16, 16>}, {pipeline_mode = #tpu.pipeline_mode<synchronous>, transform_indices = @transform_15, window_bounds = array<i64: 1, 16>}, {pipeline_mode = #tpu.pipeline_mode<synchronous>, transform_indices = @transform_16, window_bounds = array<i64: 5, 16>}, {pipeline_mode = #tpu.pipeline_mode<synchronous>, transform_indices = @transform_17, window_bounds = array<i64: 1, 16>}, {pipeline_mode = #tpu.pipeline_mode<synchronous>, transform_indices = @transform_18, window_bounds = array<i64: 16, 16>}, {pipeline_mode = #tpu.pipeline_mode<synchronous>, transform_indices = @transform_19, window_bounds = array<i64: 1, 16>}, {pipeline_mode = #tpu.pipeline_mode<synchronous>, transform_indices = @transform_20, window_bounds = array<i64: 16, 16>}, {pipeline_mode = #tpu.pipeline_mode<synchronous>, transform_indices = @transform_21, window_bounds = array<i64: 1, 16>}, {pipeline_mode = #tpu.pipeline_mode<synchronous>, transform_indices = @transform_22, window_bounds = array<i64: 16, 16>}, {pipeline_mode = #tpu.pipeline_mode<synchronous>, transform_indices = @transform_23, window_bounds = array<i64: 1, 16>}, {pipeline_mode = #tpu.pipeline_mode<synchronous>, transform_indices = @transform_24, window_bounds = array<i64: 16, 16>}, {pipeline_mode = #tpu.pipeline_mode<synchronous>, transform_indices = @transform_25, window_bounds = array<i64: 1, 16>}, {pipeline_mode = #tpu.pipeline_mode<synchronous>, transform_indices = @transform_26, window_bounds = array<i64: 16, 16>}, {pipeline_mode = #tpu.pipeline_mode<synchronous>, transform_indices = @transform_27, window_bounds = array<i64: 1, 16>}, {pipeline_mode = #tpu.pipeline_mode<synchronous>, transform_indices = @transform_28, window_bounds = array<i64: 32, 16>}, {pipeline_mode = #tpu.pipeline_mode<synchronous>, transform_indices = @transform_29, window_bounds = array<i64: 1, 16>}, {pipeline_mode = #tpu.pipeline_mode<synchronous>, transform_indices = @transform_30, window_bounds = array<i64: 16, 16>}, {pipeline_mode = #tpu.pipeline_mode<synchronous>, transform_indices = @transform_31, window_bounds = array<i64: 1, 16>}, {pipeline_mode = #tpu.pipeline_mode<synchronous>, transform_indices = @transform_32, window_bounds = array<i64: 16, 8>}, {pipeline_mode = #tpu.pipeline_mode<synchronous>, transform_indices = @transform_33, window_bounds = array<i64: 1, 8>}, {pipeline_mode = #tpu.pipeline_mode<synchronous>, transform_indices = @transform_34, window_bounds = array<i64: 8, 16>}, {pipeline_mode = #tpu.pipeline_mode<synchronous>, transform_indices = @transform_35, window_bounds = array<i64: 1, 16>}, {pipeline_mode = #tpu.pipeline_mode<synchronous>, transform_indices = @transform_36, window_bounds = array<i64: 16, 16>}, {pipeline_mode = #tpu.pipeline_mode<synchronous>, transform_indices = @transform_37, window_bounds = array<i64: 1, 16>}, {pipeline_mode = #tpu.pipeline_mode<synchronous>, transform_indices = @transform_38, window_bounds = array<i64: 16, 8>}, {pipeline_mode = #tpu.pipeline_mode<synchronous>, transform_indices = @transform_39, window_bounds = array<i64: 1, 8>}, {pipeline_mode = #tpu.pipeline_mode<synchronous>, transform_indices = @transform_40, window_bounds = array<i64: 8, 16>}, {pipeline_mode = #tpu.pipeline_mode<synchronous>, transform_indices = @transform_41, window_bounds = array<i64: 1, 16>}, {pipeline_mode = #tpu.pipeline_mode<synchronous>, transform_indices = @transform_42, window_bounds = array<i64: 16, 16>}, {pipeline_mode = #tpu.pipeline_mode<synchronous>, transform_indices = @transform_43, window_bounds = array<i64: 1, 16>}, {pipeline_mode = #tpu.pipeline_mode<synchronous>, transform_indices = @transform_44, window_bounds = array<i64: 16, 1>}, {pipeline_mode = #tpu.pipeline_mode<synchronous>, transform_indices = @transform_45, window_bounds = array<i64: 1, 1>}, {transform_indices = @transform_46, window_bounds = array<i64: 1, 1, 1>}]} {
    %c0 = arith.constant 0 : index
    %c0_0 = arith.constant 0 : index
    %c0_1 = arith.constant 0 : index
    %0 = vector.load %arg1[%c0, %c0_0, %c0_1] : memref<1x8x6xf32, #tpu.memory_space<vmem>>, vector<1x8x6xf32>
    %1 = vector.shape_cast %0 : vector<1x8x6xf32> to vector<8x6xf32>
    %c0_2 = arith.constant 0 : index
    %c0_3 = arith.constant 0 : index
    %c0_4 = arith.constant 0 : index
    %2 = vector.load %arg3[%c0_2, %c0_3, %c0_4] : memref<1x8x8xf32, #tpu.memory_space<vmem>>, vector<1x8x8xf32>
    %c0_5 = arith.constant 0 : index
    %c0_6 = arith.constant 0 : index
    %3 = vector.load %arg5[%c0_5, %c0_6] : memref<6x16xf32, #tpu.memory_space<vmem>>, vector<6x16xf32>
    %c0_7 = arith.constant 0 : index
    %c0_8 = arith.constant 0 : index
    %4 = vector.load %arg6[%c0_7, %c0_8] : memref<1x16xf32, #tpu.memory_space<vmem>>, vector<1x16xf32>
    %c0_9 = arith.constant 0 : index
    %c0_10 = arith.constant 0 : index
    %5 = vector.load %arg7[%c0_9, %c0_10] : memref<16x16xf32, #tpu.memory_space<vmem>>, vector<16x16xf32>
    %c0_11 = arith.constant 0 : index
    %c0_12 = arith.constant 0 : index
    %6 = vector.load %arg8[%c0_11, %c0_12] : memref<1x16xf32, #tpu.memory_space<vmem>>, vector<1x16xf32>
    %c0_13 = arith.constant 0 : index
    %c0_14 = arith.constant 0 : index
    %7 = vector.load %arg9[%c0_13, %c0_14] : memref<16x16xf32, #tpu.memory_space<vmem>>, vector<16x16xf32>
    %c0_15 = arith.constant 0 : index
    %c0_16 = arith.constant 0 : index
    %8 = vector.load %arg10[%c0_15, %c0_16] : memref<1x16xf32, #tpu.memory_space<vmem>>, vector<1x16xf32>
    %c0_17 = arith.constant 0 : index
    %c0_18 = arith.constant 0 : index
    %9 = vector.load %arg11[%c0_17, %c0_18] : memref<16x16xf32, #tpu.memory_space<vmem>>, vector<16x16xf32>
    %c0_19 = arith.constant 0 : index
    %c0_20 = arith.constant 0 : index
    %10 = vector.load %arg12[%c0_19, %c0_20] : memref<1x16xf32, #tpu.memory_space<vmem>>, vector<1x16xf32>
    %c0_21 = arith.constant 0 : index
    %c0_22 = arith.constant 0 : index
    %11 = vector.load %arg13[%c0_21, %c0_22] : memref<16x16xf32, #tpu.memory_space<vmem>>, vector<16x16xf32>
    %c0_23 = arith.constant 0 : index
    %c0_24 = arith.constant 0 : index
    %12 = vector.load %arg14[%c0_23, %c0_24] : memref<1x16xf32, #tpu.memory_space<vmem>>, vector<1x16xf32>
    %c0_25 = arith.constant 0 : index
    %c0_26 = arith.constant 0 : index
    %13 = vector.load %arg15[%c0_25, %c0_26] : memref<16x16xf32, #tpu.memory_space<vmem>>, vector<16x16xf32>
    %c0_27 = arith.constant 0 : index
    %c0_28 = arith.constant 0 : index
    %14 = vector.load %arg16[%c0_27, %c0_28] : memref<1x16xf32, #tpu.memory_space<vmem>>, vector<1x16xf32>
    %cst = arith.constant dense<0.000000e+00> : vector<8x16xf32>
    %15 = tpu.matmul %1, %3, %cst {dimension_numbers = #tpu.dot_dimension_numbers<[1], [0], [0], [1], [0, 0, 1, 1], [], []>} : vector<8x6xf32>, vector<6x16xf32>, vector<8x16xf32> -> vector<8x16xf32>
    %16 = vector.broadcast %4 : vector<1x16xf32> to vector<8x16xf32>
    %17 = arith.addf %15, %16 : vector<8x16xf32>
    %cst_29 = arith.constant 0.000000e+00 : f32
    %18 = vector.broadcast %cst_29 : f32 to vector<8x16xf32>
    %19 = arith.cmpf ogt, %17, %18 : vector<8x16xf32>
    %cst_30 = arith.constant 0.00999999977 : f32
    %20 = vector.broadcast %cst_30 : f32 to vector<8x16xf32>
    %21 = arith.mulf %20, %17 : vector<8x16xf32>
    %22 = arith.select %19, %17, %21 : vector<8x16xi1>, vector<8x16xf32>
    %cst_31 = arith.constant dense<0.000000e+00> : vector<8x16xf32>
    %23 = tpu.matmul %22, %5, %cst_31 {dimension_numbers = #tpu.dot_dimension_numbers<[1], [0], [0], [1], [0, 0, 1, 1], [], []>} : vector<8x16xf32>, vector<16x16xf32>, vector<8x16xf32> -> vector<8x16xf32>
    %24 = vector.broadcast %6 : vector<1x16xf32> to vector<8x16xf32>
    %25 = arith.addf %23, %24 : vector<8x16xf32>
    %cst_32 = arith.constant 0.000000e+00 : f32
    %26 = vector.broadcast %cst_32 : f32 to vector<8x16xf32>
    %27 = arith.cmpf ogt, %25, %26 : vector<8x16xf32>
    %cst_33 = arith.constant 0.00999999977 : f32
    %28 = vector.broadcast %cst_33 : f32 to vector<8x16xf32>
    %29 = arith.mulf %28, %25 : vector<8x16xf32>
    %30 = arith.select %27, %25, %29 : vector<8x16xi1>, vector<8x16xf32>
    %cst_34 = arith.constant dense<0.000000e+00> : vector<8x16xf32>
    %31 = tpu.matmul %30, %7, %cst_34 {dimension_numbers = #tpu.dot_dimension_numbers<[1], [0], [0], [1], [0, 0, 1, 1], [], []>} : vector<8x16xf32>, vector<16x16xf32>, vector<8x16xf32> -> vector<8x16xf32>
    %32 = vector.broadcast %8 : vector<1x16xf32> to vector<8x16xf32>
    %33 = arith.addf %31, %32 : vector<8x16xf32>
    %cst_35 = arith.constant 0.000000e+00 : f32
    %34 = vector.broadcast %cst_35 : f32 to vector<8x16xf32>
    %35 = arith.cmpf ogt, %33, %34 : vector<8x16xf32>
    %cst_36 = arith.constant 0.00999999977 : f32
    %36 = vector.broadcast %cst_36 : f32 to vector<8x16xf32>
    %37 = arith.mulf %36, %33 : vector<8x16xf32>
    %38 = arith.select %35, %33, %37 : vector<8x16xi1>, vector<8x16xf32>
    %cst_37 = arith.constant dense<0.000000e+00> : vector<8x16xf32>
    %39 = tpu.matmul %38, %9, %cst_37 {dimension_numbers = #tpu.dot_dimension_numbers<[1], [0], [0], [1], [0, 0, 1, 1], [], []>} : vector<8x16xf32>, vector<16x16xf32>, vector<8x16xf32> -> vector<8x16xf32>
    %40 = vector.broadcast %10 : vector<1x16xf32> to vector<8x16xf32>
    %41 = arith.addf %39, %40 : vector<8x16xf32>
    %cst_38 = arith.constant 0.000000e+00 : f32
    %42 = vector.broadcast %cst_38 : f32 to vector<8x16xf32>
    %43 = arith.cmpf ogt, %41, %42 : vector<8x16xf32>
    %cst_39 = arith.constant 0.00999999977 : f32
    %44 = vector.broadcast %cst_39 : f32 to vector<8x16xf32>
    %45 = arith.mulf %44, %41 : vector<8x16xf32>
    %46 = arith.select %43, %41, %45 : vector<8x16xi1>, vector<8x16xf32>
    %cst_40 = arith.constant dense<0.000000e+00> : vector<8x16xf32>
    %47 = tpu.matmul %46, %11, %cst_40 {dimension_numbers = #tpu.dot_dimension_numbers<[1], [0], [0], [1], [0, 0, 1, 1], [], []>} : vector<8x16xf32>, vector<16x16xf32>, vector<8x16xf32> -> vector<8x16xf32>
    %48 = vector.broadcast %12 : vector<1x16xf32> to vector<8x16xf32>
    %49 = arith.addf %47, %48 : vector<8x16xf32>
    %cst_41 = arith.constant 0.000000e+00 : f32
    %50 = vector.broadcast %cst_41 : f32 to vector<8x16xf32>
    %51 = arith.cmpf ogt, %49, %50 : vector<8x16xf32>
    %cst_42 = arith.constant 0.00999999977 : f32
    %52 = vector.broadcast %cst_42 : f32 to vector<8x16xf32>
    %53 = arith.mulf %52, %49 : vector<8x16xf32>
    %54 = arith.select %51, %49, %53 : vector<8x16xi1>, vector<8x16xf32>
    %cst_43 = arith.constant dense<0.000000e+00> : vector<8x16xf32>
    %55 = tpu.matmul %54, %13, %cst_43 {dimension_numbers = #tpu.dot_dimension_numbers<[1], [0], [0], [1], [0, 0, 1, 1], [], []>} : vector<8x16xf32>, vector<16x16xf32>, vector<8x16xf32> -> vector<8x16xf32>
    %56 = vector.broadcast %14 : vector<1x16xf32> to vector<8x16xf32>
    %57 = arith.addf %55, %56 : vector<8x16xf32>
    %cst_44 = arith.constant 0.000000e+00 : f32
    %58 = vector.broadcast %cst_44 : f32 to vector<8x16xf32>
    %59 = arith.cmpf ogt, %57, %58 : vector<8x16xf32>
    %cst_45 = arith.constant 0.00999999977 : f32
    %60 = vector.broadcast %cst_45 : f32 to vector<8x16xf32>
    %61 = arith.mulf %60, %57 : vector<8x16xf32>
    %62 = arith.select %59, %57, %61 : vector<8x16xi1>, vector<8x16xf32>
    %63 = vector.shape_cast %2 : vector<1x8x8xf32> to vector<8x8xf32>
    %cst_46 = arith.constant dense<0.000000e+00> : vector<8x16xf32>
    %64 = tpu.matmul %63, %62, %cst_46 {dimension_numbers = #tpu.dot_dimension_numbers<[1], [0], [0], [1], [0, 0, 1, 1], [], []>} : vector<8x8xf32>, vector<8x16xf32>, vector<8x16xf32> -> vector<8x16xf32>
    %65 = arith.addf %38, %64 : vector<8x16xf32>
    %cst_47 = arith.constant dense<0.000000e+00> : vector<8x16xf32>
    %66 = tpu.matmul %65, %9, %cst_47 {dimension_numbers = #tpu.dot_dimension_numbers<[1], [0], [0], [1], [0, 0, 1, 1], [], []>} : vector<8x16xf32>, vector<16x16xf32>, vector<8x16xf32> -> vector<8x16xf32>
    %67 = vector.broadcast %10 : vector<1x16xf32> to vector<8x16xf32>
    %68 = arith.addf %66, %67 : vector<8x16xf32>
    %cst_48 = arith.constant 0.000000e+00 : f32
    %69 = vector.broadcast %cst_48 : f32 to vector<8x16xf32>
    %70 = arith.cmpf ogt, %68, %69 : vector<8x16xf32>
    %cst_49 = arith.constant 0.00999999977 : f32
    %71 = vector.broadcast %cst_49 : f32 to vector<8x16xf32>
    %72 = arith.mulf %71, %68 : vector<8x16xf32>
    %73 = arith.select %70, %68, %72 : vector<8x16xi1>, vector<8x16xf32>
    %cst_50 = arith.constant dense<0.000000e+00> : vector<8x16xf32>
    %74 = tpu.matmul %73, %11, %cst_50 {dimension_numbers = #tpu.dot_dimension_numbers<[1], [0], [0], [1], [0, 0, 1, 1], [], []>} : vector<8x16xf32>, vector<16x16xf32>, vector<8x16xf32> -> vector<8x16xf32>
    %75 = vector.broadcast %12 : vector<1x16xf32> to vector<8x16xf32>
    %76 = arith.addf %74, %75 : vector<8x16xf32>
    %cst_51 = arith.constant 0.000000e+00 : f32
    %77 = vector.broadcast %cst_51 : f32 to vector<8x16xf32>
    %78 = arith.cmpf ogt, %76, %77 : vector<8x16xf32>
    %cst_52 = arith.constant 0.00999999977 : f32
    %79 = vector.broadcast %cst_52 : f32 to vector<8x16xf32>
    %80 = arith.mulf %79, %76 : vector<8x16xf32>
    %81 = arith.select %78, %76, %80 : vector<8x16xi1>, vector<8x16xf32>
    %cst_53 = arith.constant dense<0.000000e+00> : vector<8x16xf32>
    %82 = tpu.matmul %81, %13, %cst_53 {dimension_numbers = #tpu.dot_dimension_numbers<[1], [0], [0], [1], [0, 0, 1, 1], [], []>} : vector<8x16xf32>, vector<16x16xf32>, vector<8x16xf32> -> vector<8x16xf32>
    %83 = vector.broadcast %14 : vector<1x16xf32> to vector<8x16xf32>
    %84 = arith.addf %82, %83 : vector<8x16xf32>
    %cst_54 = arith.constant 0.000000e+00 : f32
    %85 = vector.broadcast %cst_54 : f32 to vector<8x16xf32>
    %86 = arith.cmpf ogt, %84, %85 : vector<8x16xf32>
    %cst_55 = arith.constant 0.00999999977 : f32
    %87 = vector.broadcast %cst_55 : f32 to vector<8x16xf32>
    %88 = arith.mulf %87, %84 : vector<8x16xf32>
    %89 = arith.select %86, %84, %88 : vector<8x16xi1>, vector<8x16xf32>
    %90 = vector.shape_cast %2 : vector<1x8x8xf32> to vector<8x8xf32>
    %cst_56 = arith.constant dense<0.000000e+00> : vector<8x16xf32>
    %91 = tpu.matmul %90, %89, %cst_56 {dimension_numbers = #tpu.dot_dimension_numbers<[1], [0], [0], [1], [0, 0, 1, 1], [], []>} : vector<8x8xf32>, vector<8x16xf32>, vector<8x16xf32> -> vector<8x16xf32>
    %92 = arith.addf %65, %91 : vector<8x16xf32>
    %c0_57 = arith.constant 0 : index
    %c0_58 = arith.constant 0 : index
    %c0_59 = arith.constant 0 : index
    %93 = vector.load %arg2[%c0_57, %c0_58, %c0_59] : memref<1x8x5xf32, #tpu.memory_space<vmem>>, vector<1x8x5xf32>
    %94 = vector.shape_cast %93 : vector<1x8x5xf32> to vector<8x5xf32>
    %c0_60 = arith.constant 0 : index
    %c0_61 = arith.constant 0 : index
    %c0_62 = arith.constant 0 : index
    %95 = vector.load %arg4[%c0_60, %c0_61, %c0_62] : memref<1x8x8xf32, #tpu.memory_space<vmem>>, vector<1x8x8xf32>
    %c0_63 = arith.constant 0 : index
    %c0_64 = arith.constant 0 : index
    %96 = vector.load %arg17[%c0_63, %c0_64] : memref<5x16xf32, #tpu.memory_space<vmem>>, vector<5x16xf32>
    %c0_65 = arith.constant 0 : index
    %c0_66 = arith.constant 0 : index
    %97 = vector.load %arg18[%c0_65, %c0_66] : memref<1x16xf32, #tpu.memory_space<vmem>>, vector<1x16xf32>
    %c0_67 = arith.constant 0 : index
    %c0_68 = arith.constant 0 : index
    %98 = vector.load %arg19[%c0_67, %c0_68] : memref<16x16xf32, #tpu.memory_space<vmem>>, vector<16x16xf32>
    %c0_69 = arith.constant 0 : index
    %c0_70 = arith.constant 0 : index
    %99 = vector.load %arg20[%c0_69, %c0_70] : memref<1x16xf32, #tpu.memory_space<vmem>>, vector<1x16xf32>
    %c0_71 = arith.constant 0 : index
    %c0_72 = arith.constant 0 : index
    %100 = vector.load %arg21[%c0_71, %c0_72] : memref<16x16xf32, #tpu.memory_space<vmem>>, vector<16x16xf32>
    %c0_73 = arith.constant 0 : index
    %c0_74 = arith.constant 0 : index
    %101 = vector.load %arg22[%c0_73, %c0_74] : memref<1x16xf32, #tpu.memory_space<vmem>>, vector<1x16xf32>
    %c0_75 = arith.constant 0 : index
    %c0_76 = arith.constant 0 : index
    %102 = vector.load %arg23[%c0_75, %c0_76] : memref<16x16xf32, #tpu.memory_space<vmem>>, vector<16x16xf32>
    %c0_77 = arith.constant 0 : index
    %c0_78 = arith.constant 0 : index
    %103 = vector.load %arg24[%c0_77, %c0_78] : memref<1x16xf32, #tpu.memory_space<vmem>>, vector<1x16xf32>
    %c0_79 = arith.constant 0 : index
    %c0_80 = arith.constant 0 : index
    %104 = vector.load %arg25[%c0_79, %c0_80] : memref<16x16xf32, #tpu.memory_space<vmem>>, vector<16x16xf32>
    %c0_81 = arith.constant 0 : index
    %c0_82 = arith.constant 0 : index
    %105 = vector.load %arg26[%c0_81, %c0_82] : memref<1x16xf32, #tpu.memory_space<vmem>>, vector<1x16xf32>
    %c0_83 = arith.constant 0 : index
    %c0_84 = arith.constant 0 : index
    %106 = vector.load %arg27[%c0_83, %c0_84] : memref<16x16xf32, #tpu.memory_space<vmem>>, vector<16x16xf32>
    %c0_85 = arith.constant 0 : index
    %c0_86 = arith.constant 0 : index
    %107 = vector.load %arg28[%c0_85, %c0_86] : memref<1x16xf32, #tpu.memory_space<vmem>>, vector<1x16xf32>
    %cst_87 = arith.constant dense<0.000000e+00> : vector<8x16xf32>
    %108 = tpu.matmul %94, %96, %cst_87 {dimension_numbers = #tpu.dot_dimension_numbers<[1], [0], [0], [1], [0, 0, 1, 1], [], []>} : vector<8x5xf32>, vector<5x16xf32>, vector<8x16xf32> -> vector<8x16xf32>
    %109 = vector.broadcast %97 : vector<1x16xf32> to vector<8x16xf32>
    %110 = arith.addf %108, %109 : vector<8x16xf32>
    %cst_88 = arith.constant 0.000000e+00 : f32
    %111 = vector.broadcast %cst_88 : f32 to vector<8x16xf32>
    %112 = arith.cmpf ogt, %110, %111 : vector<8x16xf32>
    %cst_89 = arith.constant 0.00999999977 : f32
    %113 = vector.broadcast %cst_89 : f32 to vector<8x16xf32>
    %114 = arith.mulf %113, %110 : vector<8x16xf32>
    %115 = arith.select %112, %110, %114 : vector<8x16xi1>, vector<8x16xf32>
    %cst_90 = arith.constant dense<0.000000e+00> : vector<8x16xf32>
    %116 = tpu.matmul %115, %98, %cst_90 {dimension_numbers = #tpu.dot_dimension_numbers<[1], [0], [0], [1], [0, 0, 1, 1], [], []>} : vector<8x16xf32>, vector<16x16xf32>, vector<8x16xf32> -> vector<8x16xf32>
    %117 = vector.broadcast %99 : vector<1x16xf32> to vector<8x16xf32>
    %118 = arith.addf %116, %117 : vector<8x16xf32>
    %cst_91 = arith.constant 0.000000e+00 : f32
    %119 = vector.broadcast %cst_91 : f32 to vector<8x16xf32>
    %120 = arith.cmpf ogt, %118, %119 : vector<8x16xf32>
    %cst_92 = arith.constant 0.00999999977 : f32
    %121 = vector.broadcast %cst_92 : f32 to vector<8x16xf32>
    %122 = arith.mulf %121, %118 : vector<8x16xf32>
    %123 = arith.select %120, %118, %122 : vector<8x16xi1>, vector<8x16xf32>
    %cst_93 = arith.constant dense<0.000000e+00> : vector<8x16xf32>
    %124 = tpu.matmul %123, %100, %cst_93 {dimension_numbers = #tpu.dot_dimension_numbers<[1], [0], [0], [1], [0, 0, 1, 1], [], []>} : vector<8x16xf32>, vector<16x16xf32>, vector<8x16xf32> -> vector<8x16xf32>
    %125 = vector.broadcast %101 : vector<1x16xf32> to vector<8x16xf32>
    %126 = arith.addf %124, %125 : vector<8x16xf32>
    %cst_94 = arith.constant 0.000000e+00 : f32
    %127 = vector.broadcast %cst_94 : f32 to vector<8x16xf32>
    %128 = arith.cmpf ogt, %126, %127 : vector<8x16xf32>
    %cst_95 = arith.constant 0.00999999977 : f32
    %129 = vector.broadcast %cst_95 : f32 to vector<8x16xf32>
    %130 = arith.mulf %129, %126 : vector<8x16xf32>
    %131 = arith.select %128, %126, %130 : vector<8x16xi1>, vector<8x16xf32>
    %cst_96 = arith.constant dense<0.000000e+00> : vector<8x16xf32>
    %132 = tpu.matmul %131, %102, %cst_96 {dimension_numbers = #tpu.dot_dimension_numbers<[1], [0], [0], [1], [0, 0, 1, 1], [], []>} : vector<8x16xf32>, vector<16x16xf32>, vector<8x16xf32> -> vector<8x16xf32>
    %133 = vector.broadcast %103 : vector<1x16xf32> to vector<8x16xf32>
    %134 = arith.addf %132, %133 : vector<8x16xf32>
    %cst_97 = arith.constant 0.000000e+00 : f32
    %135 = vector.broadcast %cst_97 : f32 to vector<8x16xf32>
    %136 = arith.cmpf ogt, %134, %135 : vector<8x16xf32>
    %cst_98 = arith.constant 0.00999999977 : f32
    %137 = vector.broadcast %cst_98 : f32 to vector<8x16xf32>
    %138 = arith.mulf %137, %134 : vector<8x16xf32>
    %139 = arith.select %136, %134, %138 : vector<8x16xi1>, vector<8x16xf32>
    %cst_99 = arith.constant dense<0.000000e+00> : vector<8x16xf32>
    %140 = tpu.matmul %139, %104, %cst_99 {dimension_numbers = #tpu.dot_dimension_numbers<[1], [0], [0], [1], [0, 0, 1, 1], [], []>} : vector<8x16xf32>, vector<16x16xf32>, vector<8x16xf32> -> vector<8x16xf32>
    %141 = vector.broadcast %105 : vector<1x16xf32> to vector<8x16xf32>
    %142 = arith.addf %140, %141 : vector<8x16xf32>
    %cst_100 = arith.constant 0.000000e+00 : f32
    %143 = vector.broadcast %cst_100 : f32 to vector<8x16xf32>
    %144 = arith.cmpf ogt, %142, %143 : vector<8x16xf32>
    %cst_101 = arith.constant 0.00999999977 : f32
    %145 = vector.broadcast %cst_101 : f32 to vector<8x16xf32>
    %146 = arith.mulf %145, %142 : vector<8x16xf32>
    %147 = arith.select %144, %142, %146 : vector<8x16xi1>, vector<8x16xf32>
    %cst_102 = arith.constant dense<0.000000e+00> : vector<8x16xf32>
    %148 = tpu.matmul %147, %106, %cst_102 {dimension_numbers = #tpu.dot_dimension_numbers<[1], [0], [0], [1], [0, 0, 1, 1], [], []>} : vector<8x16xf32>, vector<16x16xf32>, vector<8x16xf32> -> vector<8x16xf32>
    %149 = vector.broadcast %107 : vector<1x16xf32> to vector<8x16xf32>
    %150 = arith.addf %148, %149 : vector<8x16xf32>
    %cst_103 = arith.constant 0.000000e+00 : f32
    %151 = vector.broadcast %cst_103 : f32 to vector<8x16xf32>
    %152 = arith.cmpf ogt, %150, %151 : vector<8x16xf32>
    %cst_104 = arith.constant 0.00999999977 : f32
    %153 = vector.broadcast %cst_104 : f32 to vector<8x16xf32>
    %154 = arith.mulf %153, %150 : vector<8x16xf32>
    %155 = arith.select %152, %150, %154 : vector<8x16xi1>, vector<8x16xf32>
    %156 = vector.shape_cast %95 : vector<1x8x8xf32> to vector<8x8xf32>
    %cst_105 = arith.constant dense<0.000000e+00> : vector<8x16xf32>
    %157 = tpu.matmul %156, %155, %cst_105 {dimension_numbers = #tpu.dot_dimension_numbers<[1], [0], [0], [1], [0, 0, 1, 1], [], []>} : vector<8x8xf32>, vector<8x16xf32>, vector<8x16xf32> -> vector<8x16xf32>
    %158 = arith.addf %131, %157 : vector<8x16xf32>
    %cst_106 = arith.constant dense<0.000000e+00> : vector<8x16xf32>
    %159 = tpu.matmul %158, %102, %cst_106 {dimension_numbers = #tpu.dot_dimension_numbers<[1], [0], [0], [1], [0, 0, 1, 1], [], []>} : vector<8x16xf32>, vector<16x16xf32>, vector<8x16xf32> -> vector<8x16xf32>
    %160 = vector.broadcast %103 : vector<1x16xf32> to vector<8x16xf32>
    %161 = arith.addf %159, %160 : vector<8x16xf32>
    %cst_107 = arith.constant 0.000000e+00 : f32
    %162 = vector.broadcast %cst_107 : f32 to vector<8x16xf32>
    %163 = arith.cmpf ogt, %161, %162 : vector<8x16xf32>
    %cst_108 = arith.constant 0.00999999977 : f32
    %164 = vector.broadcast %cst_108 : f32 to vector<8x16xf32>
    %165 = arith.mulf %164, %161 : vector<8x16xf32>
    %166 = arith.select %163, %161, %165 : vector<8x16xi1>, vector<8x16xf32>
    %cst_109 = arith.constant dense<0.000000e+00> : vector<8x16xf32>
    %167 = tpu.matmul %166, %104, %cst_109 {dimension_numbers = #tpu.dot_dimension_numbers<[1], [0], [0], [1], [0, 0, 1, 1], [], []>} : vector<8x16xf32>, vector<16x16xf32>, vector<8x16xf32> -> vector<8x16xf32>
    %168 = vector.broadcast %105 : vector<1x16xf32> to vector<8x16xf32>
    %169 = arith.addf %167, %168 : vector<8x16xf32>
    %cst_110 = arith.constant 0.000000e+00 : f32
    %170 = vector.broadcast %cst_110 : f32 to vector<8x16xf32>
    %171 = arith.cmpf ogt, %169, %170 : vector<8x16xf32>
    %cst_111 = arith.constant 0.00999999977 : f32
    %172 = vector.broadcast %cst_111 : f32 to vector<8x16xf32>
    %173 = arith.mulf %172, %169 : vector<8x16xf32>
    %174 = arith.select %171, %169, %173 : vector<8x16xi1>, vector<8x16xf32>
    %cst_112 = arith.constant dense<0.000000e+00> : vector<8x16xf32>
    %175 = tpu.matmul %174, %106, %cst_112 {dimension_numbers = #tpu.dot_dimension_numbers<[1], [0], [0], [1], [0, 0, 1, 1], [], []>} : vector<8x16xf32>, vector<16x16xf32>, vector<8x16xf32> -> vector<8x16xf32>
    %176 = vector.broadcast %107 : vector<1x16xf32> to vector<8x16xf32>
    %177 = arith.addf %175, %176 : vector<8x16xf32>
    %cst_113 = arith.constant 0.000000e+00 : f32
    %178 = vector.broadcast %cst_113 : f32 to vector<8x16xf32>
    %179 = arith.cmpf ogt, %177, %178 : vector<8x16xf32>
    %cst_114 = arith.constant 0.00999999977 : f32
    %180 = vector.broadcast %cst_114 : f32 to vector<8x16xf32>
    %181 = arith.mulf %180, %177 : vector<8x16xf32>
    %182 = arith.select %179, %177, %181 : vector<8x16xi1>, vector<8x16xf32>
    %183 = vector.shape_cast %95 : vector<1x8x8xf32> to vector<8x8xf32>
    %cst_115 = arith.constant dense<0.000000e+00> : vector<8x16xf32>
    %184 = tpu.matmul %183, %182, %cst_115 {dimension_numbers = #tpu.dot_dimension_numbers<[1], [0], [0], [1], [0, 0, 1, 1], [], []>} : vector<8x8xf32>, vector<8x16xf32>, vector<8x16xf32> -> vector<8x16xf32>
    %185 = arith.addf %158, %184 : vector<8x16xf32>
    %186 = tpu.concatenate %92, %185 in 1 : vector<8x16xf32>, vector<8x16xf32> -> vector<8x32xf32>
    %c0_116 = arith.constant 0 : index
    %c0_117 = arith.constant 0 : index
    %187 = vector.load %arg29[%c0_116, %c0_117] : memref<32x16xf32, #tpu.memory_space<vmem>>, vector<32x16xf32>
    %c0_118 = arith.constant 0 : index
    %c0_119 = arith.constant 0 : index
    %188 = vector.load %arg30[%c0_118, %c0_119] : memref<1x16xf32, #tpu.memory_space<vmem>>, vector<1x16xf32>
    %c0_120 = arith.constant 0 : index
    %c0_121 = arith.constant 0 : index
    %189 = vector.load %arg31[%c0_120, %c0_121] : memref<16x16xf32, #tpu.memory_space<vmem>>, vector<16x16xf32>
    %c0_122 = arith.constant 0 : index
    %c0_123 = arith.constant 0 : index
    %190 = vector.load %arg32[%c0_122, %c0_123] : memref<1x16xf32, #tpu.memory_space<vmem>>, vector<1x16xf32>
    %c0_124 = arith.constant 0 : index
    %c0_125 = arith.constant 0 : index
    %191 = vector.load %arg33[%c0_124, %c0_125] : memref<16x8xf32, #tpu.memory_space<vmem>>, vector<16x8xf32>
    %c0_126 = arith.constant 0 : index
    %c0_127 = arith.constant 0 : index
    %192 = vector.load %arg34[%c0_126, %c0_127] : memref<1x8xf32, #tpu.memory_space<vmem>>, vector<1x8xf32>
    %c0_128 = arith.constant 0 : index
    %c0_129 = arith.constant 0 : index
    %193 = vector.load %arg35[%c0_128, %c0_129] : memref<8x16xf32, #tpu.memory_space<vmem>>, vector<8x16xf32>
    %c0_130 = arith.constant 0 : index
    %c0_131 = arith.constant 0 : index
    %194 = vector.load %arg36[%c0_130, %c0_131] : memref<1x16xf32, #tpu.memory_space<vmem>>, vector<1x16xf32>
    %c0_132 = arith.constant 0 : index
    %c0_133 = arith.constant 0 : index
    %195 = vector.load %arg37[%c0_132, %c0_133] : memref<16x16xf32, #tpu.memory_space<vmem>>, vector<16x16xf32>
    %c0_134 = arith.constant 0 : index
    %c0_135 = arith.constant 0 : index
    %196 = vector.load %arg38[%c0_134, %c0_135] : memref<1x16xf32, #tpu.memory_space<vmem>>, vector<1x16xf32>
    %c0_136 = arith.constant 0 : index
    %c0_137 = arith.constant 0 : index
    %197 = vector.load %arg39[%c0_136, %c0_137] : memref<16x8xf32, #tpu.memory_space<vmem>>, vector<16x8xf32>
    %c0_138 = arith.constant 0 : index
    %c0_139 = arith.constant 0 : index
    %198 = vector.load %arg40[%c0_138, %c0_139] : memref<1x8xf32, #tpu.memory_space<vmem>>, vector<1x8xf32>
    %c0_140 = arith.constant 0 : index
    %c0_141 = arith.constant 0 : index
    %199 = vector.load %arg41[%c0_140, %c0_141] : memref<8x16xf32, #tpu.memory_space<vmem>>, vector<8x16xf32>
    %c0_142 = arith.constant 0 : index
    %c0_143 = arith.constant 0 : index
    %200 = vector.load %arg42[%c0_142, %c0_143] : memref<1x16xf32, #tpu.memory_space<vmem>>, vector<1x16xf32>
    %c0_144 = arith.constant 0 : index
    %c0_145 = arith.constant 0 : index
    %201 = vector.load %arg43[%c0_144, %c0_145] : memref<16x16xf32, #tpu.memory_space<vmem>>, vector<16x16xf32>
    %c0_146 = arith.constant 0 : index
    %c0_147 = arith.constant 0 : index
    %202 = vector.load %arg44[%c0_146, %c0_147] : memref<1x16xf32, #tpu.memory_space<vmem>>, vector<1x16xf32>
    %c0_148 = arith.constant 0 : index
    %c0_149 = arith.constant 0 : index
    %203 = vector.load %arg45[%c0_148, %c0_149] : memref<16x1xf32, #tpu.memory_space<vmem>>, vector<16x1xf32>
    %c0_150 = arith.constant 0 : index
    %c0_151 = arith.constant 0 : index
    %204 = vector.load %arg46[%c0_150, %c0_151] : memref<1x1xf32, #tpu.memory_space<vmem>>, vector<1x1xf32>
    %205 = vector.extract_strided_slice %186 {offsets = [0, 0], sizes = [4, 32], strides = [1, 1]} : vector<8x32xf32> to vector<4x32xf32>
    %cst_152 = arith.constant dense<0.000000e+00> : vector<4x16xf32>
    %206 = tpu.matmul %205, %187, %cst_152 {dimension_numbers = #tpu.dot_dimension_numbers<[1], [0], [0], [1], [0, 0, 1, 1], [], []>} : vector<4x32xf32>, vector<32x16xf32>, vector<4x16xf32> -> vector<4x16xf32>
    %207 = vector.broadcast %188 : vector<1x16xf32> to vector<4x16xf32>
    %208 = arith.addf %206, %207 : vector<4x16xf32>
    %cst_153 = arith.constant 0.000000e+00 : f32
    %209 = vector.broadcast %cst_153 : f32 to vector<4x16xf32>
    %210 = arith.cmpf ogt, %208, %209 : vector<4x16xf32>
    %cst_154 = arith.constant 0.00999999977 : f32
    %211 = vector.broadcast %cst_154 : f32 to vector<4x16xf32>
    %212 = arith.mulf %211, %208 : vector<4x16xf32>
    %213 = arith.select %210, %208, %212 : vector<4x16xi1>, vector<4x16xf32>
    %cst_155 = arith.constant dense<0.000000e+00> : vector<4x16xf32>
    %214 = tpu.matmul %213, %189, %cst_155 {dimension_numbers = #tpu.dot_dimension_numbers<[1], [0], [0], [1], [0, 0, 1, 1], [], []>} : vector<4x16xf32>, vector<16x16xf32>, vector<4x16xf32> -> vector<4x16xf32>
    %215 = vector.broadcast %190 : vector<1x16xf32> to vector<4x16xf32>
    %216 = arith.addf %214, %215 : vector<4x16xf32>
    %cst_156 = arith.constant 0.000000e+00 : f32
    %217 = vector.broadcast %cst_156 : f32 to vector<4x16xf32>
    %218 = arith.cmpf ogt, %216, %217 : vector<4x16xf32>
    %cst_157 = arith.constant 0.00999999977 : f32
    %219 = vector.broadcast %cst_157 : f32 to vector<4x16xf32>
    %220 = arith.mulf %219, %216 : vector<4x16xf32>
    %221 = arith.select %218, %216, %220 : vector<4x16xi1>, vector<4x16xf32>
    %cst_158 = arith.constant dense<0.000000e+00> : vector<4x8xf32>
    %222 = tpu.matmul %221, %191, %cst_158 {dimension_numbers = #tpu.dot_dimension_numbers<[1], [0], [0], [1], [0, 0, 1, 1], [], []>} : vector<4x16xf32>, vector<16x8xf32>, vector<4x8xf32> -> vector<4x8xf32>
    %223 = vector.broadcast %192 : vector<1x8xf32> to vector<4x8xf32>
    %224 = arith.addf %222, %223 : vector<4x8xf32>
    %cst_159 = arith.constant 0.000000e+00 : f32
    %225 = vector.broadcast %cst_159 : f32 to vector<4x8xf32>
    %226 = arith.cmpf ogt, %224, %225 : vector<4x8xf32>
    %cst_160 = arith.constant 0.00999999977 : f32
    %227 = vector.broadcast %cst_160 : f32 to vector<4x8xf32>
    %228 = arith.mulf %227, %224 : vector<4x8xf32>
    %229 = arith.select %226, %224, %228 : vector<4x8xi1>, vector<4x8xf32>
    %cst_161 = arith.constant dense<0.000000e+00> : vector<4x16xf32>
    %230 = tpu.matmul %229, %193, %cst_161 {dimension_numbers = #tpu.dot_dimension_numbers<[1], [0], [0], [1], [0, 0, 1, 1], [], []>} : vector<4x8xf32>, vector<8x16xf32>, vector<4x16xf32> -> vector<4x16xf32>
    %231 = vector.broadcast %194 : vector<1x16xf32> to vector<4x16xf32>
    %232 = arith.addf %230, %231 : vector<4x16xf32>
    %cst_162 = arith.constant 0.000000e+00 : f32
    %233 = vector.broadcast %cst_162 : f32 to vector<4x16xf32>
    %234 = arith.cmpf ogt, %232, %233 : vector<4x16xf32>
    %cst_163 = arith.constant 0.00999999977 : f32
    %235 = vector.broadcast %cst_163 : f32 to vector<4x16xf32>
    %236 = arith.mulf %235, %232 : vector<4x16xf32>
    %237 = arith.select %234, %232, %236 : vector<4x16xi1>, vector<4x16xf32>
    %cst_164 = arith.constant dense<0.000000e+00> : vector<4x16xf32>
    %238 = tpu.matmul %237, %195, %cst_164 {dimension_numbers = #tpu.dot_dimension_numbers<[1], [0], [0], [1], [0, 0, 1, 1], [], []>} : vector<4x16xf32>, vector<16x16xf32>, vector<4x16xf32> -> vector<4x16xf32>
    %239 = vector.broadcast %196 : vector<1x16xf32> to vector<4x16xf32>
    %240 = arith.addf %238, %239 : vector<4x16xf32>
    %cst_165 = arith.constant 0.000000e+00 : f32
    %241 = vector.broadcast %cst_165 : f32 to vector<4x16xf32>
    %242 = arith.cmpf ogt, %240, %241 : vector<4x16xf32>
    %cst_166 = arith.constant 0.00999999977 : f32
    %243 = vector.broadcast %cst_166 : f32 to vector<4x16xf32>
    %244 = arith.mulf %243, %240 : vector<4x16xf32>
    %245 = arith.select %242, %240, %244 : vector<4x16xi1>, vector<4x16xf32>
    %cst_167 = arith.constant dense<0.000000e+00> : vector<4x8xf32>
    %246 = tpu.matmul %245, %197, %cst_167 {dimension_numbers = #tpu.dot_dimension_numbers<[1], [0], [0], [1], [0, 0, 1, 1], [], []>} : vector<4x16xf32>, vector<16x8xf32>, vector<4x8xf32> -> vector<4x8xf32>
    %247 = vector.broadcast %198 : vector<1x8xf32> to vector<4x8xf32>
    %248 = arith.addf %246, %247 : vector<4x8xf32>
    %cst_168 = arith.constant 0.000000e+00 : f32
    %249 = vector.broadcast %cst_168 : f32 to vector<4x8xf32>
    %250 = arith.cmpf ogt, %248, %249 : vector<4x8xf32>
    %cst_169 = arith.constant 0.00999999977 : f32
    %251 = vector.broadcast %cst_169 : f32 to vector<4x8xf32>
    %252 = arith.mulf %251, %248 : vector<4x8xf32>
    %253 = arith.select %250, %248, %252 : vector<4x8xi1>, vector<4x8xf32>
    %cst_170 = arith.constant dense<0.000000e+00> : vector<8xf32>
    %254 = vector.multi_reduction <add>, %253, %cst_170 [0] : vector<4x8xf32> to vector<8xf32>
    %255 = vector.shape_cast %254 : vector<8xf32> to vector<1x8xf32>
    %cst_171 = arith.constant dense<0.000000e+00> : vector<1x16xf32>
    %256 = tpu.matmul %255, %199, %cst_171 {dimension_numbers = #tpu.dot_dimension_numbers<[1], [0], [0], [1], [0, 0, 1, 1], [], []>} : vector<1x8xf32>, vector<8x16xf32>, vector<1x16xf32> -> vector<1x16xf32>
    %257 = arith.addf %256, %200 : vector<1x16xf32>
    %cst_172 = arith.constant 0.000000e+00 : f32
    %258 = vector.broadcast %cst_172 : f32 to vector<1x16xf32>
    %259 = arith.cmpf ogt, %257, %258 : vector<1x16xf32>
    %cst_173 = arith.constant 0.00999999977 : f32
    %260 = vector.broadcast %cst_173 : f32 to vector<1x16xf32>
    %261 = arith.mulf %260, %257 : vector<1x16xf32>
    %262 = arith.select %259, %257, %261 : vector<1x16xi1>, vector<1x16xf32>
    %cst_174 = arith.constant dense<0.000000e+00> : vector<1x16xf32>
    %263 = tpu.matmul %262, %201, %cst_174 {dimension_numbers = #tpu.dot_dimension_numbers<[1], [0], [0], [1], [0, 0, 1, 1], [], []>} : vector<1x16xf32>, vector<16x16xf32>, vector<1x16xf32> -> vector<1x16xf32>
    %264 = arith.addf %263, %202 : vector<1x16xf32>
    %cst_175 = arith.constant 0.000000e+00 : f32
    %265 = vector.broadcast %cst_175 : f32 to vector<1x16xf32>
    %266 = arith.cmpf ogt, %264, %265 : vector<1x16xf32>
    %cst_176 = arith.constant 0.00999999977 : f32
    %267 = vector.broadcast %cst_176 : f32 to vector<1x16xf32>
    %268 = arith.mulf %267, %264 : vector<1x16xf32>
    %269 = arith.select %266, %264, %268 : vector<1x16xi1>, vector<1x16xf32>
    %cst_177 = arith.constant dense<0.000000e+00> : vector<1x1xf32>
    %270 = tpu.matmul %269, %203, %cst_177 {dimension_numbers = #tpu.dot_dimension_numbers<[1], [0], [0], [1], [0, 0, 1, 1], [], []>} : vector<1x16xf32>, vector<16x1xf32>, vector<1x1xf32> -> vector<1x1xf32>
    %271 = arith.addf %270, %204 : vector<1x1xf32>
    %272 = vector.shape_cast %271 : vector<1x1xf32> to vector<1x1x1xf32>
    %c0_178 = arith.constant 0 : index
    %c0_179 = arith.constant 0 : index
    %c0_180 = arith.constant 0 : index
    %273 = vector.load %arg47[%c0_178, %c0_179, %c0_180] : memref<1x1x1xf32, #tpu.memory_space<vmem>>, vector<1x1x1xf32>
    tpu.vector_store %arg47[%c0_178, %c0_179, %c0_180], %272 {strides = array<i32>} : memref<1x1x1xf32, #tpu.memory_space<vmem>>, vector<1x1x1xf32>,
    return
  }
  func.func @transform_0(%arg0: i32) -> (i32, i32, i32) {
    %c0_i32 = arith.constant 0 : i32
    %c0_i32_0 = arith.constant 0 : i32
    %c0_i32_1 = arith.constant 0 : i32
    return %arg0, %c0_i32, %c0_i32_0 : i32, i32, i32
  }
  func.func @transform_1(%arg0: i32) -> (i32, i32, i32) {
    %c0_i32 = arith.constant 0 : i32
    %c0_i32_0 = arith.constant 0 : i32
    %c0_i32_1 = arith.constant 0 : i32
    return %arg0, %c0_i32, %c0_i32_0 : i32, i32, i32
  }
  func.func @transform_2(%arg0: i32) -> (i32, i32, i32) {
    %c0_i32 = arith.constant 0 : i32
    %c0_i32_0 = arith.constant 0 : i32
    %c0_i32_1 = arith.constant 0 : i32
    return %arg0, %c0_i32, %c0_i32_0 : i32, i32, i32
  }
  func.func @transform_3(%arg0: i32) -> (i32, i32, i32) {
    %c0_i32 = arith.constant 0 : i32
    %c0_i32_0 = arith.constant 0 : i32
    %c0_i32_1 = arith.constant 0 : i32
    return %arg0, %c0_i32, %c0_i32_0 : i32, i32, i32
  }
  func.func @transform_4(%arg0: i32) -> (i32, i32) {
    %c0_i32 = arith.constant 0 : i32
    %c0_i32_0 = arith.constant 0 : i32
    %c0_i32_1 = arith.constant 0 : i32
    return %c0_i32, %c0_i32_0 : i32, i32
  }
  func.func @transform_5(%arg0: i32) -> (i32, i32) {
    %c0_i32 = arith.constant 0 : i32
    %c0_i32_0 = arith.constant 0 : i32
    %c0_i32_1 = arith.constant 0 : i32
    return %c0_i32, %c0_i32_0 : i32, i32
  }
  func.func @transform_6(%arg0: i32) -> (i32, i32) {
    %c0_i32 = arith.constant 0 : i32
    %c0_i32_0 = arith.constant 0 : i32
    %c0_i32_1 = arith.constant 0 : i32
    return %c0_i32, %c0_i32_0 : i32, i32
  }
  func.func @transform_7(%arg0: i32) -> (i32, i32) {
    %c0_i32 = arith.constant 0 : i32
    %c0_i32_0 = arith.constant 0 : i32
    %c0_i32_1 = arith.constant 0 : i32
    return %c0_i32, %c0_i32_0 : i32, i32
  }
  func.func @transform_8(%arg0: i32) -> (i32, i32) {
    %c0_i32 = arith.constant 0 : i32
    %c0_i32_0 = arith.constant 0 : i32
    %c0_i32_1 = arith.constant 0 : i32
    return %c0_i32, %c0_i32_0 : i32, i32
  }
  func.func @transform_9(%arg0: i32) -> (i32, i32) {
    %c0_i32 = arith.constant 0 : i32
    %c0_i32_0 = arith.constant 0 : i32
    %c0_i32_1 = arith.constant 0 : i32
    return %c0_i32, %c0_i32_0 : i32, i32
  }
  func.func @transform_10(%arg0: i32) -> (i32, i32) {
    %c0_i32 = arith.constant 0 : i32
    %c0_i32_0 = arith.constant 0 : i32
    %c0_i32_1 = arith.constant 0 : i32
    return %c0_i32, %c0_i32_0 : i32, i32
  }
  func.func @transform_11(%arg0: i32) -> (i32, i32) {
    %c0_i32 = arith.constant 0 : i32
    %c0_i32_0 = arith.constant 0 : i32
    %c0_i32_1 = arith.constant 0 : i32
    return %c0_i32, %c0_i32_0 : i32, i32
  }
  func.func @transform_12(%arg0: i32) -> (i32, i32) {
    %c0_i32 = arith.constant 0 : i32
    %c0_i32_0 = arith.constant 0 : i32
    %c0_i32_1 = arith.constant 0 : i32
    return %c0_i32, %c0_i32_0 : i32, i32
  }
  func.func @transform_13(%arg0: i32) -> (i32, i32) {
    %c0_i32 = arith.constant 0 : i32
    %c0_i32_0 = arith.constant 0 : i32
    %c0_i32_1 = arith.constant 0 : i32
    return %c0_i32, %c0_i32_0 : i32, i32
  }
  func.func @transform_14(%arg0: i32) -> (i32, i32) {
    %c0_i32 = arith.constant 0 : i32
    %c0_i32_0 = arith.constant 0 : i32
    %c0_i32_1 = arith.constant 0 : i32
    return %c0_i32, %c0_i32_0 : i32, i32
  }
  func.func @transform_15(%arg0: i32) -> (i32, i32) {
    %c0_i32 = arith.constant 0 : i32
    %c0_i32_0 = arith.constant 0 : i32
    %c0_i32_1 = arith.constant 0 : i32
    return %c0_i32, %c0_i32_0 : i32, i32
  }
  func.func @transform_16(%arg0: i32) -> (i32, i32) {
    %c0_i32 = arith.constant 0 : i32
    %c0_i32_0 = arith.constant 0 : i32
    %c0_i32_1 = arith.constant 0 : i32
    return %c0_i32, %c0_i32_0 : i32, i32
  }
  func.func @transform_17(%arg0: i32) -> (i32, i32) {
    %c0_i32 = arith.constant 0 : i32
    %c0_i32_0 = arith.constant 0 : i32
    %c0_i32_1 = arith.constant 0 : i32
    return %c0_i32, %c0_i32_0 : i32, i32
  }
  func.func @transform_18(%arg0: i32) -> (i32, i32) {
    %c0_i32 = arith.constant 0 : i32
    %c0_i32_0 = arith.constant 0 : i32
    %c0_i32_1 = arith.constant 0 : i32
    return %c0_i32, %c0_i32_0 : i32, i32
  }
  func.func @transform_19(%arg0: i32) -> (i32, i32) {
    %c0_i32 = arith.constant 0 : i32
    %c0_i32_0 = arith.constant 0 : i32
    %c0_i32_1 = arith.constant 0 : i32
    return %c0_i32, %c0_i32_0 : i32, i32
  }
  func.func @transform_20(%arg0: i32) -> (i32, i32) {
    %c0_i32 = arith.constant 0 : i32
    %c0_i32_0 = arith.constant 0 : i32
    %c0_i32_1 = arith.constant 0 : i32
    return %c0_i32, %c0_i32_0 : i32, i32
  }
  func.func @transform_21(%arg0: i32) -> (i32, i32) {
    %c0_i32 = arith.constant 0 : i32
    %c0_i32_0 = arith.constant 0 : i32
    %c0_i32_1 = arith.constant 0 : i32
    return %c0_i32, %c0_i32_0 : i32, i32
  }
  func.func @transform_22(%arg0: i32) -> (i32, i32) {
    %c0_i32 = arith.constant 0 : i32
    %c0_i32_0 = arith.constant 0 : i32
    %c0_i32_1 = arith.constant 0 : i32
    return %c0_i32, %c0_i32_0 : i32, i32
  }
  func.func @transform_23(%arg0: i32) -> (i32, i32) {
    %c0_i32 = arith.constant 0 : i32
    %c0_i32_0 = arith.constant 0 : i32
    %c0_i32_1 = arith.constant 0 : i32
    return %c0_i32, %c0_i32_0 : i32, i32
  }
  func.func @transform_24(%arg0: i32) -> (i32, i32) {
    %c0_i32 = arith.constant 0 : i32
    %c0_i32_0 = arith.constant 0 : i32
    %c0_i32_1 = arith.constant 0 : i32
    return %c0_i32, %c0_i32_0 : i32, i32
  }
  func.func @transform_25(%arg0: i32) -> (i32, i32) {
    %c0_i32 = arith.constant 0 : i32
    %c0_i32_0 = arith.constant 0 : i32
    %c0_i32_1 = arith.constant 0 : i32
    return %c0_i32, %c0_i32_0 : i32, i32
  }
  func.func @transform_26(%arg0: i32) -> (i32, i32) {
    %c0_i32 = arith.constant 0 : i32
    %c0_i32_0 = arith.constant 0 : i32
    %c0_i32_1 = arith.constant 0 : i32
    return %c0_i32, %c0_i32_0 : i32, i32
  }
  func.func @transform_27(%arg0: i32) -> (i32, i32) {
    %c0_i32 = arith.constant 0 : i32
    %c0_i32_0 = arith.constant 0 : i32
    %c0_i32_1 = arith.constant 0 : i32
    return %c0_i32, %c0_i32_0 : i32, i32
  }
  func.func @transform_28(%arg0: i32) -> (i32, i32) {
    %c0_i32 = arith.constant 0 : i32
    %c0_i32_0 = arith.constant 0 : i32
    %c0_i32_1 = arith.constant 0 : i32
    return %c0_i32, %c0_i32_0 : i32, i32
  }
  func.func @transform_29(%arg0: i32) -> (i32, i32) {
    %c0_i32 = arith.constant 0 : i32
    %c0_i32_0 = arith.constant 0 : i32
    %c0_i32_1 = arith.constant 0 : i32
    return %c0_i32, %c0_i32_0 : i32, i32
  }
  func.func @transform_30(%arg0: i32) -> (i32, i32) {
    %c0_i32 = arith.constant 0 : i32
    %c0_i32_0 = arith.constant 0 : i32
    %c0_i32_1 = arith.constant 0 : i32
    return %c0_i32, %c0_i32_0 : i32, i32
  }
  func.func @transform_31(%arg0: i32) -> (i32, i32) {
    %c0_i32 = arith.constant 0 : i32
    %c0_i32_0 = arith.constant 0 : i32
    %c0_i32_1 = arith.constant 0 : i32
    return %c0_i32, %c0_i32_0 : i32, i32
  }
  func.func @transform_32(%arg0: i32) -> (i32, i32) {
    %c0_i32 = arith.constant 0 : i32
    %c0_i32_0 = arith.constant 0 : i32
    %c0_i32_1 = arith.constant 0 : i32
    return %c0_i32, %c0_i32_0 : i32, i32
  }
  func.func @transform_33(%arg0: i32) -> (i32, i32) {
    %c0_i32 = arith.constant 0 : i32
    %c0_i32_0 = arith.constant 0 : i32
    %c0_i32_1 = arith.constant 0 : i32
    return %c0_i32, %c0_i32_0 : i32, i32
  }
  func.func @transform_34(%arg0: i32) -> (i32, i32) {
    %c0_i32 = arith.constant 0 : i32
    %c0_i32_0 = arith.constant 0 : i32
    %c0_i32_1 = arith.constant 0 : i32
    return %c0_i32, %c0_i32_0 : i32, i32
  }
  func.func @transform_35(%arg0: i32) -> (i32, i32) {
    %c0_i32 = arith.constant 0 : i32
    %c0_i32_0 = arith.constant 0 : i32
    %c0_i32_1 = arith.constant 0 : i32
    return %c0_i32, %c0_i32_0 : i32, i32
  }
  func.func @transform_36(%arg0: i32) -> (i32, i32) {
    %c0_i32 = arith.constant 0 : i32
    %c0_i32_0 = arith.constant 0 : i32
    %c0_i32_1 = arith.constant 0 : i32
    return %c0_i32, %c0_i32_0 : i32, i32
  }
  func.func @transform_37(%arg0: i32) -> (i32, i32) {
    %c0_i32 = arith.constant 0 : i32
    %c0_i32_0 = arith.constant 0 : i32
    %c0_i32_1 = arith.constant 0 : i32
    return %c0_i32, %c0_i32_0 : i32, i32
  }
  func.func @transform_38(%arg0: i32) -> (i32, i32) {
    %c0_i32 = arith.constant 0 : i32
    %c0_i32_0 = arith.constant 0 : i32
    %c0_i32_1 = arith.constant 0 : i32
    return %c0_i32, %c0_i32_0 : i32, i32
  }
  func.func @transform_39(%arg0: i32) -> (i32, i32) {
    %c0_i32 = arith.constant 0 : i32
    %c0_i32_0 = arith.constant 0 : i32
    %c0_i32_1 = arith.constant 0 : i32
    return %c0_i32, %c0_i32_0 : i32, i32
  }
  func.func @transform_40(%arg0: i32) -> (i32, i32) {
    %c0_i32 = arith.constant 0 : i32
    %c0_i32_0 = arith.constant 0 : i32
    %c0_i32_1 = arith.constant 0 : i32
    return %c0_i32, %c0_i32_0 : i32, i32
  }
  func.func @transform_41(%arg0: i32) -> (i32, i32) {
    %c0_i32 = arith.constant 0 : i32
    %c0_i32_0 = arith.constant 0 : i32
    %c0_i32_1 = arith.constant 0 : i32
    return %c0_i32, %c0_i32_0 : i32, i32
  }
  func.func @transform_42(%arg0: i32) -> (i32, i32) {
    %c0_i32 = arith.constant 0 : i32
    %c0_i32_0 = arith.constant 0 : i32
    %c0_i32_1 = arith.constant 0 : i32
    return %c0_i32, %c0_i32_0 : i32, i32
  }
  func.func @transform_43(%arg0: i32) -> (i32, i32) {
    %c0_i32 = arith.constant 0 : i32
    %c0_i32_0 = arith.constant 0 : i32
    %c0_i32_1 = arith.constant 0 : i32
    return %c0_i32, %c0_i32_0 : i32, i32
  }
  func.func @transform_44(%arg0: i32) -> (i32, i32) {
    %c0_i32 = arith.constant 0 : i32
    %c0_i32_0 = arith.constant 0 : i32
    %c0_i32_1 = arith.constant 0 : i32
    return %c0_i32, %c0_i32_0 : i32, i32
  }
  func.func @transform_45(%arg0: i32) -> (i32, i32) {
    %c0_i32 = arith.constant 0 : i32
    %c0_i32_0 = arith.constant 0 : i32
    %c0_i32_1 = arith.constant 0 : i32
    return %c0_i32, %c0_i32_0 : i32, i32
  }
  func.func @transform_46(%arg0: i32) -> (i32, i32, i32) {
    %c0_i32 = arith.constant 0 : i32
    %c0_i32_0 = arith.constant 0 : i32
    %c0_i32_1 = arith.constant 0 : i32
    return %arg0, %c0_i32, %c0_i32_0 : i32, i32, i32
  }
}

</mosaic_0001>

<llo_original>
// kernel: tpu_custom_call.1
$region0: #{tpu_custom_call.1}
  #allocation0 [shape = 'u32[]', space=smem, size = 0x4, offset = 0x4, fixed_abs, tag = 'smem constant byte address 0x4 - core index']
  #allocation1 [shape = 'u32[144,128]{1,0:T(1,128)}', space=vmem, size = 0x12000, scoped, tag = 'internal scratch']
  #allocation2 [shape = 'f32[1,1]{1,0:T(1,128)S(1)}', space=vmem, size = 0x200, scoped, tag = 'scoped memory for tpu_custom_call.1']
  %s0 = inlined_call_operand.smem [shape: u32[47], index: -1, kind: input, shape index: {}]
  %s1 = sld [smem:[%s0]]
  %s2 = scalar_lea.smem %s0, 1
  %s3 = sld [smem:[%s2]]
  %s4 = scalar_lea.smem %s0, 2
  %s5 = sld [smem:[%s4]]
  %s6 = scalar_lea.smem %s0, 3
  %s7 = sld [smem:[%s6]]
  %s8 = scalar_lea.smem %s0, 4
  %s9 = sld [smem:[%s8]]
  %s10 = scalar_lea.smem %s0, 5
  %s11 = sld [smem:[%s10]]
  %s12 = scalar_lea.smem %s0, 6
  %s13 = sld [smem:[%s12]]
  %s14 = scalar_lea.smem %s0, 7
  %s15 = sld [smem:[%s14]]
  %s16 = scalar_lea.smem %s0, 8
  %s17 = sld [smem:[%s16]]
  %s18 = scalar_lea.smem %s0, 9
  %s19 = sld [smem:[%s18]]
  %s20 = scalar_lea.smem %s0, 10
  %s21 = sld [smem:[%s20]]
  %s22 = scalar_lea.smem %s0, 11
  %s23 = sld [smem:[%s22]]
  %s24 = scalar_lea.smem %s0, 12
  %s25 = sld [smem:[%s24]]
  %s26 = scalar_lea.smem %s0, 13
  %s27 = sld [smem:[%s26]]
  %s28 = scalar_lea.smem %s0, 14
  %s29 = sld [smem:[%s28]]
  %s30 = scalar_lea.smem %s0, 15
  %s31 = sld [smem:[%s30]]
  %s32 = scalar_lea.smem %s0, 16
  %s33 = sld [smem:[%s32]]
  %s34 = scalar_lea.smem %s0, 17
  %s35 = sld [smem:[%s34]]
  %s36 = scalar_lea.smem %s0, 18
  %s37 = sld [smem:[%s36]]
  %s38 = scalar_lea.smem %s0, 19
  %s39 = sld [smem:[%s38]]
  %s40 = scalar_lea.smem %s0, 20
  %s41 = sld [smem:[%s40]]
  %s42 = scalar_lea.smem %s0, 21
  %s43 = sld [smem:[%s42]]
  %s44 = scalar_lea.smem %s0, 22
  %s45 = sld [smem:[%s44]]
  %s46 = scalar_lea.smem %s0, 23
  %s47 = sld [smem:[%s46]]
  %s48 = scalar_lea.smem %s0, 24
  %s49 = sld [smem:[%s48]]
  %s50 = scalar_lea.smem %s0, 25
  %s51 = sld [smem:[%s50]]
  %s52 = scalar_lea.smem %s0, 26
  %s53 = sld [smem:[%s52]]
  %s54 = scalar_lea.smem %s0, 27
  %s55 = sld [smem:[%s54]]
  %s56 = scalar_lea.smem %s0, 28
  %s57 = sld [smem:[%s56]]
  %s58 = scalar_lea.smem %s0, 29
  %s59 = sld [smem:[%s58]]
  %s60 = scalar_lea.smem %s0, 30
  %s61 = sld [smem:[%s60]]
  %s62 = scalar_lea.smem %s0, 31
  %s63 = sld [smem:[%s62]]
  %s64 = scalar_lea.smem %s0, 32
  %s65 = sld [smem:[%s64]]
  %s66 = scalar_lea.smem %s0, 33
  %s67 = sld [smem:[%s66]]
  %s68 = scalar_lea.smem %s0, 34
  %s69 = sld [smem:[%s68]]
  %s70 = scalar_lea.smem %s0, 35
  %s71 = sld [smem:[%s70]]
  %s72 = scalar_lea.smem %s0, 36
  %s73 = sld [smem:[%s72]]
  %s74 = scalar_lea.smem %s0, 37
  %s75 = sld [smem:[%s74]]
  %s76 = scalar_lea.smem %s0, 38
  %s77 = sld [smem:[%s76]]
  %s78 = scalar_lea.smem %s0, 39
  %s79 = sld [smem:[%s78]]
  %s80 = scalar_lea.smem %s0, 40
  %s81 = sld [smem:[%s80]]
  %s82 = scalar_lea.smem %s0, 41
  %s83 = sld [smem:[%s82]]
  %s84 = scalar_lea.smem %s0, 42
  %s85 = sld [smem:[%s84]]
  %s86 = scalar_lea.smem %s0, 43
  %s87 = sld [smem:[%s86]]
  %s88 = scalar_lea.smem %s0, 44
  %s89 = sld [smem:[%s88]]
  %s90 = scalar_lea.smem %s0, 45
  %s91 = sld [smem:[%s90]]
  %s92 = scalar_lea.smem %s0, 46
  %s93 = sld [smem:[%s92]]
  %s94 = sld [smem:[#allocation0]]
  $region281: #{tpu_custom_call.1} parent=0
    _
  %s96 = ssub.s32 1, %s94
  %s97 = scalar_select 0, %s96, %s94
  %v98 = vstv %s91
  %99 = vst [vmem:[#allocation2] sm:$0x1] %v98
  $region1: #{tpu_custom_call.1} parent=0
    #allocation3 [shape = 'u8[4096]{0}', space=vmem, size = 0x1000, scoped, tag = 'input window, operand 4, single buffered']
    #allocation4 [shape = 's32[2]{0}', space=sflag, size = 0x8, scoped, tag = 'scoped memory for tpu_custom_call.1']
    #allocation5 [shape = 'u8[512]{0}', space=vmem, size = 0x400, scoped, tag = 'input window, operand 5, single buffered']
    #allocation6 [shape = 's32[1]{0}', space=sflag, size = 0x4, scoped, tag = 'scoped memory for tpu_custom_call.1']
    #allocation7 [shape = 'u8[512]{0}', space=vmem, size = 0x400, scoped, tag = 'input window, operand 7, single buffered']
    #allocation8 [shape = 'u8[512]{0}', space=vmem, size = 0x400, scoped, tag = 'input window, operand 9, single buffered']
    #allocation9 [shape = 's32[1]{0}', space=sflag, size = 0x4, scoped, tag = 'scoped memory for tpu_custom_call.1']
    #allocation10 [shape = 'u8[512]{0}', space=vmem, size = 0x400, scoped, tag = 'input window, operand 11, single buffered']
    #allocation11 [shape = 'u8[512]{0}', space=vmem, size = 0x400, scoped, tag = 'input window, operand 13, single buffered']
    #allocation12 [shape = 's32[1]{0}', space=sflag, size = 0x4, scoped, tag = 'scoped memory for tpu_custom_call.1']
    #allocation13 [shape = 'u8[512]{0}', space=vmem, size = 0x400, scoped, tag = 'input window, operand 15, single buffered']
    #allocation14 [shape = 'u8[4096]{0}', space=vmem, size = 0x1000, scoped, tag = 'input window, operand 16, single buffered']
    #allocation15 [shape = 's32[1]{0}', space=sflag, size = 0x4, scoped, tag = 'scoped memory for tpu_custom_call.1']
    #allocation16 [shape = 'u8[512]{0}', space=vmem, size = 0x400, scoped, tag = 'input window, operand 17, single buffered']
    #allocation17 [shape = 'u8[512]{0}', space=vmem, size = 0x400, scoped, tag = 'input window, operand 19, single buffered']
    #allocation18 [shape = 's32[1]{0}', space=sflag, size = 0x4, scoped, tag = 'scoped memory for tpu_custom_call.1']
    #allocation19 [shape = 'u8[512]{0}', space=vmem, size = 0x400, scoped, tag = 'input window, operand 21, single buffered']
    #allocation20 [shape = 'u8[512]{0}', space=vmem, size = 0x400, scoped, tag = 'input window, operand 23, single buffered']
    #allocation21 [shape = 's32[1]{0}', space=sflag, size = 0x4, scoped, tag = 'scoped memory for tpu_custom_call.1']
    #allocation22 [shape = 'u8[512]{0}', space=vmem, size = 0x400, scoped, tag = 'input window, operand 25, single buffered']
    #allocation23 [shape = 'u8[512]{0}', space=vmem, size = 0x400, scoped, tag = 'input window, operand 27, single buffered']
    #allocation24 [shape = 's32[1]{0}', space=sflag, size = 0x4, scoped, tag = 'scoped memory for tpu_custom_call.1']
    #allocation25 [shape = 'u8[512]{0}', space=vmem, size = 0x400, scoped, tag = 'input window, operand 29, single buffered']
    #allocation26 [shape = 'u8[512]{0}', space=vmem, size = 0x400, scoped, tag = 'input window, operand 31, single buffered']
    #allocation27 [shape = 's32[1]{0}', space=sflag, size = 0x4, scoped, tag = 'scoped memory for tpu_custom_call.1']
    %100 = vsyncpa [#allocation4], 0
    %101 = vsyncpa [#allocation6], 0
    %102 = vsyncpa [#allocation9], 0
    %103 = vsyncpa [#allocation12], 0
    %104 = vsyncpa [#allocation15], 0
    %105 = vsyncpa [#allocation18], 0
    %106 = vsyncpa [#allocation21], 0
    %107 = vsyncpa [#allocation24], 0
    %108 = vsyncpa [#allocation27], 0
    loop: start=0, step=1, limit=4
    $region2: #{tpu_custom_call.1} parent=1 // loop_pre_header
      _
    $region3: #{tpu_custom_call.1} parent=1 // loop_header
      %s110 = sphi 0, %s114
      %p111 = scmp.ge.s32.totalorder %s110, 4
      %s120 = sphi 0, %s122
      %s123 = sphi 0, %s120
      %s124 = sphi 0, %s123
      %s140 = sphi 0, %s124
      %s146 = sphi 0, %s148
      %s149 = sphi 0, %s146
      %s150 = sphi 0, %s149
      %s166 = sphi 0, %s150
      %s172 = sphi 0, %s174
      %s175 = sphi 0, %s172
      %s176 = sphi 0, %s175
      %s192 = sphi 0, %s176
      %s198 = sphi 0, %s200
      %s201 = sphi 0, %s198
      %s202 = sphi 0, %s201
      %s218 = sphi 0, %s202
      %s222 = sphi 0, %s222
      %s224 = sphi 0, %s222
      %s225 = sphi 0, %s224
      %s239 = sphi 0, %s225
      %s243 = sphi 0, %s243
      %s245 = sphi 0, %s243
      %s246 = sphi 0, %s245
      %s260 = sphi 0, %s246
      %s264 = sphi 0, %s264
      %s266 = sphi 0, %s264
      %s267 = sphi 0, %s266
      %s281 = sphi 0, %s267
      %s285 = sphi 0, %s285
      %s287 = sphi 0, %s285
      %s288 = sphi 0, %s287
      %s302 = sphi 0, %s288
      %s306 = sphi 0, %s306
      %s308 = sphi 0, %s306
      %s309 = sphi 0, %s308
      %s323 = sphi 0, %s309
      %s327 = sphi 0, %s327
      %s329 = sphi 0, %s327
      %s330 = sphi 0, %s329
      %s344 = sphi 0, %s330
      %s348 = sphi 0, %s348
      %s350 = sphi 0, %s348
      %s351 = sphi 0, %s350
      %s365 = sphi 0, %s351
      %s369 = sphi 0, %s369
      %s371 = sphi 0, %s369
      %s372 = sphi 0, %s371
      %s386 = sphi 0, %s372
      %s390 = sphi 0, %s390
      %s392 = sphi 0, %s390
      %s393 = sphi 0, %s392
      %s407 = sphi 0, %s393
      %s411 = sphi 0, %s411
      %s413 = sphi 0, %s411
      %s414 = sphi 0, %s413
      %s428 = sphi 0, %s414
      %s432 = sphi 0, %s432
      %s434 = sphi 0, %s432
      %s435 = sphi 0, %s434
      %s449 = sphi 0, %s435
      %s453 = sphi 0, %s453
      %s455 = sphi 0, %s453
      %s456 = sphi 0, %s455
      %s470 = sphi 0, %s456
      %s474 = sphi 0, %s474
      %s476 = sphi 0, %s474
      %s477 = sphi 0, %s476
      %s491 = sphi 0, %s477
      %s495 = sphi 0, %s495
      %s497 = sphi 0, %s495
      %s498 = sphi 0, %s497
      %s512 = sphi 0, %s498
      %s516 = sphi 0, %s516
      %s518 = sphi 0, %s516
      %s519 = sphi 0, %s518
      %s533 = sphi 0, %s519
      %s537 = sphi 0, %s537
      %s539 = sphi 0, %s537
      %s540 = sphi 0, %s539
      %s554 = sphi 0, %s540
      %s558 = sphi 0, %s558
      %s560 = sphi 0, %s558
      %s561 = sphi 0, %s560
      %s575 = sphi 0, %s561
      %s579 = sphi 0, %s579
      %s581 = sphi 0, %s579
      %s582 = sphi 0, %s581
      %s596 = sphi 0, %s582
      %s600 = sphi 0, %s600
      %s602 = sphi 0, %s600
      %s603 = sphi 0, %s602
      %s617 = sphi 0, %s603
      %s621 = sphi 0, %s621
      %s623 = sphi 0, %s621
      %s624 = sphi 0, %s623
      %s638 = sphi 0, %s624
      %s642 = sphi 0, %s642
      %s644 = sphi 0, %s642
      %s645 = sphi 0, %s644
      %s659 = sphi 0, %s645
      %s663 = sphi 0, %s663
      %s665 = sphi 0, %s663
      %s666 = sphi 0, %s665
      %s680 = sphi 0, %s666
      %s684 = sphi 0, %s684
      %s686 = sphi 0, %s684
      %s687 = sphi 0, %s686
      %s701 = sphi 0, %s687
      %s705 = sphi 0, %s705
      %s707 = sphi 0, %s705
      %s708 = sphi 0, %s707
      %s722 = sphi 0, %s708
      %s726 = sphi 0, %s726
      %s728 = sphi 0, %s726
      %s729 = sphi 0, %s728
      %s743 = sphi 0, %s729
      %s747 = sphi 0, %s747
      %s749 = sphi 0, %s747
      %s750 = sphi 0, %s749
      %s764 = sphi 0, %s750
      %s768 = sphi 0, %s768
      %s770 = sphi 0, %s768
      %s771 = sphi 0, %s770
      %s785 = sphi 0, %s771
      %s789 = sphi 0, %s789
      %s791 = sphi 0, %s789
      %s792 = sphi 0, %s791
      %s806 = sphi 0, %s792
      %s810 = sphi 0, %s810
      %s812 = sphi 0, %s810
      %s813 = sphi 0, %s812
      %s827 = sphi 0, %s813
      %s831 = sphi 0, %s831
      %s833 = sphi 0, %s831
      %s834 = sphi 0, %s833
      %s848 = sphi 0, %s834
      %s852 = sphi 0, %s852
      %s854 = sphi 0, %s852
      %s855 = sphi 0, %s854
      %s869 = sphi 0, %s855
      %s873 = sphi 0, %s873
      %s875 = sphi 0, %s873
      %s876 = sphi 0, %s875
      %s890 = sphi 0, %s876
      %s894 = sphi 0, %s894
      %s896 = sphi 0, %s894
      %s897 = sphi 0, %s896
      %s911 = sphi 0, %s897
      %s915 = sphi 0, %s915
      %s917 = sphi 0, %s915
      %s918 = sphi 0, %s917
      %s932 = sphi 0, %s918
      %s936 = sphi 0, %s936
      %s938 = sphi 0, %s936
      %s939 = sphi 0, %s938
      %s953 = sphi 0, %s939
      %s957 = sphi 0, %s957
      %s959 = sphi 0, %s957
      %s960 = sphi 0, %s959
      %s974 = sphi 0, %s960
      %s978 = sphi 0, %s978
      %s980 = sphi 0, %s978
      %s981 = sphi 0, %s980
      %s995 = sphi 0, %s981
      %s999 = sphi 0, %s999
      %s1001 = sphi 0, %s999
      %s1002 = sphi 0, %s1001
      %s1016 = sphi 0, %s1002
      %s1020 = sphi 0, %s1020
      %s1022 = sphi 0, %s1020
      %s1023 = sphi 0, %s1022
      %s1037 = sphi 0, %s1023
      %s1041 = sphi 0, %s1041
      %s1043 = sphi 0, %s1041
      %s1044 = sphi 0, %s1043
      %s1058 = sphi 0, %s1044
      %s1062 = sphi 0, %s1062
      %s1064 = sphi 0, %s1062
      %s1065 = sphi 0, %s1064
      %s1079 = sphi 0, %s1065
      %s1083 = sphi 0, %s1083
      %s1085 = sphi 0, %s1083
      %s1086 = sphi 0, %s1085
      %s1100 = sphi 0, %s1086
      %s1106 = sphi 0, %s1108
      %s1109 = sphi 0, %s1106
      %s1110 = sphi 0, %s1109
      %s1126 = sphi 0, %s1110
    $region4: #{tpu_custom_call.1} parent=1 // loop_header_branch
      %113 = sbr.rel (%p111) target = $region8
    $region5: #{tpu_custom_call.1} parent=1 // loop_body
      %s115 = ssub.s32 %s110, 1
      %s116 = ssub.s32 %s110, 2
      %s117 = sadd.s32 %s110, 1
      %s118 = ssub.s32 %s110, %s117
      %p119 = scmp.eq.s32.totalorder %s118, 0
      %s121 = sadd.s32 %s120, 1
      %s122 = scalar_select %p119, %s120, %s121
      %p125 = pneg %p119
      %p126 = scmp.eq.s32.totalorder %s110, 1
      %p127 = por %p125, %p126
      %p128 = scmp.ne.s32.totalorder %s120, %s123
      %p129 = scmp.eq.s32.totalorder %s110, 0
      %p130 = por %p128, %p129
      %p131 = scmp.ne.s32.totalorder %s120, %s123
      %p132 = scmp.eq.s32.totalorder %s115, 1
      %p133 = por %p131, %p132
      %p134 = scmp.ne.s32.totalorder %s123, %s124
      %p135 = scmp.eq.s32.totalorder %s115, 0
      %p136 = por %p134, %p135
      %p137 = scmp.ne.s32.totalorder %s123, %s124
      %p138 = scmp.eq.s32.totalorder %s116, 1
      %p139 = por %p137, %p138
      %p141 = scmp.ne.s32.totalorder %s124, %s140
      %p142 = scmp.eq.s32.totalorder %s116, 0
      %p143 = por %p141, %p142
      %s144 = ssub.s32 %s110, %s117
      %p145 = scmp.eq.s32.totalorder %s144, 0
      %s147 = sadd.s32 %s146, 1
      %s148 = scalar_select %p145, %s146, %s147
      %p151 = pneg %p145
      %p152 = scmp.eq.s32.totalorder %s110, 1
      %p153 = por %p151, %p152
      %p154 = scmp.ne.s32.totalorder %s146, %s149
      %p155 = scmp.eq.s32.totalorder %s110, 0
      %p156 = por %p154, %p155
      %p157 = scmp.ne.s32.totalorder %s146, %s149
      %p158 = scmp.eq.s32.totalorder %s115, 1
      %p159 = por %p157, %p158
      %p160 = scmp.ne.s32.totalorder %s149, %s150
      %p161 = scmp.eq.s32.totalorder %s115, 0
      %p162 = por %p160, %p161
      %p163 = scmp.ne.s32.totalorder %s149, %s150
      %p164 = scmp.eq.s32.totalorder %s116, 1
      %p165 = por %p163, %p164
      %p167 = scmp.ne.s32.totalorder %s150, %s166
      %p168 = scmp.eq.s32.totalorder %s116, 0
      %p169 = por %p167, %p168
      %s170 = ssub.s32 %s110, %s117
      %p171 = scmp.eq.s32.totalorder %s170, 0
      %s173 = sadd.s32 %s172, 1
      %s174 = scalar_select %p171, %s172, %s173
      %p177 = pneg %p171
      %p178 = scmp.eq.s32.totalorder %s110, 1
      %p179 = por %p177, %p178
      %p180 = scmp.ne.s32.totalorder %s172, %s175
      %p181 = scmp.eq.s32.totalorder %s110, 0
      %p182 = por %p180, %p181
      %p183 = scmp.ne.s32.totalorder %s172, %s175
      %p184 = scmp.eq.s32.totalorder %s115, 1
      %p185 = por %p183, %p184
      %p186 = scmp.ne.s32.totalorder %s175, %s176
      %p187 = scmp.eq.s32.totalorder %s115, 0
      %p188 = por %p186, %p187
      %p189 = scmp.ne.s32.totalorder %s175, %s176
      %p190 = scmp.eq.s32.totalorder %s116, 1
      %p191 = por %p189, %p190
      %p193 = scmp.ne.s32.totalorder %s176, %s192
      %p194 = scmp.eq.s32.totalorder %s116, 0
      %p195 = por %p193, %p194
      %s196 = ssub.s32 %s110, %s117
      %p197 = scmp.eq.s32.totalorder %s196, 0
      %s199 = sadd.s32 %s198, 1
      %s200 = scalar_select %p197, %s198, %s199
      %p203 = pneg %p197
      %p204 = scmp.eq.s32.totalorder %s110, 1
      %p205 = por %p203, %p204
      %p206 = scmp.ne.s32.totalorder %s198, %s201
      %p207 = scmp.eq.s32.totalorder %s110, 0
      %p208 = por %p206, %p207
      %p209 = scmp.ne.s32.totalorder %s198, %s201
      %p210 = scmp.eq.s32.totalorder %s115, 1
      %p211 = por %p209, %p210
      %p212 = scmp.ne.s32.totalorder %s201, %s202
      %p213 = scmp.eq.s32.totalorder %s115, 0
      %p214 = por %p212, %p213
      %p215 = scmp.ne.s32.totalorder %s201, %s202
      %p216 = scmp.eq.s32.totalorder %s116, 1
      %p217 = por %p215, %p216
      %p219 = scmp.ne.s32.totalorder %s202, %s218
      %p220 = scmp.eq.s32.totalorder %s116, 0
      %p221 = por %p219, %p220
      %s223 = sadd.s32 %s222, 1
      %p226 = scmp.eq.s32.totalorder %s110, 1
      %p227 = scmp.ne.s32.totalorder %s222, %s224
      %p228 = scmp.eq.s32.totalorder %s110, 0
      %p229 = por %p227, %p228
      %p230 = scmp.ne.s32.totalorder %s222, %s224
      %p231 = scmp.eq.s32.totalorder %s115, 1
      %p232 = por %p230, %p231
      %p233 = scmp.ne.s32.totalorder %s224, %s225
      %p234 = scmp.eq.s32.totalorder %s115, 0
      %p235 = por %p233, %p234
      %p236 = scmp.ne.s32.totalorder %s224, %s225
      %p237 = scmp.eq.s32.totalorder %s116, 1
      %p238 = por %p236, %p237
      %p240 = scmp.ne.s32.totalorder %s225, %s239
      %p241 = scmp.eq.s32.totalorder %s116, 0
      %p242 = por %p240, %p241
      %s244 = sadd.s32 %s243, 1
      %p247 = scmp.eq.s32.totalorder %s110, 1
      %p248 = scmp.ne.s32.totalorder %s243, %s245
      %p249 = scmp.eq.s32.totalorder %s110, 0
      %p250 = por %p248, %p249
      %p251 = scmp.ne.s32.totalorder %s243, %s245
      %p252 = scmp.eq.s32.totalorder %s115, 1
      %p253 = por %p251, %p252
      %p254 = scmp.ne.s32.totalorder %s245, %s246
      %p255 = scmp.eq.s32.totalorder %s115, 0
      %p256 = por %p254, %p255
      %p257 = scmp.ne.s32.totalorder %s245, %s246
      %p258 = scmp.eq.s32.totalorder %s116, 1
      %p259 = por %p257, %p258
      %p261 = scmp.ne.s32.totalorder %s246, %s260
      %p262 = scmp.eq.s32.totalorder %s116, 0
      %p263 = por %p261, %p262
      %s265 = sadd.s32 %s264, 1
      %p268 = scmp.eq.s32.totalorder %s110, 1
      %p269 = scmp.ne.s32.totalorder %s264, %s266
      %p270 = scmp.eq.s32.totalorder %s110, 0
      %p271 = por %p269, %p270
      %p272 = scmp.ne.s32.totalorder %s264, %s266
      %p273 = scmp.eq.s32.totalorder %s115, 1
      %p274 = por %p272, %p273
      %p275 = scmp.ne.s32.totalorder %s266, %s267
      %p276 = scmp.eq.s32.totalorder %s115, 0
      %p277 = por %p275, %p276
      %p278 = scmp.ne.s32.totalorder %s266, %s267
      %p279 = scmp.eq.s32.totalorder %s116, 1
      %p280 = por %p278, %p279
      %p282 = scmp.ne.s32.totalorder %s267, %s281
      %p283 = scmp.eq.s32.totalorder %s116, 0
      %p284 = por %p282, %p283
      %s286 = sadd.s32 %s285, 1
      %p289 = scmp.eq.s32.totalorder %s110, 1
      %p290 = scmp.ne.s32.totalorder %s285, %s287
      %p291 = scmp.eq.s32.totalorder %s110, 0
      %p292 = por %p290, %p291
      %p293 = scmp.ne.s32.totalorder %s285, %s287
      %p294 = scmp.eq.s32.totalorder %s115, 1
      %p295 = por %p293, %p294
      %p296 = scmp.ne.s32.totalorder %s287, %s288
      %p297 = scmp.eq.s32.totalorder %s115, 0
      %p298 = por %p296, %p297
      %p299 = scmp.ne.s32.totalorder %s287, %s288
      %p300 = scmp.eq.s32.totalorder %s116, 1
      %p301 = por %p299, %p300
      %p303 = scmp.ne.s32.totalorder %s288, %s302
      %p304 = scmp.eq.s32.totalorder %s116, 0
      %p305 = por %p303, %p304
      %s307 = sadd.s32 %s306, 1
      %p310 = scmp.eq.s32.totalorder %s110, 1
      %p311 = scmp.ne.s32.totalorder %s306, %s308
      %p312 = scmp.eq.s32.totalorder %s110, 0
      %p313 = por %p311, %p312
      %p314 = scmp.ne.s32.totalorder %s306, %s308
      %p315 = scmp.eq.s32.totalorder %s115, 1
      %p316 = por %p314, %p315
      %p317 = scmp.ne.s32.totalorder %s308, %s309
      %p318 = scmp.eq.s32.totalorder %s115, 0
      %p319 = por %p317, %p318
      %p320 = scmp.ne.s32.totalorder %s308, %s309
      %p321 = scmp.eq.s32.totalorder %s116, 1
      %p322 = por %p320, %p321
      %p324 = scmp.ne.s32.totalorder %s309, %s323
      %p325 = scmp.eq.s32.totalorder %s116, 0
      %p326 = por %p324, %p325
      %s328 = sadd.s32 %s327, 1
      %p331 = scmp.eq.s32.totalorder %s110, 1
      %p332 = scmp.ne.s32.totalorder %s327, %s329
      %p333 = scmp.eq.s32.totalorder %s110, 0
      %p334 = por %p332, %p333
      %p335 = scmp.ne.s32.totalorder %s327, %s329
      %p336 = scmp.eq.s32.totalorder %s115, 1
      %p337 = por %p335, %p336
      %p338 = scmp.ne.s32.totalorder %s329, %s330
      %p339 = scmp.eq.s32.totalorder %s115, 0
      %p340 = por %p338, %p339
      %p341 = scmp.ne.s32.totalorder %s329, %s330
      %p342 = scmp.eq.s32.totalorder %s116, 1
      %p343 = por %p341, %p342
      %p345 = scmp.ne.s32.totalorder %s330, %s344
      %p346 = scmp.eq.s32.totalorder %s116, 0
      %p347 = por %p345, %p346
      %s349 = sadd.s32 %s348, 1
      %p352 = scmp.eq.s32.totalorder %s110, 1
      %p353 = scmp.ne.s32.totalorder %s348, %s350
      %p354 = scmp.eq.s32.totalorder %s110, 0
      %p355 = por %p353, %p354
      %p356 = scmp.ne.s32.totalorder %s348, %s350
      %p357 = scmp.eq.s32.totalorder %s115, 1
      %p358 = por %p356, %p357
      %p359 = scmp.ne.s32.totalorder %s350, %s351
      %p360 = scmp.eq.s32.totalorder %s115, 0
      %p361 = por %p359, %p360
      %p362 = scmp.ne.s32.totalorder %s350, %s351
      %p363 = scmp.eq.s32.totalorder %s116, 1
      %p364 = por %p362, %p363
      %p366 = scmp.ne.s32.totalorder %s351, %s365
      %p367 = scmp.eq.s32.totalorder %s116, 0
      %p368 = por %p366, %p367
      %s370 = sadd.s32 %s369, 1
      %p373 = scmp.eq.s32.totalorder %s110, 1
      %p374 = scmp.ne.s32.totalorder %s369, %s371
      %p375 = scmp.eq.s32.totalorder %s110, 0
      %p376 = por %p374, %p375
      %p377 = scmp.ne.s32.totalorder %s369, %s371
      %p378 = scmp.eq.s32.totalorder %s115, 1
      %p379 = por %p377, %p378
      %p380 = scmp.ne.s32.totalorder %s371, %s372
      %p381 = scmp.eq.s32.totalorder %s115, 0
      %p382 = por %p380, %p381
      %p383 = scmp.ne.s32.totalorder %s371, %s372
      %p384 = scmp.eq.s32.totalorder %s116, 1
      %p385 = por %p383, %p384
      %p387 = scmp.ne.s32.totalorder %s372, %s386
      %p388 = scmp.eq.s32.totalorder %s116, 0
      %p389 = por %p387, %p388
      %s391 = sadd.s32 %s390, 1
      %p394 = scmp.eq.s32.totalorder %s110, 1
      %p395 = scmp.ne.s32.totalorder %s390, %s392
      %p396 = scmp.eq.s32.totalorder %s110, 0
      %p397 = por %p395, %p396
      %p398 = scmp.ne.s32.totalorder %s390, %s392
      %p399 = scmp.eq.s32.totalorder %s115, 1
      %p400 = por %p398, %p399
      %p401 = scmp.ne.s32.totalorder %s392, %s393
      %p402 = scmp.eq.s32.totalorder %s115, 0
      %p403 = por %p401, %p402
      %p404 = scmp.ne.s32.totalorder %s392, %s393
      %p405 = scmp.eq.s32.totalorder %s116, 1
      %p406 = por %p404, %p405
      %p408 = scmp.ne.s32.totalorder %s393, %s407
      %p409 = scmp.eq.s32.totalorder %s116, 0
      %p410 = por %p408, %p409
      %s412 = sadd.s32 %s411, 1
      %p415 = scmp.eq.s32.totalorder %s110, 1
      %p416 = scmp.ne.s32.totalorder %s411, %s413
      %p417 = scmp.eq.s32.totalorder %s110, 0
      %p418 = por %p416, %p417
      %p419 = scmp.ne.s32.totalorder %s411, %s413
      %p420 = scmp.eq.s32.totalorder %s115, 1
      %p421 = por %p419, %p420
      %p422 = scmp.ne.s32.totalorder %s413, %s414
      %p423 = scmp.eq.s32.totalorder %s115, 0
      %p424 = por %p422, %p423
      %p425 = scmp.ne.s32.totalorder %s413, %s414
      %p426 = scmp.eq.s32.totalorder %s116, 1
      %p427 = por %p425, %p426
      %p429 = scmp.ne.s32.totalorder %s414, %s428
      %p430 = scmp.eq.s32.totalorder %s116, 0
      %p431 = por %p429, %p430
      %s433 = sadd.s32 %s432, 1
      %p436 = scmp.eq.s32.totalorder %s110, 1
      %p437 = scmp.ne.s32.totalorder %s432, %s434
      %p438 = scmp.eq.s32.totalorder %s110, 0
      %p439 = por %p437, %p438
      %p440 = scmp.ne.s32.totalorder %s432, %s434
      %p441 = scmp.eq.s32.totalorder %s115, 1
      %p442 = por %p440, %p441
      %p443 = scmp.ne.s32.totalorder %s434, %s435
      %p444 = scmp.eq.s32.totalorder %s115, 0
      %p445 = por %p443, %p444
      %p446 = scmp.ne.s32.totalorder %s434, %s435
      %p447 = scmp.eq.s32.totalorder %s116, 1
      %p448 = por %p446, %p447
      %p450 = scmp.ne.s32.totalorder %s435, %s449
      %p451 = scmp.eq.s32.totalorder %s116, 0
      %p452 = por %p450, %p451
      %s454 = sadd.s32 %s453, 1
      %p457 = scmp.eq.s32.totalorder %s110, 1
      %p458 = scmp.ne.s32.totalorder %s453, %s455
      %p459 = scmp.eq.s32.totalorder %s110, 0
      %p460 = por %p458, %p459
      %p461 = scmp.ne.s32.totalorder %s453, %s455
      %p462 = scmp.eq.s32.totalorder %s115, 1
      %p463 = por %p461, %p462
      %p464 = scmp.ne.s32.totalorder %s455, %s456
      %p465 = scmp.eq.s32.totalorder %s115, 0
      %p466 = por %p464, %p465
      %p467 = scmp.ne.s32.totalorder %s455, %s456
      %p468 = scmp.eq.s32.totalorder %s116, 1
      %p469 = por %p467, %p468
      %p471 = scmp.ne.s32.totalorder %s456, %s470
      %p472 = scmp.eq.s32.totalorder %s116, 0
      %p473 = por %p471, %p472
      %s475 = sadd.s32 %s474, 1
      %p478 = scmp.eq.s32.totalorder %s110, 1
      %p479 = scmp.ne.s32.totalorder %s474, %s476
      %p480 = scmp.eq.s32.totalorder %s110, 0
      %p481 = por %p479, %p480
      %p482 = scmp.ne.s32.totalorder %s474, %s476
      %p483 = scmp.eq.s32.totalorder %s115, 1
      %p484 = por %p482, %p483
      %p485 = scmp.ne.s32.totalorder %s476, %s477
      %p486 = scmp.eq.s32.totalorder %s115, 0
      %p487 = por %p485, %p486
      %p488 = scmp.ne.s32.totalorder %s476, %s477
      %p489 = scmp.eq.s32.totalorder %s116, 1
      %p490 = por %p488, %p489
      %p492 = scmp.ne.s32.totalorder %s477, %s491
      %p493 = scmp.eq.s32.totalorder %s116, 0
      %p494 = por %p492, %p493
      %s496 = sadd.s32 %s495, 1
      %p499 = scmp.eq.s32.totalorder %s110, 1
      %p500 = scmp.ne.s32.totalorder %s495, %s497
      %p501 = scmp.eq.s32.totalorder %s110, 0
      %p502 = por %p500, %p501
      %p503 = scmp.ne.s32.totalorder %s495, %s497
      %p504 = scmp.eq.s32.totalorder %s115, 1
      %p505 = por %p503, %p504
      %p506 = scmp.ne.s32.totalorder %s497, %s498
      %p507 = scmp.eq.s32.totalorder %s115, 0
      %p508 = por %p506, %p507
      %p509 = scmp.ne.s32.totalorder %s497, %s498
      %p510 = scmp.eq.s32.totalorder %s116, 1
      %p511 = por %p509, %p510
      %p513 = scmp.ne.s32.totalorder %s498, %s512
      %p514 = scmp.eq.s32.totalorder %s116, 0
      %p515 = por %p513, %p514
      %s517 = sadd.s32 %s516, 1
      %p520 = scmp.eq.s32.totalorder %s110, 1
      %p521 = scmp.ne.s32.totalorder %s516, %s518
      %p522 = scmp.eq.s32.totalorder %s110, 0
      %p523 = por %p521, %p522
      %p524 = scmp.ne.s32.totalorder %s516, %s518
      %p525 = scmp.eq.s32.totalorder %s115, 1
      %p526 = por %p524, %p525
      %p527 = scmp.ne.s32.totalorder %s518, %s519
      %p528 = scmp.eq.s32.totalorder %s115, 0
      %p529 = por %p527, %p528
      %p530 = scmp.ne.s32.totalorder %s518, %s519
      %p531 = scmp.eq.s32.totalorder %s116, 1
      %p532 = por %p530, %p531
      %p534 = scmp.ne.s32.totalorder %s519, %s533
      %p535 = scmp.eq.s32.totalorder %s116, 0
      %p536 = por %p534, %p535
      %s538 = sadd.s32 %s537, 1
      %p541 = scmp.eq.s32.totalorder %s110, 1
      %p542 = scmp.ne.s32.totalorder %s537, %s539
      %p543 = scmp.eq.s32.totalorder %s110, 0
      %p544 = por %p542, %p543
      %p545 = scmp.ne.s32.totalorder %s537, %s539
      %p546 = scmp.eq.s32.totalorder %s115, 1
      %p547 = por %p545, %p546
      %p548 = scmp.ne.s32.totalorder %s539, %s540
      %p549 = scmp.eq.s32.totalorder %s115, 0
      %p550 = por %p548, %p549
      %p551 = scmp.ne.s32.totalorder %s539, %s540
      %p552 = scmp.eq.s32.totalorder %s116, 1
      %p553 = por %p551, %p552
      %p555 = scmp.ne.s32.totalorder %s540, %s554
      %p556 = scmp.eq.s32.totalorder %s116, 0
      %p557 = por %p555, %p556
      %s559 = sadd.s32 %s558, 1
      %p562 = scmp.eq.s32.totalorder %s110, 1
      %p563 = scmp.ne.s32.totalorder %s558, %s560
      %p564 = scmp.eq.s32.totalorder %s110, 0
      %p565 = por %p563, %p564
      %p566 = scmp.ne.s32.totalorder %s558, %s560
      %p567 = scmp.eq.s32.totalorder %s115, 1
      %p568 = por %p566, %p567
      %p569 = scmp.ne.s32.totalorder %s560, %s561
      %p570 = scmp.eq.s32.totalorder %s115, 0
      %p571 = por %p569, %p570
      %p572 = scmp.ne.s32.totalorder %s560, %s561
      %p573 = scmp.eq.s32.totalorder %s116, 1
      %p574 = por %p572, %p573
      %p576 = scmp.ne.s32.totalorder %s561, %s575
      %p577 = scmp.eq.s32.totalorder %s116, 0
      %p578 = por %p576, %p577
      %s580 = sadd.s32 %s579, 1
      %p583 = scmp.eq.s32.totalorder %s110, 1
      %p584 = scmp.ne.s32.totalorder %s579, %s581
      %p585 = scmp.eq.s32.totalorder %s110, 0
      %p586 = por %p584, %p585
      %p587 = scmp.ne.s32.totalorder %s579, %s581
      %p588 = scmp.eq.s32.totalorder %s115, 1
      %p589 = por %p587, %p588
      %p590 = scmp.ne.s32.totalorder %s581, %s582
      %p591 = scmp.eq.s32.totalorder %s115, 0
      %p592 = por %p590, %p591
      %p593 = scmp.ne.s32.totalorder %s581, %s582
      %p594 = scmp.eq.s32.totalorder %s116, 1
      %p595 = por %p593, %p594
      %p597 = scmp.ne.s32.totalorder %s582, %s596
      %p598 = scmp.eq.s32.totalorder %s116, 0
      %p599 = por %p597, %p598
      %s601 = sadd.s32 %s600, 1
      %p604 = scmp.eq.s32.totalorder %s110, 1
      %p605 = scmp.ne.s32.totalorder %s600, %s602
      %p606 = scmp.eq.s32.totalorder %s110, 0
      %p607 = por %p605, %p606
      %p608 = scmp.ne.s32.totalorder %s600, %s602
      %p609 = scmp.eq.s32.totalorder %s115, 1
      %p610 = por %p608, %p609
      %p611 = scmp.ne.s32.totalorder %s602, %s603
      %p612 = scmp.eq.s32.totalorder %s115, 0
      %p613 = por %p611, %p612
      %p614 = scmp.ne.s32.totalorder %s602, %s603
      %p615 = scmp.eq.s32.totalorder %s116, 1
      %p616 = por %p614, %p615
      %p618 = scmp.ne.s32.totalorder %s603, %s617
      %p619 = scmp.eq.s32.totalorder %s116, 0
      %p620 = por %p618, %p619
      %s622 = sadd.s32 %s621, 1
      %p625 = scmp.eq.s32.totalorder %s110, 1
      %p626 = scmp.ne.s32.totalorder %s621, %s623
      %p627 = scmp.eq.s32.totalorder %s110, 0
      %p628 = por %p626, %p627
      %p629 = scmp.ne.s32.totalorder %s621, %s623
      %p630 = scmp.eq.s32.totalorder %s115, 1
      %p631 = por %p629, %p630
      %p632 = scmp.ne.s32.totalorder %s623, %s624
      %p633 = scmp.eq.s32.totalorder %s115, 0
      %p634 = por %p632, %p633
      %p635 = scmp.ne.s32.totalorder %s623, %s624
      %p636 = scmp.eq.s32.totalorder %s116, 1
      %p637 = por %p635, %p636
      %p639 = scmp.ne.s32.totalorder %s624, %s638
      %p640 = scmp.eq.s32.totalorder %s116, 0
      %p641 = por %p639, %p640
      %s643 = sadd.s32 %s642, 1
      %p646 = scmp.eq.s32.totalorder %s110, 1
      %p647 = scmp.ne.s32.totalorder %s642, %s644
      %p648 = scmp.eq.s32.totalorder %s110, 0
      %p649 = por %p647, %p648
      %p650 = scmp.ne.s32.totalorder %s642, %s644
      %p651 = scmp.eq.s32.totalorder %s115, 1
      %p652 = por %p650, %p651
      %p653 = scmp.ne.s32.totalorder %s644, %s645
      %p654 = scmp.eq.s32.totalorder %s115, 0
      %p655 = por %p653, %p654
      %p656 = scmp.ne.s32.totalorder %s644, %s645
      %p657 = scmp.eq.s32.totalorder %s116, 1
      %p658 = por %p656, %p657
      %p660 = scmp.ne.s32.totalorder %s645, %s659
      %p661 = scmp.eq.s32.totalorder %s116, 0
      %p662 = por %p660, %p661
      %s664 = sadd.s32 %s663, 1
      %p667 = scmp.eq.s32.totalorder %s110, 1
      %p668 = scmp.ne.s32.totalorder %s663, %s665
      %p669 = scmp.eq.s32.totalorder %s110, 0
      %p670 = por %p668, %p669
      %p671 = scmp.ne.s32.totalorder %s663, %s665
      %p672 = scmp.eq.s32.totalorder %s115, 1
      %p673 = por %p671, %p672
      %p674 = scmp.ne.s32.totalorder %s665, %s666
      %p675 = scmp.eq.s32.totalorder %s115, 0
      %p676 = por %p674, %p675
      %p677 = scmp.ne.s32.totalorder %s665, %s666
      %p678 = scmp.eq.s32.totalorder %s116, 1
      %p679 = por %p677, %p678
      %p681 = scmp.ne.s32.totalorder %s666, %s680
      %p682 = scmp.eq.s32.totalorder %s116, 0
      %p683 = por %p681, %p682
      %s685 = sadd.s32 %s684, 1
      %p688 = scmp.eq.s32.totalorder %s110, 1
      %p689 = scmp.ne.s32.totalorder %s684, %s686
      %p690 = scmp.eq.s32.totalorder %s110, 0
      %p691 = por %p689, %p690
      %p692 = scmp.ne.s32.totalorder %s684, %s686
      %p693 = scmp.eq.s32.totalorder %s115, 1
      %p694 = por %p692, %p693
      %p695 = scmp.ne.s32.totalorder %s686, %s687
      %p696 = scmp.eq.s32.totalorder %s115, 0
      %p697 = por %p695, %p696
      %p698 = scmp.ne.s32.totalorder %s686, %s687
      %p699 = scmp.eq.s32.totalorder %s116, 1
      %p700 = por %p698, %p699
      %p702 = scmp.ne.s32.totalorder %s687, %s701
      %p703 = scmp.eq.s32.totalorder %s116, 0
      %p704 = por %p702, %p703
      %s706 = sadd.s32 %s705, 1
      %p709 = scmp.eq.s32.totalorder %s110, 1
      %p710 = scmp.ne.s32.totalorder %s705, %s707
      %p711 = scmp.eq.s32.totalorder %s110, 0
      %p712 = por %p710, %p711
      %p713 = scmp.ne.s32.totalorder %s705, %s707
      %p714 = scmp.eq.s32.totalorder %s115, 1
      %p715 = por %p713, %p714
      %p716 = scmp.ne.s32.totalorder %s707, %s708
      %p717 = scmp.eq.s32.totalorder %s115, 0
      %p718 = por %p716, %p717
      %p719 = scmp.ne.s32.totalorder %s707, %s708
      %p720 = scmp.eq.s32.totalorder %s116, 1
      %p721 = por %p719, %p720
      %p723 = scmp.ne.s32.totalorder %s708, %s722
      %p724 = scmp.eq.s32.totalorder %s116, 0
      %p725 = por %p723, %p724
      %s727 = sadd.s32 %s726, 1
      %p730 = scmp.eq.s32.totalorder %s110, 1
      %p731 = scmp.ne.s32.totalorder %s726, %s728
      %p732 = scmp.eq.s32.totalorder %s110, 0
      %p733 = por %p731, %p732
      %p734 = scmp.ne.s32.totalorder %s726, %s728
      %p735 = scmp.eq.s32.totalorder %s115, 1
      %p736 = por %p734, %p735
      %p737 = scmp.ne.s32.totalorder %s728, %s729
      %p738 = scmp.eq.s32.totalorder %s115, 0
      %p739 = por %p737, %p738
      %p740 = scmp.ne.s32.totalorder %s728, %s729
      %p741 = scmp.eq.s32.totalorder %s116, 1
      %p742 = por %p740, %p741
      %p744 = scmp.ne.s32.totalorder %s729, %s743
      %p745 = scmp.eq.s32.totalorder %s116, 0
      %p746 = por %p744, %p745
      %s748 = sadd.s32 %s747, 1
      %p751 = scmp.eq.s32.totalorder %s110, 1
      %p752 = scmp.ne.s32.totalorder %s747, %s749
      %p753 = scmp.eq.s32.totalorder %s110, 0
      %p754 = por %p752, %p753
      %p755 = scmp.ne.s32.totalorder %s747, %s749
      %p756 = scmp.eq.s32.totalorder %s115, 1
      %p757 = por %p755, %p756
      %p758 = scmp.ne.s32.totalorder %s749, %s750
      %p759 = scmp.eq.s32.totalorder %s115, 0
      %p760 = por %p758, %p759
      %p761 = scmp.ne.s32.totalorder %s749, %s750
      %p762 = scmp.eq.s32.totalorder %s116, 1
      %p763 = por %p761, %p762
      %p765 = scmp.ne.s32.totalorder %s750, %s764
      %p766 = scmp.eq.s32.totalorder %s116, 0
      %p767 = por %p765, %p766
      %s769 = sadd.s32 %s768, 1
      %p772 = scmp.eq.s32.totalorder %s110, 1
      %p773 = scmp.ne.s32.totalorder %s768, %s770
      %p774 = scmp.eq.s32.totalorder %s110, 0
      %p775 = por %p773, %p774
      %p776 = scmp.ne.s32.totalorder %s768, %s770
      %p777 = scmp.eq.s32.totalorder %s115, 1
      %p778 = por %p776, %p777
      %p779 = scmp.ne.s32.totalorder %s770, %s771
      %p780 = scmp.eq.s32.totalorder %s115, 0
      %p781 = por %p779, %p780
      %p782 = scmp.ne.s32.totalorder %s770, %s771
      %p783 = scmp.eq.s32.totalorder %s116, 1
      %p784 = por %p782, %p783
      %p786 = scmp.ne.s32.totalorder %s771, %s785
      %p787 = scmp.eq.s32.totalorder %s116, 0
      %p788 = por %p786, %p787
      %s790 = sadd.s32 %s789, 1
      %p793 = scmp.eq.s32.totalorder %s110, 1
      %p794 = scmp.ne.s32.totalorder %s789, %s791
      %p795 = scmp.eq.s32.totalorder %s110, 0
      %p796 = por %p794, %p795
      %p797 = scmp.ne.s32.totalorder %s789, %s791
      %p798 = scmp.eq.s32.totalorder %s115, 1
      %p799 = por %p797, %p798
      %p800 = scmp.ne.s32.totalorder %s791, %s792
      %p801 = scmp.eq.s32.totalorder %s115, 0
      %p802 = por %p800, %p801
      %p803 = scmp.ne.s32.totalorder %s791, %s792
      %p804 = scmp.eq.s32.totalorder %s116, 1
      %p805 = por %p803, %p804
      %p807 = scmp.ne.s32.totalorder %s792, %s806
      %p808 = scmp.eq.s32.totalorder %s116, 0
      %p809 = por %p807, %p808
      %s811 = sadd.s32 %s810, 1
      %p814 = scmp.eq.s32.totalorder %s110, 1
      %p815 = scmp.ne.s32.totalorder %s810, %s812
      %p816 = scmp.eq.s32.totalorder %s110, 0
      %p817 = por %p815, %p816
      %p818 = scmp.ne.s32.totalorder %s810, %s812
      %p819 = scmp.eq.s32.totalorder %s115, 1
      %p820 = por %p818, %p819
      %p821 = scmp.ne.s32.totalorder %s812, %s813
      %p822 = scmp.eq.s32.totalorder %s115, 0
      %p823 = por %p821, %p822
      %p824 = scmp.ne.s32.totalorder %s812, %s813
      %p825 = scmp.eq.s32.totalorder %s116, 1
      %p826 = por %p824, %p825
      %p828 = scmp.ne.s32.totalorder %s813, %s827
      %p829 = scmp.eq.s32.totalorder %s116, 0
      %p830 = por %p828, %p829
      %s832 = sadd.s32 %s831, 1
      %p835 = scmp.eq.s32.totalorder %s110, 1
      %p836 = scmp.ne.s32.totalorder %s831, %s833
      %p837 = scmp.eq.s32.totalorder %s110, 0
      %p838 = por %p836, %p837
      %p839 = scmp.ne.s32.totalorder %s831, %s833
      %p840 = scmp.eq.s32.totalorder %s115, 1
      %p841 = por %p839, %p840
      %p842 = scmp.ne.s32.totalorder %s833, %s834
      %p843 = scmp.eq.s32.totalorder %s115, 0
      %p844 = por %p842, %p843
      %p845 = scmp.ne.s32.totalorder %s833, %s834
      %p846 = scmp.eq.s32.totalorder %s116, 1
      %p847 = por %p845, %p846
      %p849 = scmp.ne.s32.totalorder %s834, %s848
      %p850 = scmp.eq.s32.totalorder %s116, 0
      %p851 = por %p849, %p850
      %s853 = sadd.s32 %s852, 1
      %p856 = scmp.eq.s32.totalorder %s110, 1
      %p857 = scmp.ne.s32.totalorder %s852, %s854
      %p858 = scmp.eq.s32.totalorder %s110, 0
      %p859 = por %p857, %p858
      %p860 = scmp.ne.s32.totalorder %s852, %s854
      %p861 = scmp.eq.s32.totalorder %s115, 1
      %p862 = por %p860, %p861
      %p863 = scmp.ne.s32.totalorder %s854, %s855
      %p864 = scmp.eq.s32.totalorder %s115, 0
      %p865 = por %p863, %p864
      %p866 = scmp.ne.s32.totalorder %s854, %s855
      %p867 = scmp.eq.s32.totalorder %s116, 1
      %p868 = por %p866, %p867
      %p870 = scmp.ne.s32.totalorder %s855, %s869
      %p871 = scmp.eq.s32.totalorder %s116, 0
      %p872 = por %p870, %p871
      %s874 = sadd.s32 %s873, 1
      %p877 = scmp.eq.s32.totalorder %s110, 1
      %p878 = scmp.ne.s32.totalorder %s873, %s875
      %p879 = scmp.eq.s32.totalorder %s110, 0
      %p880 = por %p878, %p879
      %p881 = scmp.ne.s32.totalorder %s873, %s875
      %p882 = scmp.eq.s32.totalorder %s115, 1
      %p883 = por %p881, %p882
      %p884 = scmp.ne.s32.totalorder %s875, %s876
      %p885 = scmp.eq.s32.totalorder %s115, 0
      %p886 = por %p884, %p885
      %p887 = scmp.ne.s32.totalorder %s875, %s876
      %p888 = scmp.eq.s32.totalorder %s116, 1
      %p889 = por %p887, %p888
      %p891 = scmp.ne.s32.totalorder %s876, %s890
      %p892 = scmp.eq.s32.totalorder %s116, 0
      %p893 = por %p891, %p892
      %s895 = sadd.s32 %s894, 1
      %p898 = scmp.eq.s32.totalorder %s110, 1
      %p899 = scmp.ne.s32.totalorder %s894, %s896
      %p900 = scmp.eq.s32.totalorder %s110, 0
      %p901 = por %p899, %p900
      %p902 = scmp.ne.s32.totalorder %s894, %s896
      %p903 = scmp.eq.s32.totalorder %s115, 1
      %p904 = por %p902, %p903
      %p905 = scmp.ne.s32.totalorder %s896, %s897
      %p906 = scmp.eq.s32.totalorder %s115, 0
      %p907 = por %p905, %p906
      %p908 = scmp.ne.s32.totalorder %s896, %s897
      %p909 = scmp.eq.s32.totalorder %s116, 1
      %p910 = por %p908, %p909
      %p912 = scmp.ne.s32.totalorder %s897, %s911
      %p913 = scmp.eq.s32.totalorder %s116, 0
      %p914 = por %p912, %p913
      %s916 = sadd.s32 %s915, 1
      %p919 = scmp.eq.s32.totalorder %s110, 1
      %p920 = scmp.ne.s32.totalorder %s915, %s917
      %p921 = scmp.eq.s32.totalorder %s110, 0
      %p922 = por %p920, %p921
      %p923 = scmp.ne.s32.totalorder %s915, %s917
      %p924 = scmp.eq.s32.totalorder %s115, 1
      %p925 = por %p923, %p924
      %p926 = scmp.ne.s32.totalorder %s917, %s918
      %p927 = scmp.eq.s32.totalorder %s115, 0
      %p928 = por %p926, %p927
      %p929 = scmp.ne.s32.totalorder %s917, %s918
      %p930 = scmp.eq.s32.totalorder %s116, 1
      %p931 = por %p929, %p930
      %p933 = scmp.ne.s32.totalorder %s918, %s932
      %p934 = scmp.eq.s32.totalorder %s116, 0
      %p935 = por %p933, %p934
      %s937 = sadd.s32 %s936, 1
      %p940 = scmp.eq.s32.totalorder %s110, 1
      %p941 = scmp.ne.s32.totalorder %s936, %s938
      %p942 = scmp.eq.s32.totalorder %s110, 0
      %p943 = por %p941, %p942
      %p944 = scmp.ne.s32.totalorder %s936, %s938
      %p945 = scmp.eq.s32.totalorder %s115, 1
      %p946 = por %p944, %p945
      %p947 = scmp.ne.s32.totalorder %s938, %s939
      %p948 = scmp.eq.s32.totalorder %s115, 0
      %p949 = por %p947, %p948
      %p950 = scmp.ne.s32.totalorder %s938, %s939
      %p951 = scmp.eq.s32.totalorder %s116, 1
      %p952 = por %p950, %p951
      %p954 = scmp.ne.s32.totalorder %s939, %s953
      %p955 = scmp.eq.s32.totalorder %s116, 0
      %p956 = por %p954, %p955
      %s958 = sadd.s32 %s957, 1
      %p961 = scmp.eq.s32.totalorder %s110, 1
      %p962 = scmp.ne.s32.totalorder %s957, %s959
      %p963 = scmp.eq.s32.totalorder %s110, 0
      %p964 = por %p962, %p963
      %p965 = scmp.ne.s32.totalorder %s957, %s959
      %p966 = scmp.eq.s32.totalorder %s115, 1
      %p967 = por %p965, %p966
      %p968 = scmp.ne.s32.totalorder %s959, %s960
      %p969 = scmp.eq.s32.totalorder %s115, 0
      %p970 = por %p968, %p969
      %p971 = scmp.ne.s32.totalorder %s959, %s960
      %p972 = scmp.eq.s32.totalorder %s116, 1
      %p973 = por %p971, %p972
      %p975 = scmp.ne.s32.totalorder %s960, %s974
      %p976 = scmp.eq.s32.totalorder %s116, 0
      %p977 = por %p975, %p976
      %s979 = sadd.s32 %s978, 1
      %p982 = scmp.eq.s32.totalorder %s110, 1
      %p983 = scmp.ne.s32.totalorder %s978, %s980
      %p984 = scmp.eq.s32.totalorder %s110, 0
      %p985 = por %p983, %p984
      %p986 = scmp.ne.s32.totalorder %s978, %s980
      %p987 = scmp.eq.s32.totalorder %s115, 1
      %p988 = por %p986, %p987
      %p989 = scmp.ne.s32.totalorder %s980, %s981
      %p990 = scmp.eq.s32.totalorder %s115, 0
      %p991 = por %p989, %p990
      %p992 = scmp.ne.s32.totalorder %s980, %s981
      %p993 = scmp.eq.s32.totalorder %s116, 1
      %p994 = por %p992, %p993
      %p996 = scmp.ne.s32.totalorder %s981, %s995
      %p997 = scmp.eq.s32.totalorder %s116, 0
      %p998 = por %p996, %p997
      %s1000 = sadd.s32 %s999, 1
      %p1003 = scmp.eq.s32.totalorder %s110, 1
      %p1004 = scmp.ne.s32.totalorder %s999, %s1001
      %p1005 = scmp.eq.s32.totalorder %s110, 0
      %p1006 = por %p1004, %p1005
      %p1007 = scmp.ne.s32.totalorder %s999, %s1001
      %p1008 = scmp.eq.s32.totalorder %s115, 1
      %p1009 = por %p1007, %p1008
      %p1010 = scmp.ne.s32.totalorder %s1001, %s1002
      %p1011 = scmp.eq.s32.totalorder %s115, 0
      %p1012 = por %p1010, %p1011
      %p1013 = scmp.ne.s32.totalorder %s1001, %s1002
      %p1014 = scmp.eq.s32.totalorder %s116, 1
      %p1015 = por %p1013, %p1014
      %p1017 = scmp.ne.s32.totalorder %s1002, %s1016
      %p1018 = scmp.eq.s32.totalorder %s116, 0
      %p1019 = por %p1017, %p1018
      %s1021 = sadd.s32 %s1020, 1
      %p1024 = scmp.eq.s32.totalorder %s110, 1
      %p1025 = scmp.ne.s32.totalorder %s1020, %s1022
      %p1026 = scmp.eq.s32.totalorder %s110, 0
      %p1027 = por %p1025, %p1026
      %p1028 = scmp.ne.s32.totalorder %s1020, %s1022
      %p1029 = scmp.eq.s32.totalorder %s115, 1
      %p1030 = por %p1028, %p1029
      %p1031 = scmp.ne.s32.totalorder %s1022, %s1023
      %p1032 = scmp.eq.s32.totalorder %s115, 0
      %p1033 = por %p1031, %p1032
      %p1034 = scmp.ne.s32.totalorder %s1022, %s1023
      %p1035 = scmp.eq.s32.totalorder %s116, 1
      %p1036 = por %p1034, %p1035
      %p1038 = scmp.ne.s32.totalorder %s1023, %s1037
      %p1039 = scmp.eq.s32.totalorder %s116, 0
      %p1040 = por %p1038, %p1039
      %s1042 = sadd.s32 %s1041, 1
      %p1045 = scmp.eq.s32.totalorder %s110, 1
      %p1046 = scmp.ne.s32.totalorder %s1041, %s1043
      %p1047 = scmp.eq.s32.totalorder %s110, 0
      %p1048 = por %p1046, %p1047
      %p1049 = scmp.ne.s32.totalorder %s1041, %s1043
      %p1050 = scmp.eq.s32.totalorder %s115, 1
      %p1051 = por %p1049, %p1050
      %p1052 = scmp.ne.s32.totalorder %s1043, %s1044
      %p1053 = scmp.eq.s32.totalorder %s115, 0
      %p1054 = por %p1052, %p1053
      %p1055 = scmp.ne.s32.totalorder %s1043, %s1044
      %p1056 = scmp.eq.s32.totalorder %s116, 1
      %p1057 = por %p1055, %p1056
      %p1059 = scmp.ne.s32.totalorder %s1044, %s1058
      %p1060 = scmp.eq.s32.totalorder %s116, 0
      %p1061 = por %p1059, %p1060
      %s1063 = sadd.s32 %s1062, 1
      %p1066 = scmp.eq.s32.totalorder %s110, 1
      %p1067 = scmp.ne.s32.totalorder %s1062, %s1064
      %p1068 = scmp.eq.s32.totalorder %s110, 0
      %p1069 = por %p1067, %p1068
      %p1070 = scmp.ne.s32.totalorder %s1062, %s1064
      %p1071 = scmp.eq.s32.totalorder %s115, 1
      %p1072 = por %p1070, %p1071
      %p1073 = scmp.ne.s32.totalorder %s1064, %s1065
      %p1074 = scmp.eq.s32.totalorder %s115, 0
      %p1075 = por %p1073, %p1074
      %p1076 = scmp.ne.s32.totalorder %s1064, %s1065
      %p1077 = scmp.eq.s32.totalorder %s116, 1
      %p1078 = por %p1076, %p1077
      %p1080 = scmp.ne.s32.totalorder %s1065, %s1079
      %p1081 = scmp.eq.s32.totalorder %s116, 0
      %p1082 = por %p1080, %p1081
      %s1084 = sadd.s32 %s1083, 1
      %p1087 = scmp.eq.s32.totalorder %s110, 1
      %p1088 = scmp.ne.s32.totalorder %s1083, %s1085
      %p1089 = scmp.eq.s32.totalorder %s110, 0
      %p1090 = por %p1088, %p1089
      %p1091 = scmp.ne.s32.totalorder %s1083, %s1085
      %p1092 = scmp.eq.s32.totalorder %s115, 1
      %p1093 = por %p1091, %p1092
      %p1094 = scmp.ne.s32.totalorder %s1085, %s1086
      %p1095 = scmp.eq.s32.totalorder %s115, 0
      %p1096 = por %p1094, %p1095
      %p1097 = scmp.ne.s32.totalorder %s1085, %s1086
      %p1098 = scmp.eq.s32.totalorder %s116, 1
      %p1099 = por %p1097, %p1098
      %p1101 = scmp.ne.s32.totalorder %s1086, %s1100
      %p1102 = scmp.eq.s32.totalorder %s116, 0
      %p1103 = por %p1101, %p1102
      %s1104 = ssub.s32 %s110, %s117
      %p1105 = scmp.eq.s32.totalorder %s1104, 0
      %s1107 = sadd.s32 %s1106, 1
      %s1108 = scalar_select %p1105, %s1106, %s1107
      %p1111 = pneg %p1105
      %p1112 = scmp.eq.s32.totalorder %s110, 1
      %p1113 = por %p1111, %p1112
      %p1114 = scmp.ne.s32.totalorder %s1106, %s1109
      %p1115 = scmp.eq.s32.totalorder %s110, 0
      %p1116 = por %p1114, %p1115
      %p1117 = scmp.ne.s32.totalorder %s1106, %s1109
      %p1118 = scmp.eq.s32.totalorder %s115, 1
      %p1119 = por %p1117, %p1118
      %p1120 = scmp.ne.s32.totalorder %s1109, %s1110
      %p1121 = scmp.eq.s32.totalorder %s115, 0
      %p1122 = por %p1120, %p1121
      %p1123 = scmp.ne.s32.totalorder %s1109, %s1110
      %p1124 = scmp.eq.s32.totalorder %s116, 1
      %p1125 = por %p1123, %p1124
      %p1127 = scmp.ne.s32.totalorder %s1110, %s1126
      %p1128 = scmp.eq.s32.totalorder %s116, 0
      %p1129 = por %p1127, %p1128
      %p1130 = scmp.le.s32.totalorder 1, %s110
      %p1131 = scmp.lt.s32.totalorder %s110, 3
      %p1132 = pnand %p1130, %p1131
      %p1133 = pneg %p1132
      // Predicated region
      $region9: #{tpu_custom_call.1} parent=5 // pred_check
        _
      $region10: #{tpu_custom_call.1} parent=5 // pred_check_branch
        %1135 = sbr.rel (%p1132) target = $region12
      $region11: #{tpu_custom_call.1} parent=5 // pred_region
        %s1136 = ssub.s32 %s110, 1
        // Predicated region
        $region13: #{tpu_custom_call.1} parent=11 // pred_check
          %p1137 = pneg %p235
        $region14: #{tpu_custom_call.1} parent=11 // pred_check_branch
          %1139 = sbr.rel (%p1137) target = $region16
        $region15: #{tpu_custom_call.1} parent=11 // pred_region
          %s1141 = ssub.s32 128, 128
          %1142 = vsyncadd [#allocation4], %s1141
          %s1144 = sshll.u32 [#allocation3], 4
          %s1145 = int_to_ptr.vmem [resolvable:$true] %s1144
          %1147 = dma.hbm_to_vmem [thread:$0]  %s9, 128, %s1145, [#allocation4]
        $region16: #{tpu_custom_call.1} parent=11 // pred_fallthru
          _
        // Predicated region
        $region17: #{tpu_custom_call.1} parent=11 // pred_check
          %p1148 = pneg %p256
        $region18: #{tpu_custom_call.1} parent=11 // pred_check_branch
          %1150 = sbr.rel (%p1148) target = $region20
        $region19: #{tpu_custom_call.1} parent=11 // pred_region
          %s1152 = ssub.s32 16, 16
          %1153 = vsyncadd [#allocation6], %s1152
          %s1155 = sshll.u32 [#allocation5], 4
          %s1156 = int_to_ptr.vmem [resolvable:$true] %s1155
          %1158 = dma.hbm_to_vmem [thread:$0]  %s11, 16, %s1156, [#allocation6]
        $region20: #{tpu_custom_call.1} parent=11 // pred_fallthru
          _
        // Predicated region
        $region21: #{tpu_custom_call.1} parent=11 // pred_check
          %p1159 = pneg %p277
        $region22: #{tpu_custom_call.1} parent=11 // pred_check_branch
          %1161 = sbr.rel (%p1159) target = $region24
        $region23: #{tpu_custom_call.1} parent=11 // pred_region
          _
        $region24: #{tpu_custom_call.1} parent=11 // pred_fallthru
          _
        // Predicated region
        $region25: #{tpu_custom_call.1} parent=11 // pred_check
          %p1162 = pneg %p298
        $region26: #{tpu_custom_call.1} parent=11 // pred_check_branch
          %1164 = sbr.rel (%p1162) target = $region28
        $region27: #{tpu_custom_call.1} parent=11 // pred_region
          %s1166 = ssub.s32 16, 16
          %1167 = vsyncadd [#allocation6], %s1166
          %s1169 = sshll.u32 [#allocation7], 4
          %s1170 = int_to_ptr.vmem [resolvable:$true] %s1169
          %1172 = dma.hbm_to_vmem [thread:$0]  %s15, 16, %s1170, [#allocation6]
        $region28: #{tpu_custom_call.1} parent=11 // pred_fallthru
          _
        // Predicated region
        $region29: #{tpu_custom_call.1} parent=11 // pred_check
          %p1173 = pneg %p319
        $region30: #{tpu_custom_call.1} parent=11 // pred_check_branch
          %1175 = sbr.rel (%p1173) target = $region32
        $region31: #{tpu_custom_call.1} parent=11 // pred_region
          _
        $region32: #{tpu_custom_call.1} parent=11 // pred_fallthru
          _
        // Predicated region
        $region33: #{tpu_custom_call.1} parent=11 // pred_check
          %p1176 = pneg %p340
        $region34: #{tpu_custom_call.1} parent=11 // pred_check_branch
          %1178 = sbr.rel (%p1176) target = $region36
        $region35: #{tpu_custom_call.1} parent=11 // pred_region
          %s1180 = ssub.s32 16, 16
          %1181 = vsyncadd [#allocation9], %s1180
          %s1183 = sshll.u32 [#allocation8], 4
          %s1184 = int_to_ptr.vmem [resolvable:$true] %s1183
          %1186 = dma.hbm_to_vmem [thread:$0]  %s19, 16, %s1184, [#allocation9]
        $region36: #{tpu_custom_call.1} parent=11 // pred_fallthru
          _
        // Predicated region
        $region37: #{tpu_custom_call.1} parent=11 // pred_check
          %p1187 = pneg %p361
        $region38: #{tpu_custom_call.1} parent=11 // pred_check_branch
          %1189 = sbr.rel (%p1187) target = $region40
        $region39: #{tpu_custom_call.1} parent=11 // pred_region
          _
        $region40: #{tpu_custom_call.1} parent=11 // pred_fallthru
          _
        // Predicated region
        $region41: #{tpu_custom_call.1} parent=11 // pred_check
          %p1190 = pneg %p382
        $region42: #{tpu_custom_call.1} parent=11 // pred_check_branch
          %1192 = sbr.rel (%p1190) target = $region44
        $region43: #{tpu_custom_call.1} parent=11 // pred_region
          %s1194 = ssub.s32 16, 16
          %1195 = vsyncadd [#allocation9], %s1194
          %s1197 = sshll.u32 [#allocation10], 4
          %s1198 = int_to_ptr.vmem [resolvable:$true] %s1197
          %1200 = dma.hbm_to_vmem [thread:$0]  %s23, 16, %s1198, [#allocation9]
        $region44: #{tpu_custom_call.1} parent=11 // pred_fallthru
          _
        // Predicated region
        $region45: #{tpu_custom_call.1} parent=11 // pred_check
          %p1201 = pneg %p403
        $region46: #{tpu_custom_call.1} parent=11 // pred_check_branch
          %1203 = sbr.rel (%p1201) target = $region48
        $region47: #{tpu_custom_call.1} parent=11 // pred_region
          _
        $region48: #{tpu_custom_call.1} parent=11 // pred_fallthru
          _
        // Predicated region
        $region49: #{tpu_custom_call.1} parent=11 // pred_check
          %p1204 = pneg %p424
        $region50: #{tpu_custom_call.1} parent=11 // pred_check_branch
          %1206 = sbr.rel (%p1204) target = $region52
        $region51: #{tpu_custom_call.1} parent=11 // pred_region
          %s1208 = ssub.s32 16, 16
          %1209 = vsyncadd [#allocation12], %s1208
          %s1211 = sshll.u32 [#allocation11], 4
          %s1212 = int_to_ptr.vmem [resolvable:$true] %s1211
          %1214 = dma.hbm_to_vmem [thread:$0]  %s27, 16, %s1212, [#allocation12]
        $region52: #{tpu_custom_call.1} parent=11 // pred_fallthru
          _
        // Predicated region
        $region53: #{tpu_custom_call.1} parent=11 // pred_check
          %p1215 = pneg %p445
        $region54: #{tpu_custom_call.1} parent=11 // pred_check_branch
          %1217 = sbr.rel (%p1215) target = $region56
        $region55: #{tpu_custom_call.1} parent=11 // pred_region
          _
        $region56: #{tpu_custom_call.1} parent=11 // pred_fallthru
          _
        // Predicated region
        $region57: #{tpu_custom_call.1} parent=11 // pred_check
          %p1218 = pneg %p466
        $region58: #{tpu_custom_call.1} parent=11 // pred_check_branch
          %1220 = sbr.rel (%p1218) target = $region60
        $region59: #{tpu_custom_call.1} parent=11 // pred_region
          %s1222 = ssub.s32 16, 16
          %1223 = vsyncadd [#allocation12], %s1222
          %s1225 = sshll.u32 [#allocation13], 4
          %s1226 = int_to_ptr.vmem [resolvable:$true] %s1225
          %1228 = dma.hbm_to_vmem [thread:$0]  %s31, 16, %s1226, [#allocation12]
        $region60: #{tpu_custom_call.1} parent=11 // pred_fallthru
          _
        // Predicated region
        $region61: #{tpu_custom_call.1} parent=11 // pred_check
          %p1229 = pneg %p487
        $region62: #{tpu_custom_call.1} parent=11 // pred_check_branch
          %1231 = sbr.rel (%p1229) target = $region64
        $region63: #{tpu_custom_call.1} parent=11 // pred_region
          %s1233 = ssub.s32 128, 128
          %1234 = vsyncadd [#allocation15], %s1233
          %s1236 = sshll.u32 [#allocation14], 4
          %s1237 = int_to_ptr.vmem [resolvable:$true] %s1236
          %1239 = dma.hbm_to_vmem [thread:$0]  %s33, 128, %s1237, [#allocation15]
        $region64: #{tpu_custom_call.1} parent=11 // pred_fallthru
          _
        // Predicated region
        $region65: #{tpu_custom_call.1} parent=11 // pred_check
          %p1240 = pneg %p508
        $region66: #{tpu_custom_call.1} parent=11 // pred_check_branch
          %1242 = sbr.rel (%p1240) target = $region68
        $region67: #{tpu_custom_call.1} parent=11 // pred_region
          %s1244 = ssub.s32 16, 16
          %1245 = vsyncadd [#allocation15], %s1244
          %s1247 = sshll.u32 [#allocation16], 4
          %s1248 = int_to_ptr.vmem [resolvable:$true] %s1247
          %1250 = dma.hbm_to_vmem [thread:$0]  %s35, 16, %s1248, [#allocation15]
        $region68: #{tpu_custom_call.1} parent=11 // pred_fallthru
          _
        // Predicated region
        $region69: #{tpu_custom_call.1} parent=11 // pred_check
          %p1251 = pneg %p529
        $region70: #{tpu_custom_call.1} parent=11 // pred_check_branch
          %1253 = sbr.rel (%p1251) target = $region72
        $region71: #{tpu_custom_call.1} parent=11 // pred_region
          _
        $region72: #{tpu_custom_call.1} parent=11 // pred_fallthru
          _
        // Predicated region
        $region73: #{tpu_custom_call.1} parent=11 // pred_check
          %p1254 = pneg %p550
        $region74: #{tpu_custom_call.1} parent=11 // pred_check_branch
          %1256 = sbr.rel (%p1254) target = $region76
        $region75: #{tpu_custom_call.1} parent=11 // pred_region
          %s1258 = ssub.s32 16, 16
          %1259 = vsyncadd [#allocation18], %s1258
          %s1261 = sshll.u32 [#allocation17], 4
          %s1262 = int_to_ptr.vmem [resolvable:$true] %s1261
          %1264 = dma.hbm_to_vmem [thread:$0]  %s39, 16, %s1262, [#allocation18]
        $region76: #{tpu_custom_call.1} parent=11 // pred_fallthru
          _
        // Predicated region
        $region77: #{tpu_custom_call.1} parent=11 // pred_check
          %p1265 = pneg %p571
        $region78: #{tpu_custom_call.1} parent=11 // pred_check_branch
          %1267 = sbr.rel (%p1265) target = $region80
        $region79: #{tpu_custom_call.1} parent=11 // pred_region
          _
        $region80: #{tpu_custom_call.1} parent=11 // pred_fallthru
          _
        // Predicated region
        $region81: #{tpu_custom_call.1} parent=11 // pred_check
          %p1268 = pneg %p592
        $region82: #{tpu_custom_call.1} parent=11 // pred_check_branch
          %1270 = sbr.rel (%p1268) target = $region84
        $region83: #{tpu_custom_call.1} parent=11 // pred_region
          %s1272 = ssub.s32 16, 16
          %1273 = vsyncadd [#allocation18], %s1272
          %s1275 = sshll.u32 [#allocation19], 4
          %s1276 = int_to_ptr.vmem [resolvable:$true] %s1275
          %1278 = dma.hbm_to_vmem [thread:$0]  %s43, 16, %s1276, [#allocation18]
        $region84: #{tpu_custom_call.1} parent=11 // pred_fallthru
          _
        // Predicated region
        $region85: #{tpu_custom_call.1} parent=11 // pred_check
          %p1279 = pneg %p613
        $region86: #{tpu_custom_call.1} parent=11 // pred_check_branch
          %1281 = sbr.rel (%p1279) target = $region88
        $region87: #{tpu_custom_call.1} parent=11 // pred_region
          _
        $region88: #{tpu_custom_call.1} parent=11 // pred_fallthru
          _
        // Predicated region
        $region89: #{tpu_custom_call.1} parent=11 // pred_check
          %p1282 = pneg %p634
        $region90: #{tpu_custom_call.1} parent=11 // pred_check_branch
          %1284 = sbr.rel (%p1282) target = $region92
        $region91: #{tpu_custom_call.1} parent=11 // pred_region
          %s1286 = ssub.s32 16, 16
          %1287 = vsyncadd [#allocation21], %s1286
          %s1289 = sshll.u32 [#allocation20], 4
          %s1290 = int_to_ptr.vmem [resolvable:$true] %s1289
          %1292 = dma.hbm_to_vmem [thread:$0]  %s47, 16, %s1290, [#allocation21]
        $region92: #{tpu_custom_call.1} parent=11 // pred_fallthru
          _
        // Predicated region
        $region93: #{tpu_custom_call.1} parent=11 // pred_check
          %p1293 = pneg %p655
        $region94: #{tpu_custom_call.1} parent=11 // pred_check_branch
          %1295 = sbr.rel (%p1293) target = $region96
        $region95: #{tpu_custom_call.1} parent=11 // pred_region
          _
        $region96: #{tpu_custom_call.1} parent=11 // pred_fallthru
          _
        // Predicated region
        $region97: #{tpu_custom_call.1} parent=11 // pred_check
          %p1296 = pneg %p676
        $region98: #{tpu_custom_call.1} parent=11 // pred_check_branch
          %1298 = sbr.rel (%p1296) target = $region100
        $region99: #{tpu_custom_call.1} parent=11 // pred_region
          %s1300 = ssub.s32 16, 16
          %1301 = vsyncadd [#allocation21], %s1300
          %s1303 = sshll.u32 [#allocation22], 4
          %s1304 = int_to_ptr.vmem [resolvable:$true] %s1303
          %1306 = dma.hbm_to_vmem [thread:$0]  %s51, 16, %s1304, [#allocation21]
        $region100: #{tpu_custom_call.1} parent=11 // pred_fallthru
          _
        // Predicated region
        $region101: #{tpu_custom_call.1} parent=11 // pred_check
          %p1307 = pneg %p697
        $region102: #{tpu_custom_call.1} parent=11 // pred_check_branch
          %1309 = sbr.rel (%p1307) target = $region104
        $region103: #{tpu_custom_call.1} parent=11 // pred_region
          _
        $region104: #{tpu_custom_call.1} parent=11 // pred_fallthru
          _
        // Predicated region
        $region105: #{tpu_custom_call.1} parent=11 // pred_check
          %p1310 = pneg %p718
        $region106: #{tpu_custom_call.1} parent=11 // pred_check_branch
          %1312 = sbr.rel (%p1310) target = $region108
        $region107: #{tpu_custom_call.1} parent=11 // pred_region
          %s1314 = ssub.s32 16, 16
          %1315 = vsyncadd [#allocation24], %s1314
          %s1317 = sshll.u32 [#allocation23], 4
          %s1318 = int_to_ptr.vmem [resolvable:$true] %s1317
          %1320 = dma.hbm_to_vmem [thread:$0]  %s55, 16, %s1318, [#allocation24]
        $region108: #{tpu_custom_call.1} parent=11 // pred_fallthru
          _
        // Predicated region
        $region109: #{tpu_custom_call.1} parent=11 // pred_check
          %p1321 = pneg %p739
        $region110: #{tpu_custom_call.1} parent=11 // pred_check_branch
          %1323 = sbr.rel (%p1321) target = $region112
        $region111: #{tpu_custom_call.1} parent=11 // pred_region
          _
        $region112: #{tpu_custom_call.1} parent=11 // pred_fallthru
          _
        // Predicated region
        $region113: #{tpu_custom_call.1} parent=11 // pred_check
          %p1324 = pneg %p760
        $region114: #{tpu_custom_call.1} parent=11 // pred_check_branch
          %1326 = sbr.rel (%p1324) target = $region116
        $region115: #{tpu_custom_call.1} parent=11 // pred_region
          %s1328 = ssub.s32 16, 16
          %1329 = vsyncadd [#allocation24], %s1328
          %s1331 = sshll.u32 [#allocation25], 4
          %s1332 = int_to_ptr.vmem [resolvable:$true] %s1331
          %1334 = dma.hbm_to_vmem [thread:$0]  %s59, 16, %s1332, [#allocation24]
        $region116: #{tpu_custom_call.1} parent=11 // pred_fallthru
          _
        // Predicated region
        $region117: #{tpu_custom_call.1} parent=11 // pred_check
          %p1335 = pneg %p781
        $region118: #{tpu_custom_call.1} parent=11 // pred_check_branch
          %1337 = sbr.rel (%p1335) target = $region120
        $region119: #{tpu_custom_call.1} parent=11 // pred_region
          _
        $region120: #{tpu_custom_call.1} parent=11 // pred_fallthru
          _
        // Predicated region
        $region121: #{tpu_custom_call.1} parent=11 // pred_check
          %p1338 = pneg %p802
        $region122: #{tpu_custom_call.1} parent=11 // pred_check_branch
          %1340 = sbr.rel (%p1338) target = $region124
        $region123: #{tpu_custom_call.1} parent=11 // pred_region
          %s1342 = ssub.s32 16, 16
          %1343 = vsyncadd [#allocation27], %s1342
          %s1345 = sshll.u32 [#allocation26], 4
          %s1346 = int_to_ptr.vmem [resolvable:$true] %s1345
          %1348 = dma.hbm_to_vmem [thread:$0]  %s63, 16, %s1346, [#allocation27]
        $region124: #{tpu_custom_call.1} parent=11 // pred_fallthru
          _
        // Predicated region
        $region125: #{tpu_custom_call.1} parent=11 // pred_check
          %p1349 = pneg %p823
        $region126: #{tpu_custom_call.1} parent=11 // pred_check_branch
          %1351 = sbr.rel (%p1349) target = $region128
        $region127: #{tpu_custom_call.1} parent=11 // pred_region
          _
        $region128: #{tpu_custom_call.1} parent=11 // pred_fallthru
          _
        // Predicated region
        $region129: #{tpu_custom_call.1} parent=11 // pred_check
          %p1352 = pneg %p844
        $region130: #{tpu_custom_call.1} parent=11 // pred_check_branch
          %1354 = sbr.rel (%p1352) target = $region132
        $region131: #{tpu_custom_call.1} parent=11 // pred_region
          _
        $region132: #{tpu_custom_call.1} parent=11 // pred_fallthru
          _
        // Predicated region
        $region133: #{tpu_custom_call.1} parent=11 // pred_check
          %p1355 = pneg %p865
        $region134: #{tpu_custom_call.1} parent=11 // pred_check_branch
          %1357 = sbr.rel (%p1355) target = $region136
        $region135: #{tpu_custom_call.1} parent=11 // pred_region
          _
        $region136: #{tpu_custom_call.1} parent=11 // pred_fallthru
          _
        // Predicated region
        $region137: #{tpu_custom_call.1} parent=11 // pred_check
          %p1358 = pneg %p886
        $region138: #{tpu_custom_call.1} parent=11 // pred_check_branch
          %1360 = sbr.rel (%p1358) target = $region140
        $region139: #{tpu_custom_call.1} parent=11 // pred_region
          _
        $region140: #{tpu_custom_call.1} parent=11 // pred_fallthru
          _
        // Predicated region
        $region141: #{tpu_custom_call.1} parent=11 // pred_check
          %p1361 = pneg %p907
        $region142: #{tpu_custom_call.1} parent=11 // pred_check_branch
          %1363 = sbr.rel (%p1361) target = $region144
        $region143: #{tpu_custom_call.1} parent=11 // pred_region
          _
        $region144: #{tpu_custom_call.1} parent=11 // pred_fallthru
          _
        // Predicated region
        $region145: #{tpu_custom_call.1} parent=11 // pred_check
          %p1364 = pneg %p928
        $region146: #{tpu_custom_call.1} parent=11 // pred_check_branch
          %1366 = sbr.rel (%p1364) target = $region148
        $region147: #{tpu_custom_call.1} parent=11 // pred_region
          _
        $region148: #{tpu_custom_call.1} parent=11 // pred_fallthru
          _
        // Predicated region
        $region149: #{tpu_custom_call.1} parent=11 // pred_check
          %p1367 = pneg %p949
        $region150: #{tpu_custom_call.1} parent=11 // pred_check_branch
          %1369 = sbr.rel (%p1367) target = $region152
        $region151: #{tpu_custom_call.1} parent=11 // pred_region
          _
        $region152: #{tpu_custom_call.1} parent=11 // pred_fallthru
          _
        // Predicated region
        $region153: #{tpu_custom_call.1} parent=11 // pred_check
          %p1370 = pneg %p970
        $region154: #{tpu_custom_call.1} parent=11 // pred_check_branch
          %1372 = sbr.rel (%p1370) target = $region156
        $region155: #{tpu_custom_call.1} parent=11 // pred_region
          _
        $region156: #{tpu_custom_call.1} parent=11 // pred_fallthru
          _
        // Predicated region
        $region157: #{tpu_custom_call.1} parent=11 // pred_check
          %p1373 = pneg %p991
        $region158: #{tpu_custom_call.1} parent=11 // pred_check_branch
          %1375 = sbr.rel (%p1373) target = $region160
        $region159: #{tpu_custom_call.1} parent=11 // pred_region
          _
        $region160: #{tpu_custom_call.1} parent=11 // pred_fallthru
          _
        // Predicated region
        $region161: #{tpu_custom_call.1} parent=11 // pred_check
          %p1376 = pneg %p1012
        $region162: #{tpu_custom_call.1} parent=11 // pred_check_branch
          %1378 = sbr.rel (%p1376) target = $region164
        $region163: #{tpu_custom_call.1} parent=11 // pred_region
          _
        $region164: #{tpu_custom_call.1} parent=11 // pred_fallthru
          _
        // Predicated region
        $region165: #{tpu_custom_call.1} parent=11 // pred_check
          %p1379 = pneg %p1033
        $region166: #{tpu_custom_call.1} parent=11 // pred_check_branch
          %1381 = sbr.rel (%p1379) target = $region168
        $region167: #{tpu_custom_call.1} parent=11 // pred_region
          _
        $region168: #{tpu_custom_call.1} parent=11 // pred_fallthru
          _
        // Predicated region
        $region169: #{tpu_custom_call.1} parent=11 // pred_check
          %p1382 = pneg %p1054
        $region170: #{tpu_custom_call.1} parent=11 // pred_check_branch
          %1384 = sbr.rel (%p1382) target = $region172
        $region171: #{tpu_custom_call.1} parent=11 // pred_region
          _
        $region172: #{tpu_custom_call.1} parent=11 // pred_fallthru
          _
        // Predicated region
        $region173: #{tpu_custom_call.1} parent=11 // pred_check
          %p1385 = pneg %p1075
        $region174: #{tpu_custom_call.1} parent=11 // pred_check_branch
          %1387 = sbr.rel (%p1385) target = $region176
        $region175: #{tpu_custom_call.1} parent=11 // pred_region
          _
        $region176: #{tpu_custom_call.1} parent=11 // pred_fallthru
          _
        // Predicated region
        $region177: #{tpu_custom_call.1} parent=11 // pred_check
          %p1388 = pneg %p1096
        $region178: #{tpu_custom_call.1} parent=11 // pred_check_branch
          %1390 = sbr.rel (%p1388) target = $region180
        $region179: #{tpu_custom_call.1} parent=11 // pred_region
          _
        $region180: #{tpu_custom_call.1} parent=11 // pred_fallthru
          _
      $region12: #{tpu_custom_call.1} parent=5 // pred_fallthru
        _
      %p1391 = scmp.lt.s32.totalorder %s110, 2
      // Predicated region
      $region181: #{tpu_custom_call.1} parent=5 // pred_check
        %p1392 = pneg %p1391
      $region182: #{tpu_custom_call.1} parent=5 // pred_check_branch
        %1394 = sbr.rel (%p1392) target = $region184
      $region183: #{tpu_custom_call.1} parent=5 // pred_region
        // Predicated region
        $region185: #{tpu_custom_call.1} parent=183 // pred_check
          %p1395 = pneg %p130
        $region186: #{tpu_custom_call.1} parent=183 // pred_check_branch
          %1397 = sbr.rel (%p1395) target = $region188
        $region187: #{tpu_custom_call.1} parent=183 // pred_region
          %p1398 = scmp.lt.s32.totalorder %s110, 1
          %s1399 = scalar_select %p1398, %s110, 1
          %s1400 = smul.addr %s1399, 8
          %s1401 = scalar_lea.vmem %s1, %s1400
        $region188: #{tpu_custom_call.1} parent=183 // pred_fallthru
          _
        // Predicated region
        $region189: #{tpu_custom_call.1} parent=183 // pred_check
          %p1402 = pneg %p156
        $region190: #{tpu_custom_call.1} parent=183 // pred_check_branch
          %1404 = sbr.rel (%p1402) target = $region192
        $region191: #{tpu_custom_call.1} parent=183 // pred_region
          %p1405 = scmp.lt.s32.totalorder %s110, 1
          %s1406 = scalar_select %p1405, %s110, 1
          %s1407 = smul.addr %s1406, 8
          %s1408 = scalar_lea.vmem %s3, %s1407
        $region192: #{tpu_custom_call.1} parent=183 // pred_fallthru
          _
        // Predicated region
        $region193: #{tpu_custom_call.1} parent=183 // pred_check
          %p1409 = pneg %p182
        $region194: #{tpu_custom_call.1} parent=183 // pred_check_branch
          %1411 = sbr.rel (%p1409) target = $region196
        $region195: #{tpu_custom_call.1} parent=183 // pred_region
          %p1412 = scmp.lt.s32.totalorder %s110, 1
          %s1413 = scalar_select %p1412, %s110, 1
          %s1414 = smul.addr %s1413, 8
          %s1415 = scalar_lea.vmem %s5, %s1414
        $region196: #{tpu_custom_call.1} parent=183 // pred_fallthru
          _
        // Predicated region
        $region197: #{tpu_custom_call.1} parent=183 // pred_check
          %p1416 = pneg %p208
        $region198: #{tpu_custom_call.1} parent=183 // pred_check_branch
          %1418 = sbr.rel (%p1416) target = $region200
        $region199: #{tpu_custom_call.1} parent=183 // pred_region
          %p1419 = scmp.lt.s32.totalorder %s110, 1
          %s1420 = scalar_select %p1419, %s110, 1
          %s1421 = smul.addr %s1420, 8
          %s1422 = scalar_lea.vmem %s7, %s1421
        $region200: #{tpu_custom_call.1} parent=183 // pred_fallthru
          _
      $region184: #{tpu_custom_call.1} parent=5 // pred_fallthru
        _
      %p1423 = scmp.le.s32.totalorder 1, %s110
      %p1424 = scmp.lt.s32.totalorder %s110, 3
      %p1425 = pnand %p1423, %p1424
      %p1426 = pneg %p1425
      // Predicated region
      $region201: #{tpu_custom_call.1} parent=5 // pred_check
        _
      $region202: #{tpu_custom_call.1} parent=5 // pred_check_branch
        %1428 = sbr.rel (%p1425) target = $region204
      $region203: #{tpu_custom_call.1} parent=5 // pred_region
        %s1429 = ssub.s32 %s110, 1
        // Predicated region
        $region205: #{tpu_custom_call.1} parent=203 // pred_check
          %p1430 = pneg %p235
        $region206: #{tpu_custom_call.1} parent=203 // pred_check_branch
          %1432 = sbr.rel (%p1430) target = $region208
        $region207: #{tpu_custom_call.1} parent=203 // pred_region
          %1433 = dma.done [#allocation4], 128
        $region208: #{tpu_custom_call.1} parent=203 // pred_fallthru
          _
        // Predicated region
        $region209: #{tpu_custom_call.1} parent=203 // pred_check
          %p1434 = pneg %p256
        $region210: #{tpu_custom_call.1} parent=203 // pred_check_branch
          %1436 = sbr.rel (%p1434) target = $region212
        $region211: #{tpu_custom_call.1} parent=203 // pred_region
          %1437 = dma.done [#allocation6], 16
        $region212: #{tpu_custom_call.1} parent=203 // pred_fallthru
          _
        // Predicated region
        $region213: #{tpu_custom_call.1} parent=203 // pred_check
          %p1438 = pneg %p298
        $region214: #{tpu_custom_call.1} parent=203 // pred_check_branch
          %1440 = sbr.rel (%p1438) target = $region216
        $region215: #{tpu_custom_call.1} parent=203 // pred_region
          %1441 = dma.done [#allocation6], 16
        $region216: #{tpu_custom_call.1} parent=203 // pred_fallthru
          _
        // Predicated region
        $region217: #{tpu_custom_call.1} parent=203 // pred_check
          %p1442 = pneg %p340
        $region218: #{tpu_custom_call.1} parent=203 // pred_check_branch
          %1444 = sbr.rel (%p1442) target = $region220
        $region219: #{tpu_custom_call.1} parent=203 // pred_region
          %1445 = dma.done [#allocation9], 16
        $region220: #{tpu_custom_call.1} parent=203 // pred_fallthru
          _
        // Predicated region
        $region221: #{tpu_custom_call.1} parent=203 // pred_check
          %p1446 = pneg %p382
        $region222: #{tpu_custom_call.1} parent=203 // pred_check_branch
          %1448 = sbr.rel (%p1446) target = $region224
        $region223: #{tpu_custom_call.1} parent=203 // pred_region
          %1449 = dma.done [#allocation9], 16
        $region224: #{tpu_custom_call.1} parent=203 // pred_fallthru
          _
        // Predicated region
        $region225: #{tpu_custom_call.1} parent=203 // pred_check
          %p1450 = pneg %p424
        $region226: #{tpu_custom_call.1} parent=203 // pred_check_branch
          %1452 = sbr.rel (%p1450) target = $region228
        $region227: #{tpu_custom_call.1} parent=203 // pred_region
          %1453 = dma.done [#allocation12], 16
        $region228: #{tpu_custom_call.1} parent=203 // pred_fallthru
          _
        // Predicated region
        $region229: #{tpu_custom_call.1} parent=203 // pred_check
          %p1454 = pneg %p466
        $region230: #{tpu_custom_call.1} parent=203 // pred_check_branch
          %1456 = sbr.rel (%p1454) target = $region232
        $region231: #{tpu_custom_call.1} parent=203 // pred_region
          %1457 = dma.done [#allocation12], 16
        $region232: #{tpu_custom_call.1} parent=203 // pred_fallthru
          _
        // Predicated region
        $region233: #{tpu_custom_call.1} parent=203 // pred_check
          %p1458 = pneg %p487
        $region234: #{tpu_custom_call.1} parent=203 // pred_check_branch
          %1460 = sbr.rel (%p1458) target = $region236
        $region235: #{tpu_custom_call.1} parent=203 // pred_region
          %1461 = dma.done [#allocation15], 128
        $region236: #{tpu_custom_call.1} parent=203 // pred_fallthru
          _
        // Predicated region
        $region237: #{tpu_custom_call.1} parent=203 // pred_check
          %p1462 = pneg %p508
        $region238: #{tpu_custom_call.1} parent=203 // pred_check_branch
          %1464 = sbr.rel (%p1462) target = $region240
        $region239: #{tpu_custom_call.1} parent=203 // pred_region
          %1465 = dma.done [#allocation15], 16
        $region240: #{tpu_custom_call.1} parent=203 // pred_fallthru
          _
        // Predicated region
        $region241: #{tpu_custom_call.1} parent=203 // pred_check
          %p1466 = pneg %p550
        $region242: #{tpu_custom_call.1} parent=203 // pred_check_branch
          %1468 = sbr.rel (%p1466) target = $region244
        $region243: #{tpu_custom_call.1} parent=203 // pred_region
          %1469 = dma.done [#allocation18], 16
        $region244: #{tpu_custom_call.1} parent=203 // pred_fallthru
          _
        // Predicated region
        $region245: #{tpu_custom_call.1} parent=203 // pred_check
          %p1470 = pneg %p592
        $region246: #{tpu_custom_call.1} parent=203 // pred_check_branch
          %1472 = sbr.rel (%p1470) target = $region248
        $region247: #{tpu_custom_call.1} parent=203 // pred_region
          %1473 = dma.done [#allocation18], 16
        $region248: #{tpu_custom_call.1} parent=203 // pred_fallthru
          _
        // Predicated region
        $region249: #{tpu_custom_call.1} parent=203 // pred_check
          %p1474 = pneg %p634
        $region250: #{tpu_custom_call.1} parent=203 // pred_check_branch
          %1476 = sbr.rel (%p1474) target = $region252
        $region251: #{tpu_custom_call.1} parent=203 // pred_region
          %1477 = dma.done [#allocation21], 16
        $region252: #{tpu_custom_call.1} parent=203 // pred_fallthru
          _
        // Predicated region
        $region253: #{tpu_custom_call.1} parent=203 // pred_check
          %p1478 = pneg %p676
        $region254: #{tpu_custom_call.1} parent=203 // pred_check_branch
          %1480 = sbr.rel (%p1478) target = $region256
        $region255: #{tpu_custom_call.1} parent=203 // pred_region
          %1481 = dma.done [#allocation21], 16
        $region256: #{tpu_custom_call.1} parent=203 // pred_fallthru
          _
        // Predicated region
        $region257: #{tpu_custom_call.1} parent=203 // pred_check
          %p1482 = pneg %p718
        $region258: #{tpu_custom_call.1} parent=203 // pred_check_branch
          %1484 = sbr.rel (%p1482) target = $region260
        $region259: #{tpu_custom_call.1} parent=203 // pred_region
          %1485 = dma.done [#allocation24], 16
        $region260: #{tpu_custom_call.1} parent=203 // pred_fallthru
          _
        // Predicated region
        $region261: #{tpu_custom_call.1} parent=203 // pred_check
          %p1486 = pneg %p760
        $region262: #{tpu_custom_call.1} parent=203 // pred_check_branch
          %1488 = sbr.rel (%p1486) target = $region264
        $region263: #{tpu_custom_call.1} parent=203 // pred_region
          %1489 = dma.done [#allocation24], 16
        $region264: #{tpu_custom_call.1} parent=203 // pred_fallthru
          _
        // Predicated region
        $region265: #{tpu_custom_call.1} parent=203 // pred_check
          %p1490 = pneg %p802
        $region266: #{tpu_custom_call.1} parent=203 // pred_check_branch
          %1492 = sbr.rel (%p1490) target = $region268
        $region267: #{tpu_custom_call.1} parent=203 // pred_region
          %1493 = dma.done [#allocation27], 16
        $region268: #{tpu_custom_call.1} parent=203 // pred_fallthru
          _
        %p1494 = scmp.lt.s32.totalorder %s115, 1
        %s1495 = scalar_select %p1494, %s115, 1
        %s1496 = smul.addr %s1495, 8
        %s1497 = scalar_lea.vmem %s1, %s1496
        %p1498 = pneg %p136
        %p1499 = pneg %p133
        %p1500 = scmp.lt.s32.totalorder %s115, 1
        %s1501 = scalar_select %p1500, %s115, 1
        %s1502 = smul.addr %s1501, 8
        %s1503 = scalar_lea.vmem %s3, %s1502
        %p1504 = pneg %p162
        %p1505 = pneg %p159
        %p1506 = scmp.lt.s32.totalorder %s115, 1
        %s1507 = scalar_select %p1506, %s115, 1
        %s1508 = smul.addr %s1507, 8
        %s1509 = scalar_lea.vmem %s5, %s1508
        %p1510 = pneg %p188
        %p1511 = pneg %p185
        %p1512 = scmp.lt.s32.totalorder %s115, 1
        %s1513 = scalar_select %p1512, %s115, 1
        %s1514 = smul.addr %s1513, 8
        %s1515 = scalar_lea.vmem %s7, %s1514
        %p1516 = pneg %p214
        %p1517 = pneg %p211
        %p1518 = pneg %p235
        %p1519 = pneg %p232
        %p1520 = pneg %p256
        %p1521 = pneg %p253
        %p1522 = pneg %p277
        %p1523 = pneg %p274
        %p1524 = pneg %p298
        %p1525 = pneg %p295
        %p1526 = pneg %p319
        %p1527 = pneg %p316
        %p1528 = pneg %p340
        %p1529 = pneg %p337
        %p1530 = pneg %p361
        %p1531 = pneg %p358
        %p1532 = pneg %p382
        %p1533 = pneg %p379
        %p1534 = pneg %p403
        %p1535 = pneg %p400
        %p1536 = pneg %p424
        %p1537 = pneg %p421
        %p1538 = pneg %p445
        %p1539 = pneg %p442
        %p1540 = pneg %p466
        %p1541 = pneg %p463
        %p1542 = pneg %p487
        %p1543 = pneg %p484
        %p1544 = pneg %p508
        %p1545 = pneg %p505
        %p1546 = pneg %p529
        %p1547 = pneg %p526
        %p1548 = pneg %p550
        %p1549 = pneg %p547
        %p1550 = pneg %p571
        %p1551 = pneg %p568
        %p1552 = pneg %p592
        %p1553 = pneg %p589
        %p1554 = pneg %p613
        %p1555 = pneg %p610
        %p1556 = pneg %p634
        %p1557 = pneg %p631
        %p1558 = pneg %p655
        %p1559 = pneg %p652
        %p1560 = pneg %p676
        %p1561 = pneg %p673
        %p1562 = pneg %p697
        %p1563 = pneg %p694
        %p1564 = pneg %p718
        %p1565 = pneg %p715
        %p1566 = pneg %p739
        %p1567 = pneg %p736
        %p1568 = pneg %p760
        %p1569 = pneg %p757
        %p1570 = pneg %p781
        %p1571 = pneg %p778
        %p1572 = pneg %p802
        %p1573 = pneg %p799
        %p1574 = pneg %p823
        %p1575 = pneg %p820
        %p1576 = pneg %p844
        %p1577 = pneg %p841
        %p1578 = pneg %p865
        %p1579 = pneg %p862
        %p1580 = pneg %p886
        %p1581 = pneg %p883
        %p1582 = pneg %p907
        %p1583 = pneg %p904
        %p1584 = pneg %p928
        %p1585 = pneg %p925
        %p1586 = pneg %p949
        %p1587 = pneg %p946
        %p1588 = pneg %p970
        %p1589 = pneg %p967
        %p1590 = pneg %p991
        %p1591 = pneg %p988
        %p1592 = pneg %p1012
        %p1593 = pneg %p1009
        %p1594 = pneg %p1033
        %p1595 = pneg %p1030
        %p1596 = pneg %p1054
        %p1597 = pneg %p1051
        %p1598 = pneg %p1075
        %p1599 = pneg %p1072
        %p1600 = pneg %p1096
        %p1601 = pneg %p1093
        %p1602 = pneg %p1122
        %p1603 = pneg %p1119
        %p1604 = scmp.lt.s32.totalorder %s115, 1
        %s1605 = scalar_select %p1604, %s115, 1
        %s1606 = scalar_lea.vmem %s93, %s1605
        %p1607 = scmp.lt.s32.totalorder %s115, 1
        %s1608 = scalar_select %p1607, %s115, 1
        %s1609 = smul.addr %s1608, 8
        %s1610 = scalar_lea.vmem %s1, %s1609
        %p1611 = scmp.lt.s32.totalorder %s115, 1
        %s1612 = scalar_select %p1611, %s115, 1
        %s1613 = smul.addr %s1612, 8
        %s1614 = scalar_lea.vmem %s3, %s1613
        %p1615 = scmp.lt.s32.totalorder %s115, 1
        %s1616 = scalar_select %p1615, %s115, 1
        %s1617 = smul.addr %s1616, 8
        %s1618 = scalar_lea.vmem %s5, %s1617
        %p1619 = scmp.lt.s32.totalorder %s115, 1
        %s1620 = scalar_select %p1619, %s115, 1
        %s1621 = smul.addr %s1620, 8
        %s1622 = scalar_lea.vmem %s7, %s1621
        %p1623 = scmp.lt.s32.totalorder %s115, 1
        %s1624 = scalar_select %p1623, %s115, 1
        %s1625 = scalar_lea.vmem %s93, %s1624
        %v1626 = vld [vmem:[%s1610] sm:$0xff]
        %v1627 = vld [vmem:[%s1618] sm:$0xff]
        %v1628 = vld [vmem:[#allocation3] sm:$0x3f]
        %v1629 = vld [vmem:[#allocation5] sm:$0x1]
        %v1630 = vld [vmem:[%s13] sm:$0xff]
        %v1631 = vld [vmem:[%s13 + $0x8] sm:$0xff]
        %v1632 = vld [vmem:[#allocation7] sm:$0x1]
        %v1633 = vld [vmem:[%s17] sm:$0xff]
        %v1634 = vld [vmem:[%s17 + $0x8] sm:$0xff]
        %v1635 = vld [vmem:[#allocation8] sm:$0x1]
        %v1636 = vld [vmem:[%s21] sm:$0xff]
        %v1637 = vld [vmem:[%s21 + $0x8] sm:$0xff]
        %v1638 = vld [vmem:[#allocation10] sm:$0x1]
        %v1639 = vld [vmem:[%s25] sm:$0xff]
        %v1640 = vld [vmem:[%s25 + $0x8] sm:$0xff]
        %v1641 = vld [vmem:[#allocation11] sm:$0x1]
        %v1642 = vld [vmem:[%s29] sm:$0xff]
        %v1643 = vld [vmem:[%s29 + $0x8] sm:$0xff]
        %v1644 = vld [vmem:[#allocation13] sm:$0x1]
        %v1646 = vlaneseq
        %v1647 = vshrl.u32 %v1646, 7
        %v1648 = vsub.s32 0, %v1647
        %v1649 = vrot.slane %v1629, %v1648
        %vm1651 = vcmask 48128
        %v1653 = vsel %vm1651, %v1626, 0
        %vm1655 = vcmask 1045504
        %v1657 = vsel %vm1655, %v1628, 0
        %1659 = vmatprep.subr.mxu0 0.0
        %1660 = vmatpush1.msra.mxu0 %v1657
        %1661 = vmatprep.subr.mxu0 0.0
        %1662 = vmatpush1.msra.mxu0 0.0
        %1663 = vmatprep.subr.mxu0 0.0
        %1664 = vmatpush1.msra.mxu0 0.0
        %1665 = vmatprep.subr.mxu0 0.0
        %1666 = vmatpush1.msra.mxu0 0.0
        %1667 = vmatprep.subr.mxu0 0.0
        %1668 = vmatpush1.msra.mxu0 0.0
        %1669 = vmatprep.subr.mxu0 0.0
        %1670 = vmatpush1.msra.mxu0 0.0
        %1671 = vmatprep.subr.mxu0 0.0
        %1672 = vmatpush1.msra.mxu0 0.0
        %1673 = vmatprep.subr.mxu0 0.0
        %1674 = vmatpush1.msra.mxu0 0.0
        %1675 = vmatprep.subr.mxu0 0.0
        %1676 = vmatpush1.msra.mxu0 0.0
        %1677 = vmatprep.subr.mxu0 0.0
        %1678 = vmatpush1.msra.mxu0 0.0
        %1679 = vmatprep.subr.mxu0 0.0
        %1680 = vmatpush1.msra.mxu0 0.0
        %1681 = vmatprep.subr.mxu0 0.0
        %1682 = vmatpush1.msra.mxu0 0.0
        %1683 = vmatprep.subr.mxu0 0.0
        %1684 = vmatpush1.msra.mxu0 0.0
        %1685 = vmatprep.subr.mxu0 0.0
        %1686 = vmatpush1.msra.mxu0 0.0
        %1687 = vmatprep.subr.mxu0 0.0
        %1688 = vmatpush1.msra.mxu0 0.0
        %1689 = vmatprep.subr.mxu0 0.0
        %1690 = vmatpush1.msra.mxu0 0.0
        %1691 = vmatprep.subr.mxu0 0.0
        %1692 = vmatpush1.msra.mxu0 0.0
        %1693 = vmatprep.subr.mxu0 0.0
        %1694 = vmatpush1.msra.mxu0 0.0
        %1695 = vmatprep.subr.mxu0 0.0
        %1696 = vmatpush1.msra.mxu0 0.0
        %1697 = vmatprep.subr.mxu0 0.0
        %1698 = vmatpush1.msra.mxu0 0.0
        %1699 = vmatprep.subr.mxu0 0.0
        %1700 = vmatpush1.msra.mxu0 0.0
        %1701 = vmatprep.subr.mxu0 0.0
        %1702 = vmatpush1.msra.mxu0 0.0
        %1703 = vmatprep.subr.mxu0 0.0
        %1704 = vmatpush1.msra.mxu0 0.0
        %1705 = vmatprep.subr.mxu0 0.0
        %1706 = vmatpush1.msra.mxu0 0.0
        %1707 = vmatprep.subr.mxu0 0.0
        %1708 = vmatpush1.msra.mxu0 0.0
        %1709 = vmatprep.subr.mxu0 0.0
        %1710 = vmatpush1.msra.mxu0 0.0
        %1711 = vmatprep.subr.mxu0 0.0
        %1712 = vmatpush1.msra.mxu0 0.0
        %1713 = vmatprep.subr.mxu0 0.0
        %1714 = vmatpush1.msra.mxu0 0.0
        %1715 = vmatprep.subr.mxu0 0.0
        %1716 = vmatpush1.msra.mxu0 0.0
        %1717 = vmatprep.subr.mxu0 0.0
        %1718 = vmatpush1.msra.mxu0 0.0
        %1719 = vmatprep.subr.mxu0 0.0
        %1720 = vmatpush1.msra.mxu0 0.0
        %1721 = vmatprep.subr.mxu0 0.0
        %1722 = vmatpush1.msra.mxu0 0.0
        %1723 = vmatprep.mubr.f32.mxu0 0.0
        %1724 = vmatmul.mubr.f32.gmra.mrb[0].mxu0 %v1653
        %v1725 = vpop.f32.mrb[0].mxu0
        %v1726 = vadd.f32 %v1649, %v1725
        %v1727 = vpop.f32.mrb[0].mxu0
        %1728 = vdwg.mxu0
        %vm1729 = vcmp.gt.f32.partialorder %v1726, 0.0
        %v1730 = vmul.f32 %v1726, 0.01
        %v1731 = vsel %vm1729, %v1726, %v1730
        %v1733 = vlaneseq
        %v1734 = vshrl.u32 %v1733, 7
        %v1735 = vsub.s32 0, %v1734
        %v1736 = vrot.slane %v1632, %v1735
        %vm1738 = vcmask 130048
        %v1740 = vsel %vm1738, %v1731, 0
        %1742 = vmatprep.subr.mxu0 0.0
        %1743 = vmatpush1.msra.mxu0 %v1630
        %1744 = vmatprep.subr.mxu0 0.0
        %1745 = vmatpush1.msra.mxu0 %v1631
        %1746 = vmatprep.subr.mxu0 0.0
        %1747 = vmatpush1.msra.mxu0 0.0
        %1748 = vmatprep.subr.mxu0 0.0
        %1749 = vmatpush1.msra.mxu0 0.0
        %1750 = vmatprep.subr.mxu0 0.0
        %1751 = vmatpush1.msra.mxu0 0.0
        %1752 = vmatprep.subr.mxu0 0.0
        %1753 = vmatpush1.msra.mxu0 0.0
        %1754 = vmatprep.subr.mxu0 0.0
        %1755 = vmatpush1.msra.mxu0 0.0
        %1756 = vmatprep.subr.mxu0 0.0
        %1757 = vmatpush1.msra.mxu0 0.0
        %1758 = vmatprep.subr.mxu0 0.0
        %1759 = vmatpush1.msra.mxu0 0.0
        %1760 = vmatprep.subr.mxu0 0.0
        %1761 = vmatpush1.msra.mxu0 0.0
        %1762 = vmatprep.subr.mxu0 0.0
        %1763 = vmatpush1.msra.mxu0 0.0
        %1764 = vmatprep.subr.mxu0 0.0
        %1765 = vmatpush1.msra.mxu0 0.0
        %1766 = vmatprep.subr.mxu0 0.0
        %1767 = vmatpush1.msra.mxu0 0.0
        %1768 = vmatprep.subr.mxu0 0.0
        %1769 = vmatpush1.msra.mxu0 0.0
        %1770 = vmatprep.subr.mxu0 0.0
        %1771 = vmatpush1.msra.mxu0 0.0
        %1772 = vmatprep.subr.mxu0 0.0
        %1773 = vmatpush1.msra.mxu0 0.0
        %1774 = vmatprep.subr.mxu0 0.0
        %1775 = vmatpush1.msra.mxu0 0.0
        %1776 = vmatprep.subr.mxu0 0.0
        %1777 = vmatpush1.msra.mxu0 0.0
        %1778 = vmatprep.subr.mxu0 0.0
        %1779 = vmatpush1.msra.mxu0 0.0
        %1780 = vmatprep.subr.mxu0 0.0
        %1781 = vmatpush1.msra.mxu0 0.0
        %1782 = vmatprep.subr.mxu0 0.0
        %1783 = vmatpush1.msra.mxu0 0.0
        %1784 = vmatprep.subr.mxu0 0.0
        %1785 = vmatpush1.msra.mxu0 0.0
        %1786 = vmatprep.subr.mxu0 0.0
        %1787 = vmatpush1.msra.mxu0 0.0
        %1788 = vmatprep.subr.mxu0 0.0
        %1789 = vmatpush1.msra.mxu0 0.0
        %1790 = vmatprep.subr.mxu0 0.0
        %1791 = vmatpush1.msra.mxu0 0.0
        %1792 = vmatprep.subr.mxu0 0.0
        %1793 = vmatpush1.msra.mxu0 0.0
        %1794 = vmatprep.subr.mxu0 0.0
        %1795 = vmatpush1.msra.mxu0 0.0
        %1796 = vmatprep.subr.mxu0 0.0
        %1797 = vmatpush1.msra.mxu0 0.0
        %1798 = vmatprep.subr.mxu0 0.0
        %1799 = vmatpush1.msra.mxu0 0.0
        %1800 = vmatprep.subr.mxu0 0.0
        %1801 = vmatpush1.msra.mxu0 0.0
        %1802 = vmatprep.subr.mxu0 0.0
        %1803 = vmatpush1.msra.mxu0 0.0
        %1804 = vmatprep.subr.mxu0 0.0
        %1805 = vmatpush1.msra.mxu0 0.0
        %1806 = vmatprep.mubr.f32.mxu0 0.0
        %1807 = vmatmul.mubr.f32.gmra.mrb[0].mxu0 %v1740
        %v1808 = vpop.f32.mrb[0].mxu0
        %v1809 = vadd.f32 %v1736, %v1808
        %v1810 = vpop.f32.mrb[0].mxu0
        %1811 = vdwg.mxu0
        %vm1812 = vcmp.gt.f32.partialorder %v1809, 0.0
        %v1813 = vmul.f32 %v1809, 0.01
        %v1814 = vsel %vm1812, %v1809, %v1813
        %v1816 = vlaneseq
        %v1817 = vshrl.u32 %v1816, 7
        %v1818 = vsub.s32 0, %v1817
        %v1819 = vrot.slane %v1635, %v1818
        %v1822 = vsel %vm1738, %v1814, 0
        %1824 = vmatprep.subr.mxu0 0.0
        %1825 = vmatpush1.msra.mxu0 %v1633
        %1826 = vmatprep.subr.mxu0 0.0
        %1827 = vmatpush1.msra.mxu0 %v1634
        %1828 = vmatprep.subr.mxu0 0.0
        %1829 = vmatpush1.msra.mxu0 0.0
        %1830 = vmatprep.subr.mxu0 0.0
        %1831 = vmatpush1.msra.mxu0 0.0
        %1832 = vmatprep.subr.mxu0 0.0
        %1833 = vmatpush1.msra.mxu0 0.0
        %1834 = vmatprep.subr.mxu0 0.0
        %1835 = vmatpush1.msra.mxu0 0.0
        %1836 = vmatprep.subr.mxu0 0.0
        %1837 = vmatpush1.msra.mxu0 0.0
        %1838 = vmatprep.subr.mxu0 0.0
        %1839 = vmatpush1.msra.mxu0 0.0
        %1840 = vmatprep.subr.mxu0 0.0
        %1841 = vmatpush1.msra.mxu0 0.0
        %1842 = vmatprep.subr.mxu0 0.0
        %1843 = vmatpush1.msra.mxu0 0.0
        %1844 = vmatprep.subr.mxu0 0.0
        %1845 = vmatpush1.msra.mxu0 0.0
        %1846 = vmatprep.subr.mxu0 0.0
        %1847 = vmatpush1.msra.mxu0 0.0
        %1848 = vmatprep.subr.mxu0 0.0
        %1849 = vmatpush1.msra.mxu0 0.0
        %1850 = vmatprep.subr.mxu0 0.0
        %1851 = vmatpush1.msra.mxu0 0.0
        %1852 = vmatprep.subr.mxu0 0.0
        %1853 = vmatpush1.msra.mxu0 0.0
        %1854 = vmatprep.subr.mxu0 0.0
        %1855 = vmatpush1.msra.mxu0 0.0
        %1856 = vmatprep.subr.mxu0 0.0
        %1857 = vmatpush1.msra.mxu0 0.0
        %1858 = vmatprep.subr.mxu0 0.0
        %1859 = vmatpush1.msra.mxu0 0.0
        %1860 = vmatprep.subr.mxu0 0.0
        %1861 = vmatpush1.msra.mxu0 0.0
        %1862 = vmatprep.subr.mxu0 0.0
        %1863 = vmatpush1.msra.mxu0 0.0
        %1864 = vmatprep.subr.mxu0 0.0
        %1865 = vmatpush1.msra.mxu0 0.0
        %1866 = vmatprep.subr.mxu0 0.0
        %1867 = vmatpush1.msra.mxu0 0.0
        %1868 = vmatprep.subr.mxu0 0.0
        %1869 = vmatpush1.msra.mxu0 0.0
        %1870 = vmatprep.subr.mxu0 0.0
        %1871 = vmatpush1.msra.mxu0 0.0
        %1872 = vmatprep.subr.mxu0 0.0
        %1873 = vmatpush1.msra.mxu0 0.0
        %1874 = vmatprep.subr.mxu0 0.0
        %1875 = vmatpush1.msra.mxu0 0.0
        %1876 = vmatprep.subr.mxu0 0.0
        %1877 = vmatpush1.msra.mxu0 0.0
        %1878 = vmatprep.subr.mxu0 0.0
        %1879 = vmatpush1.msra.mxu0 0.0
        %1880 = vmatprep.subr.mxu0 0.0
        %1881 = vmatpush1.msra.mxu0 0.0
        %1882 = vmatprep.subr.mxu0 0.0
        %1883 = vmatpush1.msra.mxu0 0.0
        %1884 = vmatprep.subr.mxu0 0.0
        %1885 = vmatpush1.msra.mxu0 0.0
        %1886 = vmatprep.subr.mxu0 0.0
        %1887 = vmatpush1.msra.mxu0 0.0
        %1888 = vmatprep.mubr.f32.mxu0 0.0
        %1889 = vmatmul.mubr.f32.gmra.mrb[0].mxu0 %v1822
        %v1890 = vpop.f32.mrb[0].mxu0
        %v1891 = vadd.f32 %v1819, %v1890
        %v1892 = vpop.f32.mrb[0].mxu0
        %1893 = vdwg.mxu0
        %vm1894 = vcmp.gt.f32.partialorder %v1891, 0.0
        %v1895 = vmul.f32 %v1891, 0.01
        %v1896 = vsel %vm1894, %v1891, %v1895
        %v1898 = vlaneseq
        %v1899 = vshrl.u32 %v1898, 7
        %v1900 = vsub.s32 0, %v1899
        %v1901 = vrot.slane %v1638, %v1900
        %v1904 = vsel %vm1738, %v1896, 0
        %1906 = vmatprep.subr.mxu0 0.0
        %1907 = vmatpush1.msra.mxu0 %v1636
        %1908 = vmatprep.subr.mxu0 0.0
        %1909 = vmatpush1.msra.mxu0 %v1637
        %1910 = vmatprep.subr.mxu0 0.0
        %1911 = vmatpush1.msra.mxu0 0.0
        %1912 = vmatprep.subr.mxu0 0.0
        %1913 = vmatpush1.msra.mxu0 0.0
        %1914 = vmatprep.subr.mxu0 0.0
        %1915 = vmatpush1.msra.mxu0 0.0
        %1916 = vmatprep.subr.mxu0 0.0
        %1917 = vmatpush1.msra.mxu0 0.0
        %1918 = vmatprep.subr.mxu0 0.0
        %1919 = vmatpush1.msra.mxu0 0.0
        %1920 = vmatprep.subr.mxu0 0.0
        %1921 = vmatpush1.msra.mxu0 0.0
        %1922 = vmatprep.subr.mxu0 0.0
        %1923 = vmatpush1.msra.mxu0 0.0
        %1924 = vmatprep.subr.mxu0 0.0
        %1925 = vmatpush1.msra.mxu0 0.0
        %1926 = vmatprep.subr.mxu0 0.0
        %1927 = vmatpush1.msra.mxu0 0.0
        %1928 = vmatprep.subr.mxu0 0.0
        %1929 = vmatpush1.msra.mxu0 0.0
        %1930 = vmatprep.subr.mxu0 0.0
        %1931 = vmatpush1.msra.mxu0 0.0
        %1932 = vmatprep.subr.mxu0 0.0
        %1933 = vmatpush1.msra.mxu0 0.0
        %1934 = vmatprep.subr.mxu0 0.0
        %1935 = vmatpush1.msra.mxu0 0.0
        %1936 = vmatprep.subr.mxu0 0.0
        %1937 = vmatpush1.msra.mxu0 0.0
        %1938 = vmatprep.subr.mxu0 0.0
        %1939 = vmatpush1.msra.mxu0 0.0
        %1940 = vmatprep.subr.mxu0 0.0
        %1941 = vmatpush1.msra.mxu0 0.0
        %1942 = vmatprep.subr.mxu0 0.0
        %1943 = vmatpush1.msra.mxu0 0.0
        %1944 = vmatprep.subr.mxu0 0.0
        %1945 = vmatpush1.msra.mxu0 0.0
        %1946 = vmatprep.subr.mxu0 0.0
        %1947 = vmatpush1.msra.mxu0 0.0
        %1948 = vmatprep.subr.mxu0 0.0
        %1949 = vmatpush1.msra.mxu0 0.0
        %1950 = vmatprep.subr.mxu0 0.0
        %1951 = vmatpush1.msra.mxu0 0.0
        %1952 = vmatprep.subr.mxu0 0.0
        %1953 = vmatpush1.msra.mxu0 0.0
        %1954 = vmatprep.subr.mxu0 0.0
        %1955 = vmatpush1.msra.mxu0 0.0
        %1956 = vmatprep.subr.mxu0 0.0
        %1957 = vmatpush1.msra.mxu0 0.0
        %1958 = vmatprep.subr.mxu0 0.0
        %1959 = vmatpush1.msra.mxu0 0.0
        %1960 = vmatprep.subr.mxu0 0.0
        %1961 = vmatpush1.msra.mxu0 0.0
        %1962 = vmatprep.subr.mxu0 0.0
        %1963 = vmatpush1.msra.mxu0 0.0
        %1964 = vmatprep.subr.mxu0 0.0
        %1965 = vmatpush1.msra.mxu0 0.0
        %1966 = vmatprep.subr.mxu0 0.0
        %1967 = vmatpush1.msra.mxu0 0.0
        %1968 = vmatprep.subr.mxu0 0.0
        %1969 = vmatpush1.msra.mxu0 0.0
        %1970 = vmatprep.mubr.f32.mxu0 0.0
        %1971 = vmatmul.mubr.f32.gmra.mrb[0].mxu0 %v1904
        %v1972 = vpop.f32.mrb[0].mxu0
        %v1973 = vadd.f32 %v1901, %v1972
        %v1974 = vpop.f32.mrb[0].mxu0
        %1975 = vdwg.mxu0
        %vm1976 = vcmp.gt.f32.partialorder %v1973, 0.0
        %v1977 = vmul.f32 %v1973, 0.01
        %v1978 = vsel %vm1976, %v1973, %v1977
        %v1980 = vlaneseq
        %v1981 = vshrl.u32 %v1980, 7
        %v1982 = vsub.s32 0, %v1981
        %v1983 = vrot.slane %v1641, %v1982
        %v1986 = vsel %vm1738, %v1978, 0
        %1988 = vmatprep.subr.mxu0 0.0
        %1989 = vmatpush1.msra.mxu0 %v1639
        %1990 = vmatprep.subr.mxu0 0.0
        %1991 = vmatpush1.msra.mxu0 %v1640
        %1992 = vmatprep.subr.mxu0 0.0
        %1993 = vmatpush1.msra.mxu0 0.0
        %1994 = vmatprep.subr.mxu0 0.0
        %1995 = vmatpush1.msra.mxu0 0.0
        %1996 = vmatprep.subr.mxu0 0.0
        %1997 = vmatpush1.msra.mxu0 0.0
        %1998 = vmatprep.subr.mxu0 0.0
        %1999 = vmatpush1.msra.mxu0 0.0
        %2000 = vmatprep.subr.mxu0 0.0
        %2001 = vmatpush1.msra.mxu0 0.0
        %2002 = vmatprep.subr.mxu0 0.0
        %2003 = vmatpush1.msra.mxu0 0.0
        %2004 = vmatprep.subr.mxu0 0.0
        %2005 = vmatpush1.msra.mxu0 0.0
        %2006 = vmatprep.subr.mxu0 0.0
        %2007 = vmatpush1.msra.mxu0 0.0
        %2008 = vmatprep.subr.mxu0 0.0
        %2009 = vmatpush1.msra.mxu0 0.0
        %2010 = vmatprep.subr.mxu0 0.0
        %2011 = vmatpush1.msra.mxu0 0.0
        %2012 = vmatprep.subr.mxu0 0.0
        %2013 = vmatpush1.msra.mxu0 0.0
        %2014 = vmatprep.subr.mxu0 0.0
        %2015 = vmatpush1.msra.mxu0 0.0
        %2016 = vmatprep.subr.mxu0 0.0
        %2017 = vmatpush1.msra.mxu0 0.0
        %2018 = vmatprep.subr.mxu0 0.0
        %2019 = vmatpush1.msra.mxu0 0.0
        %2020 = vmatprep.subr.mxu0 0.0
        %2021 = vmatpush1.msra.mxu0 0.0
        %2022 = vmatprep.subr.mxu0 0.0
        %2023 = vmatpush1.msra.mxu0 0.0
        %2024 = vmatprep.subr.mxu0 0.0
        %2025 = vmatpush1.msra.mxu0 0.0
        %2026 = vmatprep.subr.mxu0 0.0
        %2027 = vmatpush1.msra.mxu0 0.0
        %2028 = vmatprep.subr.mxu0 0.0
        %2029 = vmatpush1.msra.mxu0 0.0
        %2030 = vmatprep.subr.mxu0 0.0
        %2031 = vmatpush1.msra.mxu0 0.0
        %2032 = vmatprep.subr.mxu0 0.0
        %2033 = vmatpush1.msra.mxu0 0.0
        %2034 = vmatprep.subr.mxu0 0.0
        %2035 = vmatpush1.msra.mxu0 0.0
        %2036 = vmatprep.subr.mxu0 0.0
        %2037 = vmatpush1.msra.mxu0 0.0
        %2038 = vmatprep.subr.mxu0 0.0
        %2039 = vmatpush1.msra.mxu0 0.0
        %2040 = vmatprep.subr.mxu0 0.0
        %2041 = vmatpush1.msra.mxu0 0.0
        %2042 = vmatprep.subr.mxu0 0.0
        %2043 = vmatpush1.msra.mxu0 0.0
        %2044 = vmatprep.subr.mxu0 0.0
        %2045 = vmatpush1.msra.mxu0 0.0
        %2046 = vmatprep.subr.mxu0 0.0
        %2047 = vmatpush1.msra.mxu0 0.0
        %2048 = vmatprep.subr.mxu0 0.0
        %2049 = vmatpush1.msra.mxu0 0.0
        %2050 = vmatprep.subr.mxu0 0.0
        %2051 = vmatpush1.msra.mxu0 0.0
        %2052 = vmatprep.mubr.f32.mxu0 0.0
        %2053 = vmatmul.mubr.f32.gmra.mrb[0].mxu0 %v1986
        %v2054 = vpop.f32.mrb[0].mxu0
        %v2055 = vadd.f32 %v1983, %v2054
        %v2056 = vpop.f32.mrb[0].mxu0
        %2057 = vdwg.mxu0
        %vm2058 = vcmp.gt.f32.partialorder %v2055, 0.0
        %v2059 = vmul.f32 %v2055, 0.01
        %v2060 = vsel %vm2058, %v2055, %v2059
        %v2062 = vlaneseq
        %v2063 = vshrl.u32 %v2062, 7
        %v2064 = vsub.s32 0, %v2063
        %v2065 = vrot.slane %v1644, %v2064
        %v2068 = vsel %vm1738, %v2060, 0
        %2070 = vmatprep.subr.mxu0 0.0
        %2071 = vmatpush1.msra.mxu0 %v1642
        %2072 = vmatprep.subr.mxu0 0.0
        %2073 = vmatpush1.msra.mxu0 %v1643
        %2074 = vmatprep.subr.mxu0 0.0
        %2075 = vmatpush1.msra.mxu0 0.0
        %2076 = vmatprep.subr.mxu0 0.0
        %2077 = vmatpush1.msra.mxu0 0.0
        %2078 = vmatprep.subr.mxu0 0.0
        %2079 = vmatpush1.msra.mxu0 0.0
        %2080 = vmatprep.subr.mxu0 0.0
        %2081 = vmatpush1.msra.mxu0 0.0
        %2082 = vmatprep.subr.mxu0 0.0
        %2083 = vmatpush1.msra.mxu0 0.0
        %2084 = vmatprep.subr.mxu0 0.0
        %2085 = vmatpush1.msra.mxu0 0.0
        %2086 = vmatprep.subr.mxu0 0.0
        %2087 = vmatpush1.msra.mxu0 0.0
        %2088 = vmatprep.subr.mxu0 0.0
        %2089 = vmatpush1.msra.mxu0 0.0
        %2090 = vmatprep.subr.mxu0 0.0
        %2091 = vmatpush1.msra.mxu0 0.0
        %2092 = vmatprep.subr.mxu0 0.0
        %2093 = vmatpush1.msra.mxu0 0.0
        %2094 = vmatprep.subr.mxu0 0.0
        %2095 = vmatpush1.msra.mxu0 0.0
        %2096 = vmatprep.subr.mxu0 0.0
        %2097 = vmatpush1.msra.mxu0 0.0
        %2098 = vmatprep.subr.mxu0 0.0
        %2099 = vmatpush1.msra.mxu0 0.0
        %2100 = vmatprep.subr.mxu0 0.0
        %2101 = vmatpush1.msra.mxu0 0.0
        %2102 = vmatprep.subr.mxu0 0.0
        %2103 = vmatpush1.msra.mxu0 0.0
        %2104 = vmatprep.subr.mxu0 0.0
        %2105 = vmatpush1.msra.mxu0 0.0
        %2106 = vmatprep.subr.mxu0 0.0
        %2107 = vmatpush1.msra.mxu0 0.0
        %2108 = vmatprep.subr.mxu0 0.0
        %2109 = vmatpush1.msra.mxu0 0.0
        %2110 = vmatprep.subr.mxu0 0.0
        %2111 = vmatpush1.msra.mxu0 0.0
        %2112 = vmatprep.subr.mxu0 0.0
        %2113 = vmatpush1.msra.mxu0 0.0
        %2114 = vmatprep.subr.mxu0 0.0
        %2115 = vmatpush1.msra.mxu0 0.0
        %2116 = vmatprep.subr.mxu0 0.0
        %2117 = vmatpush1.msra.mxu0 0.0
        %2118 = vmatprep.subr.mxu0 0.0
        %2119 = vmatpush1.msra.mxu0 0.0
        %2120 = vmatprep.subr.mxu0 0.0
        %2121 = vmatpush1.msra.mxu0 0.0
        %2122 = vmatprep.subr.mxu0 0.0
        %2123 = vmatpush1.msra.mxu0 0.0
        %2124 = vmatprep.subr.mxu0 0.0
        %2125 = vmatpush1.msra.mxu0 0.0
        %2126 = vmatprep.subr.mxu0 0.0
        %2127 = vmatpush1.msra.mxu0 0.0
        %2128 = vmatprep.subr.mxu0 0.0
        %2129 = vmatpush1.msra.mxu0 0.0
        %2130 = vmatprep.subr.mxu0 0.0
        %2131 = vmatpush1.msra.mxu0 0.0
        %2132 = vmatprep.subr.mxu0 0.0
        %2133 = vmatpush1.msra.mxu0 0.0
        %2134 = vmatprep.mubr.f32.mxu0 0.0
        %2135 = vmatmul.mubr.f32.gmra.mrb[0].mxu0 %v2068
        %v2136 = vpop.f32.mrb[0].mxu0
        %v2137 = vadd.f32 %v2065, %v2136
        %v2138 = vpop.f32.mrb[0].mxu0
        %2139 = vdwg.mxu0
        %vm2140 = vcmp.gt.f32.partialorder %v2137, 0.0
        %v2141 = vmul.f32 %v2137, 0.01
        %v2142 = vsel %vm2140, %v2137, %v2141
        %vm2143 = vcmask 64512
        %v2145 = vsel %vm2143, %v1627, 0
        %2147 = vmatprep.subr.mxu0 0.0
        %2148 = vmatpush1.msra.mxu0 %v2142
        %2149 = vmatprep.subr.mxu0 0.0
        %2150 = vmatpush1.msra.mxu0 0.0
        %2151 = vmatprep.subr.mxu0 0.0
        %2152 = vmatpush1.msra.mxu0 0.0
        %2153 = vmatprep.subr.mxu0 0.0
        %2154 = vmatpush1.msra.mxu0 0.0
        %2155 = vmatprep.subr.mxu0 0.0
        %2156 = vmatpush1.msra.mxu0 0.0
        %2157 = vmatprep.subr.mxu0 0.0
        %2158 = vmatpush1.msra.mxu0 0.0
        %2159 = vmatprep.subr.mxu0 0.0
        %2160 = vmatpush1.msra.mxu0 0.0
        %2161 = vmatprep.subr.mxu0 0.0
        %2162 = vmatpush1.msra.mxu0 0.0
        %2163 = vmatprep.subr.mxu0 0.0
        %2164 = vmatpush1.msra.mxu0 0.0
        %2165 = vmatprep.subr.mxu0 0.0
        %2166 = vmatpush1.msra.mxu0 0.0
        %2167 = vmatprep.subr.mxu0 0.0
        %2168 = vmatpush1.msra.mxu0 0.0
        %2169 = vmatprep.subr.mxu0 0.0
        %2170 = vmatpush1.msra.mxu0 0.0
        %2171 = vmatprep.subr.mxu0 0.0
        %2172 = vmatpush1.msra.mxu0 0.0
        %2173 = vmatprep.subr.mxu0 0.0
        %2174 = vmatpush1.msra.mxu0 0.0
        %2175 = vmatprep.subr.mxu0 0.0
        %2176 = vmatpush1.msra.mxu0 0.0
        %2177 = vmatprep.subr.mxu0 0.0
        %2178 = vmatpush1.msra.mxu0 0.0
        %2179 = vmatprep.subr.mxu0 0.0
        %2180 = vmatpush1.msra.mxu0 0.0
        %2181 = vmatprep.subr.mxu0 0.0
        %2182 = vmatpush1.msra.mxu0 0.0
        %2183 = vmatprep.subr.mxu0 0.0
        %2184 = vmatpush1.msra.mxu0 0.0
        %2185 = vmatprep.subr.mxu0 0.0
        %2186 = vmatpush1.msra.mxu0 0.0
        %2187 = vmatprep.subr.mxu0 0.0
        %2188 = vmatpush1.msra.mxu0 0.0
        %2189 = vmatprep.subr.mxu0 0.0
        %2190 = vmatpush1.msra.mxu0 0.0
        %2191 = vmatprep.subr.mxu0 0.0
        %2192 = vmatpush1.msra.mxu0 0.0
        %2193 = vmatprep.subr.mxu0 0.0
        %2194 = vmatpush1.msra.mxu0 0.0
        %2195 = vmatprep.subr.mxu0 0.0
        %2196 = vmatpush1.msra.mxu0 0.0
        %2197 = vmatprep.subr.mxu0 0.0
        %2198 = vmatpush1.msra.mxu0 0.0
        %2199 = vmatprep.subr.mxu0 0.0
        %2200 = vmatpush1.msra.mxu0 0.0
        %2201 = vmatprep.subr.mxu0 0.0
        %2202 = vmatpush1.msra.mxu0 0.0
        %2203 = vmatprep.subr.mxu0 0.0
        %2204 = vmatpush1.msra.mxu0 0.0
        %2205 = vmatprep.subr.mxu0 0.0
        %2206 = vmatpush1.msra.mxu0 0.0
        %2207 = vmatprep.subr.mxu0 0.0
        %2208 = vmatpush1.msra.mxu0 0.0
        %2209 = vmatprep.subr.mxu0 0.0
        %2210 = vmatpush1.msra.mxu0 0.0
        %2211 = vmatprep.mubr.f32.mxu0 0.0
        %2212 = vmatmul.mubr.f32.gmra.mrb[0].mxu0 %v2145
        %v2213 = vpop.f32.mrb[0].mxu0
        %v2214 = vadd.f32 0.0, %v2213
        %v2215 = vpop.f32.mrb[0].mxu0
        %2216 = vdwg.mxu0
        %v2217 = vadd.f32 %v1896, %v2214
        %v2219 = vsel %vm1738, %v2217, 0
        %2221 = vmatprep.subr.mxu0 0.0
        %2222 = vmatpush1.msra.mxu0 %v1636
        %2223 = vmatprep.subr.mxu0 0.0
        %2224 = vmatpush1.msra.mxu0 %v1637
        %2225 = vmatprep.subr.mxu0 0.0
        %2226 = vmatpush1.msra.mxu0 0.0
        %2227 = vmatprep.subr.mxu0 0.0
        %2228 = vmatpush1.msra.mxu0 0.0
        %2229 = vmatprep.subr.mxu0 0.0
        %2230 = vmatpush1.msra.mxu0 0.0
        %2231 = vmatprep.subr.mxu0 0.0
        %2232 = vmatpush1.msra.mxu0 0.0
        %2233 = vmatprep.subr.mxu0 0.0
        %2234 = vmatpush1.msra.mxu0 0.0
        %2235 = vmatprep.subr.mxu0 0.0
        %2236 = vmatpush1.msra.mxu0 0.0
        %2237 = vmatprep.subr.mxu0 0.0
        %2238 = vmatpush1.msra.mxu0 0.0
        %2239 = vmatprep.subr.mxu0 0.0
        %2240 = vmatpush1.msra.mxu0 0.0
        %2241 = vmatprep.subr.mxu0 0.0
        %2242 = vmatpush1.msra.mxu0 0.0
        %2243 = vmatprep.subr.mxu0 0.0
        %2244 = vmatpush1.msra.mxu0 0.0
        %2245 = vmatprep.subr.mxu0 0.0
        %2246 = vmatpush1.msra.mxu0 0.0
        %2247 = vmatprep.subr.mxu0 0.0
        %2248 = vmatpush1.msra.mxu0 0.0
        %2249 = vmatprep.subr.mxu0 0.0
        %2250 = vmatpush1.msra.mxu0 0.0
        %2251 = vmatprep.subr.mxu0 0.0
        %2252 = vmatpush1.msra.mxu0 0.0
        %2253 = vmatprep.subr.mxu0 0.0
        %2254 = vmatpush1.msra.mxu0 0.0
        %2255 = vmatprep.subr.mxu0 0.0
        %2256 = vmatpush1.msra.mxu0 0.0
        %2257 = vmatprep.subr.mxu0 0.0
        %2258 = vmatpush1.msra.mxu0 0.0
        %2259 = vmatprep.subr.mxu0 0.0
        %2260 = vmatpush1.msra.mxu0 0.0
        %2261 = vmatprep.subr.mxu0 0.0
        %2262 = vmatpush1.msra.mxu0 0.0
        %2263 = vmatprep.subr.mxu0 0.0
        %2264 = vmatpush1.msra.mxu0 0.0
        %2265 = vmatprep.subr.mxu0 0.0
        %2266 = vmatpush1.msra.mxu0 0.0
        %2267 = vmatprep.subr.mxu0 0.0
        %2268 = vmatpush1.msra.mxu0 0.0
        %2269 = vmatprep.subr.mxu0 0.0
        %2270 = vmatpush1.msra.mxu0 0.0
        %2271 = vmatprep.subr.mxu0 0.0
        %2272 = vmatpush1.msra.mxu0 0.0
        %2273 = vmatprep.subr.mxu0 0.0
        %2274 = vmatpush1.msra.mxu0 0.0
        %2275 = vmatprep.subr.mxu0 0.0
        %2276 = vmatpush1.msra.mxu0 0.0
        %2277 = vmatprep.subr.mxu0 0.0
        %2278 = vmatpush1.msra.mxu0 0.0
        %2279 = vmatprep.subr.mxu0 0.0
        %2280 = vmatpush1.msra.mxu0 0.0
        %2281 = vmatprep.subr.mxu0 0.0
        %2282 = vmatpush1.msra.mxu0 0.0
        %2283 = vmatprep.subr.mxu0 0.0
        %2284 = vmatpush1.msra.mxu0 0.0
        %2285 = vmatprep.mubr.f32.mxu0 0.0
        %2286 = vmatmul.mubr.f32.gmra.mrb[0].mxu0 %v2219
        %v2287 = vpop.f32.mrb[0].mxu0
        %v2288 = vadd.f32 %v1901, %v2287
        %v2289 = vpop.f32.mrb[0].mxu0
        %2290 = vdwg.mxu0
        %vm2291 = vcmp.gt.f32.partialorder %v2288, 0.0
        %v2292 = vmul.f32 %v2288, 0.01
        %v2293 = vsel %vm2291, %v2288, %v2292
        %v2295 = vsel %vm1738, %v2293, 0
        %2297 = vmatprep.subr.mxu0 0.0
        %2298 = vmatpush1.msra.mxu0 %v1639
        %2299 = vmatprep.subr.mxu0 0.0
        %2300 = vmatpush1.msra.mxu0 %v1640
        %2301 = vmatprep.subr.mxu0 0.0
        %2302 = vmatpush1.msra.mxu0 0.0
        %2303 = vmatprep.subr.mxu0 0.0
        %2304 = vmatpush1.msra.mxu0 0.0
        %2305 = vmatprep.subr.mxu0 0.0
        %2306 = vmatpush1.msra.mxu0 0.0
        %2307 = vmatprep.subr.mxu0 0.0
        %2308 = vmatpush1.msra.mxu0 0.0
        %2309 = vmatprep.subr.mxu0 0.0
        %2310 = vmatpush1.msra.mxu0 0.0
        %2311 = vmatprep.subr.mxu0 0.0
        %2312 = vmatpush1.msra.mxu0 0.0
        %2313 = vmatprep.subr.mxu0 0.0
        %2314 = vmatpush1.msra.mxu0 0.0
        %2315 = vmatprep.subr.mxu0 0.0
        %2316 = vmatpush1.msra.mxu0 0.0
        %2317 = vmatprep.subr.mxu0 0.0
        %2318 = vmatpush1.msra.mxu0 0.0
        %2319 = vmatprep.subr.mxu0 0.0
        %2320 = vmatpush1.msra.mxu0 0.0
        %2321 = vmatprep.subr.mxu0 0.0
        %2322 = vmatpush1.msra.mxu0 0.0
        %2323 = vmatprep.subr.mxu0 0.0
        %2324 = vmatpush1.msra.mxu0 0.0
        %2325 = vmatprep.subr.mxu0 0.0
        %2326 = vmatpush1.msra.mxu0 0.0
        %2327 = vmatprep.subr.mxu0 0.0
        %2328 = vmatpush1.msra.mxu0 0.0
        %2329 = vmatprep.subr.mxu0 0.0
        %2330 = vmatpush1.msra.mxu0 0.0
        %2331 = vmatprep.subr.mxu0 0.0
        %2332 = vmatpush1.msra.mxu0 0.0
        %2333 = vmatprep.subr.mxu0 0.0
        %2334 = vmatpush1.msra.mxu0 0.0
        %2335 = vmatprep.subr.mxu0 0.0
        %2336 = vmatpush1.msra.mxu0 0.0
        %2337 = vmatprep.subr.mxu0 0.0
        %2338 = vmatpush1.msra.mxu0 0.0
        %2339 = vmatprep.subr.mxu0 0.0
        %2340 = vmatpush1.msra.mxu0 0.0
        %2341 = vmatprep.subr.mxu0 0.0
        %2342 = vmatpush1.msra.mxu0 0.0
        %2343 = vmatprep.subr.mxu0 0.0
        %2344 = vmatpush1.msra.mxu0 0.0
        %2345 = vmatprep.subr.mxu0 0.0
        %2346 = vmatpush1.msra.mxu0 0.0
        %2347 = vmatprep.subr.mxu0 0.0
        %2348 = vmatpush1.msra.mxu0 0.0
        %2349 = vmatprep.subr.mxu0 0.0
        %2350 = vmatpush1.msra.mxu0 0.0
        %2351 = vmatprep.subr.mxu0 0.0
        %2352 = vmatpush1.msra.mxu0 0.0
        %2353 = vmatprep.subr.mxu0 0.0
        %2354 = vmatpush1.msra.mxu0 0.0
        %2355 = vmatprep.subr.mxu0 0.0
        %2356 = vmatpush1.msra.mxu0 0.0
        %2357 = vmatprep.subr.mxu0 0.0
        %2358 = vmatpush1.msra.mxu0 0.0
        %2359 = vmatprep.subr.mxu0 0.0
        %2360 = vmatpush1.msra.mxu0 0.0
        %2361 = vmatprep.mubr.f32.mxu0 0.0
        %2362 = vmatmul.mubr.f32.gmra.mrb[0].mxu0 %v2295
        %v2363 = vpop.f32.mrb[0].mxu0
        %v2364 = vadd.f32 %v1983, %v2363
        %v2365 = vpop.f32.mrb[0].mxu0
        %2366 = vdwg.mxu0
        %vm2367 = vcmp.gt.f32.partialorder %v2364, 0.0
        %v2368 = vmul.f32 %v2364, 0.01
        %v2369 = vsel %vm2367, %v2364, %v2368
        %v2371 = vsel %vm1738, %v2369, 0
        %2373 = vmatprep.subr.mxu0 0.0
        %2374 = vmatpush1.msra.mxu0 %v1642
        %2375 = vmatprep.subr.mxu0 0.0
        %2376 = vmatpush1.msra.mxu0 %v1643
        %2377 = vmatprep.subr.mxu0 0.0
        %2378 = vmatpush1.msra.mxu0 0.0
        %2379 = vmatprep.subr.mxu0 0.0
        %2380 = vmatpush1.msra.mxu0 0.0
        %2381 = vmatprep.subr.mxu0 0.0
        %2382 = vmatpush1.msra.mxu0 0.0
        %2383 = vmatprep.subr.mxu0 0.0
        %2384 = vmatpush1.msra.mxu0 0.0
        %2385 = vmatprep.subr.mxu0 0.0
        %2386 = vmatpush1.msra.mxu0 0.0
        %2387 = vmatprep.subr.mxu0 0.0
        %2388 = vmatpush1.msra.mxu0 0.0
        %2389 = vmatprep.subr.mxu0 0.0
        %2390 = vmatpush1.msra.mxu0 0.0
        %2391 = vmatprep.subr.mxu0 0.0
        %2392 = vmatpush1.msra.mxu0 0.0
        %2393 = vmatprep.subr.mxu0 0.0
        %2394 = vmatpush1.msra.mxu0 0.0
        %2395 = vmatprep.subr.mxu0 0.0
        %2396 = vmatpush1.msra.mxu0 0.0
        %2397 = vmatprep.subr.mxu0 0.0
        %2398 = vmatpush1.msra.mxu0 0.0
        %2399 = vmatprep.subr.mxu0 0.0
        %2400 = vmatpush1.msra.mxu0 0.0
        %2401 = vmatprep.subr.mxu0 0.0
        %2402 = vmatpush1.msra.mxu0 0.0
        %2403 = vmatprep.subr.mxu0 0.0
        %2404 = vmatpush1.msra.mxu0 0.0
        %2405 = vmatprep.subr.mxu0 0.0
        %2406 = vmatpush1.msra.mxu0 0.0
        %2407 = vmatprep.subr.mxu0 0.0
        %2408 = vmatpush1.msra.mxu0 0.0
        %2409 = vmatprep.subr.mxu0 0.0
        %2410 = vmatpush1.msra.mxu0 0.0
        %2411 = vmatprep.subr.mxu0 0.0
        %2412 = vmatpush1.msra.mxu0 0.0
        %2413 = vmatprep.subr.mxu0 0.0
        %2414 = vmatpush1.msra.mxu0 0.0
        %2415 = vmatprep.subr.mxu0 0.0
        %2416 = vmatpush1.msra.mxu0 0.0
        %2417 = vmatprep.subr.mxu0 0.0
        %2418 = vmatpush1.msra.mxu0 0.0
        %2419 = vmatprep.subr.mxu0 0.0
        %2420 = vmatpush1.msra.mxu0 0.0
        %2421 = vmatprep.subr.mxu0 0.0
        %2422 = vmatpush1.msra.mxu0 0.0
        %2423 = vmatprep.subr.mxu0 0.0
        %2424 = vmatpush1.msra.mxu0 0.0
        %2425 = vmatprep.subr.mxu0 0.0
        %2426 = vmatpush1.msra.mxu0 0.0
        %2427 = vmatprep.subr.mxu0 0.0
        %2428 = vmatpush1.msra.mxu0 0.0
        %2429 = vmatprep.subr.mxu0 0.0
        %2430 = vmatpush1.msra.mxu0 0.0
        %2431 = vmatprep.subr.mxu0 0.0
        %2432 = vmatpush1.msra.mxu0 0.0
        %2433 = vmatprep.subr.mxu0 0.0
        %2434 = vmatpush1.msra.mxu0 0.0
        %2435 = vmatprep.subr.mxu0 0.0
        %2436 = vmatpush1.msra.mxu0 0.0
        %2437 = vmatprep.mubr.f32.mxu0 0.0
        %2438 = vmatmul.mubr.f32.gmra.mrb[0].mxu0 %v2371
        %v2439 = vpop.f32.mrb[0].mxu0
        %v2440 = vadd.f32 %v2065, %v2439
        %v2441 = vpop.f32.mrb[0].mxu0
        %2442 = vdwg.mxu0
        %vm2443 = vcmp.gt.f32.partialorder %v2440, 0.0
        %v2444 = vmul.f32 %v2440, 0.01
        %v2445 = vsel %vm2443, %v2440, %v2444
        %2446 = vmatprep.subr.mxu0 0.0
        %2447 = vmatpush1.msra.mxu0 %v2445
        %2448 = vmatprep.subr.mxu0 0.0
        %2449 = vmatpush1.msra.mxu0 0.0
        %2450 = vmatprep.subr.mxu0 0.0
        %2451 = vmatpush1.msra.mxu0 0.0
        %2452 = vmatprep.subr.mxu0 0.0
        %2453 = vmatpush1.msra.mxu0 0.0
        %2454 = vmatprep.subr.mxu0 0.0
        %2455 = vmatpush1.msra.mxu0 0.0
        %2456 = vmatprep.subr.mxu0 0.0
        %2457 = vmatpush1.msra.mxu0 0.0
        %2458 = vmatprep.subr.mxu0 0.0
        %2459 = vmatpush1.msra.mxu0 0.0
        %2460 = vmatprep.subr.mxu0 0.0
        %2461 = vmatpush1.msra.mxu0 0.0
        %2462 = vmatprep.subr.mxu0 0.0
        %2463 = vmatpush1.msra.mxu0 0.0
        %2464 = vmatprep.subr.mxu0 0.0
        %2465 = vmatpush1.msra.mxu0 0.0
        %2466 = vmatprep.subr.mxu0 0.0
        %2467 = vmatpush1.msra.mxu0 0.0
        %2468 = vmatprep.subr.mxu0 0.0
        %2469 = vmatpush1.msra.mxu0 0.0
        %2470 = vmatprep.subr.mxu0 0.0
        %2471 = vmatpush1.msra.mxu0 0.0
        %2472 = vmatprep.subr.mxu0 0.0
        %2473 = vmatpush1.msra.mxu0 0.0
        %2474 = vmatprep.subr.mxu0 0.0
        %2475 = vmatpush1.msra.mxu0 0.0
        %2476 = vmatprep.subr.mxu0 0.0
        %2477 = vmatpush1.msra.mxu0 0.0
        %2478 = vmatprep.subr.mxu0 0.0
        %2479 = vmatpush1.msra.mxu0 0.0
        %2480 = vmatprep.subr.mxu0 0.0
        %2481 = vmatpush1.msra.mxu0 0.0
        %2482 = vmatprep.subr.mxu0 0.0
        %2483 = vmatpush1.msra.mxu0 0.0
        %2484 = vmatprep.subr.mxu0 0.0
        %2485 = vmatpush1.msra.mxu0 0.0
        %2486 = vmatprep.subr.mxu0 0.0
        %2487 = vmatpush1.msra.mxu0 0.0
        %2488 = vmatprep.subr.mxu0 0.0
        %2489 = vmatpush1.msra.mxu0 0.0
        %2490 = vmatprep.subr.mxu0 0.0
        %2491 = vmatpush1.msra.mxu0 0.0
        %2492 = vmatprep.subr.mxu0 0.0
        %2493 = vmatpush1.msra.mxu0 0.0
        %2494 = vmatprep.subr.mxu0 0.0
        %2495 = vmatpush1.msra.mxu0 0.0
        %2496 = vmatprep.subr.mxu0 0.0
        %2497 = vmatpush1.msra.mxu0 0.0
        %2498 = vmatprep.subr.mxu0 0.0
        %2499 = vmatpush1.msra.mxu0 0.0
        %2500 = vmatprep.subr.mxu0 0.0
        %2501 = vmatpush1.msra.mxu0 0.0
        %2502 = vmatprep.subr.mxu0 0.0
        %2503 = vmatpush1.msra.mxu0 0.0
        %2504 = vmatprep.subr.mxu0 0.0
        %2505 = vmatpush1.msra.mxu0 0.0
        %2506 = vmatprep.subr.mxu0 0.0
        %2507 = vmatpush1.msra.mxu0 0.0
        %2508 = vmatprep.subr.mxu0 0.0
        %2509 = vmatpush1.msra.mxu0 0.0
        %2510 = vmatprep.mubr.f32.mxu0 0.0
        %2511 = vmatmul.mubr.f32.gmra.mrb[0].mxu0 %v2145
        %v2512 = vpop.f32.mrb[0].mxu0
        %v2513 = vadd.f32 0.0, %v2512
        %v2514 = vpop.f32.mrb[0].mxu0
        %2515 = vdwg.mxu0
        %v2516 = vadd.f32 %v2217, %v2513
        %v2517 = vld [vmem:[%s1614] sm:$0xff]
        %v2518 = vld [vmem:[%s1622] sm:$0xff]
        %v2519 = vld [vmem:[#allocation14] sm:$0x1f]
        %v2520 = vld [vmem:[#allocation16] sm:$0x1]
        %v2521 = vld [vmem:[%s37] sm:$0xff]
        %v2522 = vld [vmem:[%s37 + $0x8] sm:$0xff]
        %v2523 = vld [vmem:[#allocation17] sm:$0x1]
        %v2524 = vld [vmem:[%s41] sm:$0xff]
        %v2525 = vld [vmem:[%s41 + $0x8] sm:$0xff]
        %v2526 = vld [vmem:[#allocation19] sm:$0x1]
        %v2527 = vld [vmem:[%s45] sm:$0xff]
        %v2528 = vld [vmem:[%s45 + $0x8] sm:$0xff]
        %v2529 = vld [vmem:[#allocation20] sm:$0x1]
        %v2530 = vld [vmem:[%s49] sm:$0xff]
        %v2531 = vld [vmem:[%s49 + $0x8] sm:$0xff]
        %v2532 = vld [vmem:[#allocation22] sm:$0x1]
        %v2533 = vld [vmem:[%s53] sm:$0xff]
        %v2534 = vld [vmem:[%s53 + $0x8] sm:$0xff]
        %v2535 = vld [vmem:[#allocation23] sm:$0x1]
        %v2537 = vlaneseq
        %v2538 = vshrl.u32 %v2537, 7
        %v2539 = vsub.s32 0, %v2538
        %v2540 = vrot.slane %v2520, %v2539
        %vm2542 = vcmask 39936
        %v2544 = vsel %vm2542, %v2517, 0
        %vm2546 = vcmask 1044480
        %v2548 = vsel %vm2546, %v2519, 0
        %2550 = vmatprep.subr.mxu0 0.0
        %2551 = vmatpush1.msra.mxu0 %v2548
        %2552 = vmatprep.subr.mxu0 0.0
        %2553 = vmatpush1.msra.mxu0 0.0
        %2554 = vmatprep.subr.mxu0 0.0
        %2555 = vmatpush1.msra.mxu0 0.0
        %2556 = vmatprep.subr.mxu0 0.0
        %2557 = vmatpush1.msra.mxu0 0.0
        %2558 = vmatprep.subr.mxu0 0.0
        %2559 = vmatpush1.msra.mxu0 0.0
        %2560 = vmatprep.subr.mxu0 0.0
        %2561 = vmatpush1.msra.mxu0 0.0
        %2562 = vmatprep.subr.mxu0 0.0
        %2563 = vmatpush1.msra.mxu0 0.0
        %2564 = vmatprep.subr.mxu0 0.0
        %2565 = vmatpush1.msra.mxu0 0.0
        %2566 = vmatprep.subr.mxu0 0.0
        %2567 = vmatpush1.msra.mxu0 0.0
        %2568 = vmatprep.subr.mxu0 0.0
        %2569 = vmatpush1.msra.mxu0 0.0
        %2570 = vmatprep.subr.mxu0 0.0
        %2571 = vmatpush1.msra.mxu0 0.0
        %2572 = vmatprep.subr.mxu0 0.0
        %2573 = vmatpush1.msra.mxu0 0.0
        %2574 = vmatprep.subr.mxu0 0.0
        %2575 = vmatpush1.msra.mxu0 0.0
        %2576 = vmatprep.subr.mxu0 0.0
        %2577 = vmatpush1.msra.mxu0 0.0
        %2578 = vmatprep.subr.mxu0 0.0
        %2579 = vmatpush1.msra.mxu0 0.0
        %2580 = vmatprep.subr.mxu0 0.0
        %2581 = vmatpush1.msra.mxu0 0.0
        %2582 = vmatprep.subr.mxu0 0.0
        %2583 = vmatpush1.msra.mxu0 0.0
        %2584 = vmatprep.subr.mxu0 0.0
        %2585 = vmatpush1.msra.mxu0 0.0
        %2586 = vmatprep.subr.mxu0 0.0
        %2587 = vmatpush1.msra.mxu0 0.0
        %2588 = vmatprep.subr.mxu0 0.0
        %2589 = vmatpush1.msra.mxu0 0.0
        %2590 = vmatprep.subr.mxu0 0.0
        %2591 = vmatpush1.msra.mxu0 0.0
        %2592 = vmatprep.subr.mxu0 0.0
        %2593 = vmatpush1.msra.mxu0 0.0
        %2594 = vmatprep.subr.mxu0 0.0
        %2595 = vmatpush1.msra.mxu0 0.0
        %2596 = vmatprep.subr.mxu0 0.0
        %2597 = vmatpush1.msra.mxu0 0.0
        %2598 = vmatprep.subr.mxu0 0.0
        %2599 = vmatpush1.msra.mxu0 0.0
        %2600 = vmatprep.subr.mxu0 0.0
        %2601 = vmatpush1.msra.mxu0 0.0
        %2602 = vmatprep.subr.mxu0 0.0
        %2603 = vmatpush1.msra.mxu0 0.0
        %2604 = vmatprep.subr.mxu0 0.0
        %2605 = vmatpush1.msra.mxu0 0.0
        %2606 = vmatprep.subr.mxu0 0.0
        %2607 = vmatpush1.msra.mxu0 0.0
        %2608 = vmatprep.subr.mxu0 0.0
        %2609 = vmatpush1.msra.mxu0 0.0
        %2610 = vmatprep.subr.mxu0 0.0
        %2611 = vmatpush1.msra.mxu0 0.0
        %2612 = vmatprep.subr.mxu0 0.0
        %2613 = vmatpush1.msra.mxu0 0.0
        %2614 = vmatprep.mubr.f32.mxu0 0.0
        %2615 = vmatmul.mubr.f32.gmra.mrb[0].mxu0 %v2544
        %v2616 = vpop.f32.mrb[0].mxu0
        %v2617 = vadd.f32 %v2540, %v2616
        %v2618 = vpop.f32.mrb[0].mxu0
        %2619 = vdwg.mxu0
        %vm2620 = vcmp.gt.f32.partialorder %v2617, 0.0
        %v2621 = vmul.f32 %v2617, 0.01
        %v2622 = vsel %vm2620, %v2617, %v2621
        %v2624 = vlaneseq
        %v2625 = vshrl.u32 %v2624, 7
        %v2626 = vsub.s32 0, %v2625
        %v2627 = vrot.slane %v2523, %v2626
        %v2630 = vsel %vm1738, %v2622, 0
        %2632 = vmatprep.subr.mxu0 0.0
        %2633 = vmatpush1.msra.mxu0 %v2521
        %2634 = vmatprep.subr.mxu0 0.0
        %2635 = vmatpush1.msra.mxu0 %v2522
        %2636 = vmatprep.subr.mxu0 0.0
        %2637 = vmatpush1.msra.mxu0 0.0
        %2638 = vmatprep.subr.mxu0 0.0
        %2639 = vmatpush1.msra.mxu0 0.0
        %2640 = vmatprep.subr.mxu0 0.0
        %2641 = vmatpush1.msra.mxu0 0.0
        %2642 = vmatprep.subr.mxu0 0.0
        %2643 = vmatpush1.msra.mxu0 0.0
        %2644 = vmatprep.subr.mxu0 0.0
        %2645 = vmatpush1.msra.mxu0 0.0
        %2646 = vmatprep.subr.mxu0 0.0
        %2647 = vmatpush1.msra.mxu0 0.0
        %2648 = vmatprep.subr.mxu0 0.0
        %2649 = vmatpush1.msra.mxu0 0.0
        %2650 = vmatprep.subr.mxu0 0.0
        %2651 = vmatpush1.msra.mxu0 0.0
        %2652 = vmatprep.subr.mxu0 0.0
        %2653 = vmatpush1.msra.mxu0 0.0
        %2654 = vmatprep.subr.mxu0 0.0
        %2655 = vmatpush1.msra.mxu0 0.0
        %2656 = vmatprep.subr.mxu0 0.0
        %2657 = vmatpush1.msra.mxu0 0.0
        %2658 = vmatprep.subr.mxu0 0.0
        %2659 = vmatpush1.msra.mxu0 0.0
        %2660 = vmatprep.subr.mxu0 0.0
        %2661 = vmatpush1.msra.mxu0 0.0
        %2662 = vmatprep.subr.mxu0 0.0
        %2663 = vmatpush1.msra.mxu0 0.0
        %2664 = vmatprep.subr.mxu0 0.0
        %2665 = vmatpush1.msra.mxu0 0.0
        %2666 = vmatprep.subr.mxu0 0.0
        %2667 = vmatpush1.msra.mxu0 0.0
        %2668 = vmatprep.subr.mxu0 0.0
        %2669 = vmatpush1.msra.mxu0 0.0
        %2670 = vmatprep.subr.mxu0 0.0
        %2671 = vmatpush1.msra.mxu0 0.0
        %2672 = vmatprep.subr.mxu0 0.0
        %2673 = vmatpush1.msra.mxu0 0.0
        %2674 = vmatprep.subr.mxu0 0.0
        %2675 = vmatpush1.msra.mxu0 0.0
        %2676 = vmatprep.subr.mxu0 0.0
        %2677 = vmatpush1.msra.mxu0 0.0
        %2678 = vmatprep.subr.mxu0 0.0
        %2679 = vmatpush1.msra.mxu0 0.0
        %2680 = vmatprep.subr.mxu0 0.0
        %2681 = vmatpush1.msra.mxu0 0.0
        %2682 = vmatprep.subr.mxu0 0.0
        %2683 = vmatpush1.msra.mxu0 0.0
        %2684 = vmatprep.subr.mxu0 0.0
        %2685 = vmatpush1.msra.mxu0 0.0
        %2686 = vmatprep.subr.mxu0 0.0
        %2687 = vmatpush1.msra.mxu0 0.0
        %2688 = vmatprep.subr.mxu0 0.0
        %2689 = vmatpush1.msra.mxu0 0.0
        %2690 = vmatprep.subr.mxu0 0.0
        %2691 = vmatpush1.msra.mxu0 0.0
        %2692 = vmatprep.subr.mxu0 0.0
        %2693 = vmatpush1.msra.mxu0 0.0
        %2694 = vmatprep.subr.mxu0 0.0
        %2695 = vmatpush1.msra.mxu0 0.0
        %2696 = vmatprep.mubr.f32.mxu0 0.0
        %2697 = vmatmul.mubr.f32.gmra.mrb[0].mxu0 %v2630
        %v2698 = vpop.f32.mrb[0].mxu0
        %v2699 = vadd.f32 %v2627, %v2698
        %v2700 = vpop.f32.mrb[0].mxu0
        %2701 = vdwg.mxu0
        %vm2702 = vcmp.gt.f32.partialorder %v2699, 0.0
        %v2703 = vmul.f32 %v2699, 0.01
        %v2704 = vsel %vm2702, %v2699, %v2703
        %v2706 = vlaneseq
        %v2707 = vshrl.u32 %v2706, 7
        %v2708 = vsub.s32 0, %v2707
        %v2709 = vrot.slane %v2526, %v2708
        %v2712 = vsel %vm1738, %v2704, 0
        %2714 = vmatprep.subr.mxu0 0.0
        %2715 = vmatpush1.msra.mxu0 %v2524
        %2716 = vmatprep.subr.mxu0 0.0
        %2717 = vmatpush1.msra.mxu0 %v2525
        %2718 = vmatprep.subr.mxu0 0.0
        %2719 = vmatpush1.msra.mxu0 0.0
        %2720 = vmatprep.subr.mxu0 0.0
        %2721 = vmatpush1.msra.mxu0 0.0
        %2722 = vmatprep.subr.mxu0 0.0
        %2723 = vmatpush1.msra.mxu0 0.0
        %2724 = vmatprep.subr.mxu0 0.0
        %2725 = vmatpush1.msra.mxu0 0.0
        %2726 = vmatprep.subr.mxu0 0.0
        %2727 = vmatpush1.msra.mxu0 0.0
        %2728 = vmatprep.subr.mxu0 0.0
        %2729 = vmatpush1.msra.mxu0 0.0
        %2730 = vmatprep.subr.mxu0 0.0
        %2731 = vmatpush1.msra.mxu0 0.0
        %2732 = vmatprep.subr.mxu0 0.0
        %2733 = vmatpush1.msra.mxu0 0.0
        %2734 = vmatprep.subr.mxu0 0.0
        %2735 = vmatpush1.msra.mxu0 0.0
        %2736 = vmatprep.subr.mxu0 0.0
        %2737 = vmatpush1.msra.mxu0 0.0
        %2738 = vmatprep.subr.mxu0 0.0
        %2739 = vmatpush1.msra.mxu0 0.0
        %2740 = vmatprep.subr.mxu0 0.0
        %2741 = vmatpush1.msra.mxu0 0.0
        %2742 = vmatprep.subr.mxu0 0.0
        %2743 = vmatpush1.msra.mxu0 0.0
        %2744 = vmatprep.subr.mxu0 0.0
        %2745 = vmatpush1.msra.mxu0 0.0
        %2746 = vmatprep.subr.mxu0 0.0
        %2747 = vmatpush1.msra.mxu0 0.0
        %2748 = vmatprep.subr.mxu0 0.0
        %2749 = vmatpush1.msra.mxu0 0.0
        %2750 = vmatprep.subr.mxu0 0.0
        %2751 = vmatpush1.msra.mxu0 0.0
        %2752 = vmatprep.subr.mxu0 0.0
        %2753 = vmatpush1.msra.mxu0 0.0
        %2754 = vmatprep.subr.mxu0 0.0
        %2755 = vmatpush1.msra.mxu0 0.0
        %2756 = vmatprep.subr.mxu0 0.0
        %2757 = vmatpush1.msra.mxu0 0.0
        %2758 = vmatprep.subr.mxu0 0.0
        %2759 = vmatpush1.msra.mxu0 0.0
        %2760 = vmatprep.subr.mxu0 0.0
        %2761 = vmatpush1.msra.mxu0 0.0
        %2762 = vmatprep.subr.mxu0 0.0
        %2763 = vmatpush1.msra.mxu0 0.0
        %2764 = vmatprep.subr.mxu0 0.0
        %2765 = vmatpush1.msra.mxu0 0.0
        %2766 = vmatprep.subr.mxu0 0.0
        %2767 = vmatpush1.msra.mxu0 0.0
        %2768 = vmatprep.subr.mxu0 0.0
        %2769 = vmatpush1.msra.mxu0 0.0
        %2770 = vmatprep.subr.mxu0 0.0
        %2771 = vmatpush1.msra.mxu0 0.0
        %2772 = vmatprep.subr.mxu0 0.0
        %2773 = vmatpush1.msra.mxu0 0.0
        %2774 = vmatprep.subr.mxu0 0.0
        %2775 = vmatpush1.msra.mxu0 0.0
        %2776 = vmatprep.subr.mxu0 0.0
        %2777 = vmatpush1.msra.mxu0 0.0
        %2778 = vmatprep.mubr.f32.mxu0 0.0
        %2779 = vmatmul.mubr.f32.gmra.mrb[0].mxu0 %v2712
        %v2780 = vpop.f32.mrb[0].mxu0
        %v2781 = vadd.f32 %v2709, %v2780
        %v2782 = vpop.f32.mrb[0].mxu0
        %2783 = vdwg.mxu0
        %vm2784 = vcmp.gt.f32.partialorder %v2781, 0.0
        %v2785 = vmul.f32 %v2781, 0.01
        %v2786 = vsel %vm2784, %v2781, %v2785
        %v2788 = vlaneseq
        %v2789 = vshrl.u32 %v2788, 7
        %v2790 = vsub.s32 0, %v2789
        %v2791 = vrot.slane %v2529, %v2790
        %v2794 = vsel %vm1738, %v2786, 0
        %2796 = vmatprep.subr.mxu0 0.0
        %2797 = vmatpush1.msra.mxu0 %v2527
        %2798 = vmatprep.subr.mxu0 0.0
        %2799 = vmatpush1.msra.mxu0 %v2528
        %2800 = vmatprep.subr.mxu0 0.0
        %2801 = vmatpush1.msra.mxu0 0.0
        %2802 = vmatprep.subr.mxu0 0.0
        %2803 = vmatpush1.msra.mxu0 0.0
        %2804 = vmatprep.subr.mxu0 0.0
        %2805 = vmatpush1.msra.mxu0 0.0
        %2806 = vmatprep.subr.mxu0 0.0
        %2807 = vmatpush1.msra.mxu0 0.0
        %2808 = vmatprep.subr.mxu0 0.0
        %2809 = vmatpush1.msra.mxu0 0.0
        %2810 = vmatprep.subr.mxu0 0.0
        %2811 = vmatpush1.msra.mxu0 0.0
        %2812 = vmatprep.subr.mxu0 0.0
        %2813 = vmatpush1.msra.mxu0 0.0
        %2814 = vmatprep.subr.mxu0 0.0
        %2815 = vmatpush1.msra.mxu0 0.0
        %2816 = vmatprep.subr.mxu0 0.0
        %2817 = vmatpush1.msra.mxu0 0.0
        %2818 = vmatprep.subr.mxu0 0.0
        %2819 = vmatpush1.msra.mxu0 0.0
        %2820 = vmatprep.subr.mxu0 0.0
        %2821 = vmatpush1.msra.mxu0 0.0
        %2822 = vmatprep.subr.mxu0 0.0
        %2823 = vmatpush1.msra.mxu0 0.0
        %2824 = vmatprep.subr.mxu0 0.0
        %2825 = vmatpush1.msra.mxu0 0.0
        %2826 = vmatprep.subr.mxu0 0.0
        %2827 = vmatpush1.msra.mxu0 0.0
        %2828 = vmatprep.subr.mxu0 0.0
        %2829 = vmatpush1.msra.mxu0 0.0
        %2830 = vmatprep.subr.mxu0 0.0
        %2831 = vmatpush1.msra.mxu0 0.0
        %2832 = vmatprep.subr.mxu0 0.0
        %2833 = vmatpush1.msra.mxu0 0.0
        %2834 = vmatprep.subr.mxu0 0.0
        %2835 = vmatpush1.msra.mxu0 0.0
        %2836 = vmatprep.subr.mxu0 0.0
        %2837 = vmatpush1.msra.mxu0 0.0
        %2838 = vmatprep.subr.mxu0 0.0
        %2839 = vmatpush1.msra.mxu0 0.0
        %2840 = vmatprep.subr.mxu0 0.0
        %2841 = vmatpush1.msra.mxu0 0.0
        %2842 = vmatprep.subr.mxu0 0.0
        %2843 = vmatpush1.msra.mxu0 0.0
        %2844 = vmatprep.subr.mxu0 0.0
        %2845 = vmatpush1.msra.mxu0 0.0
        %2846 = vmatprep.subr.mxu0 0.0
        %2847 = vmatpush1.msra.mxu0 0.0
        %2848 = vmatprep.subr.mxu0 0.0
        %2849 = vmatpush1.msra.mxu0 0.0
        %2850 = vmatprep.subr.mxu0 0.0
        %2851 = vmatpush1.msra.mxu0 0.0
        %2852 = vmatprep.subr.mxu0 0.0
        %2853 = vmatpush1.msra.mxu0 0.0
        %2854 = vmatprep.subr.mxu0 0.0
        %2855 = vmatpush1.msra.mxu0 0.0
        %2856 = vmatprep.subr.mxu0 0.0
        %2857 = vmatpush1.msra.mxu0 0.0
        %2858 = vmatprep.subr.mxu0 0.0
        %2859 = vmatpush1.msra.mxu0 0.0
        %2860 = vmatprep.mubr.f32.mxu0 0.0
        %2861 = vmatmul.mubr.f32.gmra.mrb[0].mxu0 %v2794
        %v2862 = vpop.f32.mrb[0].mxu0
        %v2863 = vadd.f32 %v2791, %v2862
        %v2864 = vpop.f32.mrb[0].mxu0
        %2865 = vdwg.mxu0
        %vm2866 = vcmp.gt.f32.partialorder %v2863, 0.0
        %v2867 = vmul.f32 %v2863, 0.01
        %v2868 = vsel %vm2866, %v2863, %v2867
        %v2870 = vlaneseq
        %v2871 = vshrl.u32 %v2870, 7
        %v2872 = vsub.s32 0, %v2871
        %v2873 = vrot.slane %v2532, %v2872
        %v2876 = vsel %vm1738, %v2868, 0
        %2878 = vmatprep.subr.mxu0 0.0
        %2879 = vmatpush1.msra.mxu0 %v2530
        %2880 = vmatprep.subr.mxu0 0.0
        %2881 = vmatpush1.msra.mxu0 %v2531
        %2882 = vmatprep.subr.mxu0 0.0
        %2883 = vmatpush1.msra.mxu0 0.0
        %2884 = vmatprep.subr.mxu0 0.0
        %2885 = vmatpush1.msra.mxu0 0.0
        %2886 = vmatprep.subr.mxu0 0.0
        %2887 = vmatpush1.msra.mxu0 0.0
        %2888 = vmatprep.subr.mxu0 0.0
        %2889 = vmatpush1.msra.mxu0 0.0
        %2890 = vmatprep.subr.mxu0 0.0
        %2891 = vmatpush1.msra.mxu0 0.0
        %2892 = vmatprep.subr.mxu0 0.0
        %2893 = vmatpush1.msra.mxu0 0.0
        %2894 = vmatprep.subr.mxu0 0.0
        %2895 = vmatpush1.msra.mxu0 0.0
        %2896 = vmatprep.subr.mxu0 0.0
        %2897 = vmatpush1.msra.mxu0 0.0
        %2898 = vmatprep.subr.mxu0 0.0
        %2899 = vmatpush1.msra.mxu0 0.0
        %2900 = vmatprep.subr.mxu0 0.0
        %2901 = vmatpush1.msra.mxu0 0.0
        %2902 = vmatprep.subr.mxu0 0.0
        %2903 = vmatpush1.msra.mxu0 0.0
        %2904 = vmatprep.subr.mxu0 0.0
        %2905 = vmatpush1.msra.mxu0 0.0
        %2906 = vmatprep.subr.mxu0 0.0
        %2907 = vmatpush1.msra.mxu0 0.0
        %2908 = vmatprep.subr.mxu0 0.0
        %2909 = vmatpush1.msra.mxu0 0.0
        %2910 = vmatprep.subr.mxu0 0.0
        %2911 = vmatpush1.msra.mxu0 0.0
        %2912 = vmatprep.subr.mxu0 0.0
        %2913 = vmatpush1.msra.mxu0 0.0
        %2914 = vmatprep.subr.mxu0 0.0
        %2915 = vmatpush1.msra.mxu0 0.0
        %2916 = vmatprep.subr.mxu0 0.0
        %2917 = vmatpush1.msra.mxu0 0.0
        %2918 = vmatprep.subr.mxu0 0.0
        %2919 = vmatpush1.msra.mxu0 0.0
        %2920 = vmatprep.subr.mxu0 0.0
        %2921 = vmatpush1.msra.mxu0 0.0
        %2922 = vmatprep.subr.mxu0 0.0
        %2923 = vmatpush1.msra.mxu0 0.0
        %2924 = vmatprep.subr.mxu0 0.0
        %2925 = vmatpush1.msra.mxu0 0.0
        %2926 = vmatprep.subr.mxu0 0.0
        %2927 = vmatpush1.msra.mxu0 0.0
        %2928 = vmatprep.subr.mxu0 0.0
        %2929 = vmatpush1.msra.mxu0 0.0
        %2930 = vmatprep.subr.mxu0 0.0
        %2931 = vmatpush1.msra.mxu0 0.0
        %2932 = vmatprep.subr.mxu0 0.0
        %2933 = vmatpush1.msra.mxu0 0.0
        %2934 = vmatprep.subr.mxu0 0.0
        %2935 = vmatpush1.msra.mxu0 0.0
        %2936 = vmatprep.subr.mxu0 0.0
        %2937 = vmatpush1.msra.mxu0 0.0
        %2938 = vmatprep.subr.mxu0 0.0
        %2939 = vmatpush1.msra.mxu0 0.0
        %2940 = vmatprep.subr.mxu0 0.0
        %2941 = vmatpush1.msra.mxu0 0.0
        %2942 = vmatprep.mubr.f32.mxu0 0.0
        %2943 = vmatmul.mubr.f32.gmra.mrb[0].mxu0 %v2876
        %v2944 = vpop.f32.mrb[0].mxu0
        %v2945 = vadd.f32 %v2873, %v2944
        %v2946 = vpop.f32.mrb[0].mxu0
        %2947 = vdwg.mxu0
        %vm2948 = vcmp.gt.f32.partialorder %v2945, 0.0
        %v2949 = vmul.f32 %v2945, 0.01
        %v2950 = vsel %vm2948, %v2945, %v2949
        %v2952 = vlaneseq
        %v2953 = vshrl.u32 %v2952, 7
        %v2954 = vsub.s32 0, %v2953
        %v2955 = vrot.slane %v2535, %v2954
        %v2958 = vsel %vm1738, %v2950, 0
        %2960 = vmatprep.subr.mxu0 0.0
        %2961 = vmatpush1.msra.mxu0 %v2533
        %2962 = vmatprep.subr.mxu0 0.0
        %2963 = vmatpush1.msra.mxu0 %v2534
        %2964 = vmatprep.subr.mxu0 0.0
        %2965 = vmatpush1.msra.mxu0 0.0
        %2966 = vmatprep.subr.mxu0 0.0
        %2967 = vmatpush1.msra.mxu0 0.0
        %2968 = vmatprep.subr.mxu0 0.0
        %2969 = vmatpush1.msra.mxu0 0.0
        %2970 = vmatprep.subr.mxu0 0.0
        %2971 = vmatpush1.msra.mxu0 0.0
        %2972 = vmatprep.subr.mxu0 0.0
        %2973 = vmatpush1.msra.mxu0 0.0
        %2974 = vmatprep.subr.mxu0 0.0
        %2975 = vmatpush1.msra.mxu0 0.0
        %2976 = vmatprep.subr.mxu0 0.0
        %2977 = vmatpush1.msra.mxu0 0.0
        %2978 = vmatprep.subr.mxu0 0.0
        %2979 = vmatpush1.msra.mxu0 0.0
        %2980 = vmatprep.subr.mxu0 0.0
        %2981 = vmatpush1.msra.mxu0 0.0
        %2982 = vmatprep.subr.mxu0 0.0
        %2983 = vmatpush1.msra.mxu0 0.0
        %2984 = vmatprep.subr.mxu0 0.0
        %2985 = vmatpush1.msra.mxu0 0.0
        %2986 = vmatprep.subr.mxu0 0.0
        %2987 = vmatpush1.msra.mxu0 0.0
        %2988 = vmatprep.subr.mxu0 0.0
        %2989 = vmatpush1.msra.mxu0 0.0
        %2990 = vmatprep.subr.mxu0 0.0
        %2991 = vmatpush1.msra.mxu0 0.0
        %2992 = vmatprep.subr.mxu0 0.0
        %2993 = vmatpush1.msra.mxu0 0.0
        %2994 = vmatprep.subr.mxu0 0.0
        %2995 = vmatpush1.msra.mxu0 0.0
        %2996 = vmatprep.subr.mxu0 0.0
        %2997 = vmatpush1.msra.mxu0 0.0
        %2998 = vmatprep.subr.mxu0 0.0
        %2999 = vmatpush1.msra.mxu0 0.0
        %3000 = vmatprep.subr.mxu0 0.0
        %3001 = vmatpush1.msra.mxu0 0.0
        %3002 = vmatprep.subr.mxu0 0.0
        %3003 = vmatpush1.msra.mxu0 0.0
        %3004 = vmatprep.subr.mxu0 0.0
        %3005 = vmatpush1.msra.mxu0 0.0
        %3006 = vmatprep.subr.mxu0 0.0
        %3007 = vmatpush1.msra.mxu0 0.0
        %3008 = vmatprep.subr.mxu0 0.0
        %3009 = vmatpush1.msra.mxu0 0.0
        %3010 = vmatprep.subr.mxu0 0.0
        %3011 = vmatpush1.msra.mxu0 0.0
        %3012 = vmatprep.subr.mxu0 0.0
        %3013 = vmatpush1.msra.mxu0 0.0
        %3014 = vmatprep.subr.mxu0 0.0
        %3015 = vmatpush1.msra.mxu0 0.0
        %3016 = vmatprep.subr.mxu0 0.0
        %3017 = vmatpush1.msra.mxu0 0.0
        %3018 = vmatprep.subr.mxu0 0.0
        %3019 = vmatpush1.msra.mxu0 0.0
        %3020 = vmatprep.subr.mxu0 0.0
        %3021 = vmatpush1.msra.mxu0 0.0
        %3022 = vmatprep.subr.mxu0 0.0
        %3023 = vmatpush1.msra.mxu0 0.0
        %3024 = vmatprep.mubr.f32.mxu0 0.0
        %3025 = vmatmul.mubr.f32.gmra.mrb[0].mxu0 %v2958
        %v3026 = vpop.f32.mrb[0].mxu0
        %v3027 = vadd.f32 %v2955, %v3026
        %v3028 = vpop.f32.mrb[0].mxu0
        %3029 = vdwg.mxu0
        %vm3030 = vcmp.gt.f32.partialorder %v3027, 0.0
        %v3031 = vmul.f32 %v3027, 0.01
        %v3032 = vsel %vm3030, %v3027, %v3031
        %v3034 = vsel %vm2143, %v2518, 0
        %3036 = vmatprep.subr.mxu0 0.0
        %3037 = vmatpush1.msra.mxu0 %v3032
        %3038 = vmatprep.subr.mxu0 0.0
        %3039 = vmatpush1.msra.mxu0 0.0
        %3040 = vmatprep.subr.mxu0 0.0
        %3041 = vmatpush1.msra.mxu0 0.0
        %3042 = vmatprep.subr.mxu0 0.0
        %3043 = vmatpush1.msra.mxu0 0.0
        %3044 = vmatprep.subr.mxu0 0.0
        %3045 = vmatpush1.msra.mxu0 0.0
        %3046 = vmatprep.subr.mxu0 0.0
        %3047 = vmatpush1.msra.mxu0 0.0
        %3048 = vmatprep.subr.mxu0 0.0
        %3049 = vmatpush1.msra.mxu0 0.0
        %3050 = vmatprep.subr.mxu0 0.0
        %3051 = vmatpush1.msra.mxu0 0.0
        %3052 = vmatprep.subr.mxu0 0.0
        %3053 = vmatpush1.msra.mxu0 0.0
        %3054 = vmatprep.subr.mxu0 0.0
        %3055 = vmatpush1.msra.mxu0 0.0
        %3056 = vmatprep.subr.mxu0 0.0
        %3057 = vmatpush1.msra.mxu0 0.0
        %3058 = vmatprep.subr.mxu0 0.0
        %3059 = vmatpush1.msra.mxu0 0.0
        %3060 = vmatprep.subr.mxu0 0.0
        %3061 = vmatpush1.msra.mxu0 0.0
        %3062 = vmatprep.subr.mxu0 0.0
        %3063 = vmatpush1.msra.mxu0 0.0
        %3064 = vmatprep.subr.mxu0 0.0
        %3065 = vmatpush1.msra.mxu0 0.0
        %3066 = vmatprep.subr.mxu0 0.0
        %3067 = vmatpush1.msra.mxu0 0.0
        %3068 = vmatprep.subr.mxu0 0.0
        %3069 = vmatpush1.msra.mxu0 0.0
        %3070 = vmatprep.subr.mxu0 0.0
        %3071 = vmatpush1.msra.mxu0 0.0
        %3072 = vmatprep.subr.mxu0 0.0
        %3073 = vmatpush1.msra.mxu0 0.0
        %3074 = vmatprep.subr.mxu0 0.0
        %3075 = vmatpush1.msra.mxu0 0.0
        %3076 = vmatprep.subr.mxu0 0.0
        %3077 = vmatpush1.msra.mxu0 0.0
        %3078 = vmatprep.subr.mxu0 0.0
        %3079 = vmatpush1.msra.mxu0 0.0
        %3080 = vmatprep.subr.mxu0 0.0
        %3081 = vmatpush1.msra.mxu0 0.0
        %3082 = vmatprep.subr.mxu0 0.0
        %3083 = vmatpush1.msra.mxu0 0.0
        %3084 = vmatprep.subr.mxu0 0.0
        %3085 = vmatpush1.msra.mxu0 0.0
        %3086 = vmatprep.subr.mxu0 0.0
        %3087 = vmatpush1.msra.mxu0 0.0
        %3088 = vmatprep.subr.mxu0 0.0
        %3089 = vmatpush1.msra.mxu0 0.0
        %3090 = vmatprep.subr.mxu0 0.0
        %3091 = vmatpush1.msra.mxu0 0.0
        %3092 = vmatprep.subr.mxu0 0.0
        %3093 = vmatpush1.msra.mxu0 0.0
        %3094 = vmatprep.subr.mxu0 0.0
        %3095 = vmatpush1.msra.mxu0 0.0
        %3096 = vmatprep.subr.mxu0 0.0
        %3097 = vmatpush1.msra.mxu0 0.0
        %3098 = vmatprep.subr.mxu0 0.0
        %3099 = vmatpush1.msra.mxu0 0.0
        %3100 = vmatprep.mubr.f32.mxu0 0.0
        %3101 = vmatmul.mubr.f32.gmra.mrb[0].mxu0 %v3034
        %v3102 = vpop.f32.mrb[0].mxu0
        %v3103 = vadd.f32 0.0, %v3102
        %v3104 = vpop.f32.mrb[0].mxu0
        %3105 = vdwg.mxu0
        %v3106 = vadd.f32 %v2786, %v3103
        %v3108 = vsel %vm1738, %v3106, 0
        %3110 = vmatprep.subr.mxu0 0.0
        %3111 = vmatpush1.msra.mxu0 %v2527
        %3112 = vmatprep.subr.mxu0 0.0
        %3113 = vmatpush1.msra.mxu0 %v2528
        %3114 = vmatprep.subr.mxu0 0.0
        %3115 = vmatpush1.msra.mxu0 0.0
        %3116 = vmatprep.subr.mxu0 0.0
        %3117 = vmatpush1.msra.mxu0 0.0
        %3118 = vmatprep.subr.mxu0 0.0
        %3119 = vmatpush1.msra.mxu0 0.0
        %3120 = vmatprep.subr.mxu0 0.0
        %3121 = vmatpush1.msra.mxu0 0.0
        %3122 = vmatprep.subr.mxu0 0.0
        %3123 = vmatpush1.msra.mxu0 0.0
        %3124 = vmatprep.subr.mxu0 0.0
        %3125 = vmatpush1.msra.mxu0 0.0
        %3126 = vmatprep.subr.mxu0 0.0
        %3127 = vmatpush1.msra.mxu0 0.0
        %3128 = vmatprep.subr.mxu0 0.0
        %3129 = vmatpush1.msra.mxu0 0.0
        %3130 = vmatprep.subr.mxu0 0.0
        %3131 = vmatpush1.msra.mxu0 0.0
        %3132 = vmatprep.subr.mxu0 0.0
        %3133 = vmatpush1.msra.mxu0 0.0
        %3134 = vmatprep.subr.mxu0 0.0
        %3135 = vmatpush1.msra.mxu0 0.0
        %3136 = vmatprep.subr.mxu0 0.0
        %3137 = vmatpush1.msra.mxu0 0.0
        %3138 = vmatprep.subr.mxu0 0.0
        %3139 = vmatpush1.msra.mxu0 0.0
        %3140 = vmatprep.subr.mxu0 0.0
        %3141 = vmatpush1.msra.mxu0 0.0
        %3142 = vmatprep.subr.mxu0 0.0
        %3143 = vmatpush1.msra.mxu0 0.0
        %3144 = vmatprep.subr.mxu0 0.0
        %3145 = vmatpush1.msra.mxu0 0.0
        %3146 = vmatprep.subr.mxu0 0.0
        %3147 = vmatpush1.msra.mxu0 0.0
        %3148 = vmatprep.subr.mxu0 0.0
        %3149 = vmatpush1.msra.mxu0 0.0
        %3150 = vmatprep.subr.mxu0 0.0
        %3151 = vmatpush1.msra.mxu0 0.0
        %3152 = vmatprep.subr.mxu0 0.0
        %3153 = vmatpush1.msra.mxu0 0.0
        %3154 = vmatprep.subr.mxu0 0.0
        %3155 = vmatpush1.msra.mxu0 0.0
        %3156 = vmatprep.subr.mxu0 0.0
        %3157 = vmatpush1.msra.mxu0 0.0
        %3158 = vmatprep.subr.mxu0 0.0
        %3159 = vmatpush1.msra.mxu0 0.0
        %3160 = vmatprep.subr.mxu0 0.0
        %3161 = vmatpush1.msra.mxu0 0.0
        %3162 = vmatprep.subr.mxu0 0.0
        %3163 = vmatpush1.msra.mxu0 0.0
        %3164 = vmatprep.subr.mxu0 0.0
        %3165 = vmatpush1.msra.mxu0 0.0
        %3166 = vmatprep.subr.mxu0 0.0
        %3167 = vmatpush1.msra.mxu0 0.0
        %3168 = vmatprep.subr.mxu0 0.0
        %3169 = vmatpush1.msra.mxu0 0.0
        %3170 = vmatprep.subr.mxu0 0.0
        %3171 = vmatpush1.msra.mxu0 0.0
        %3172 = vmatprep.subr.mxu0 0.0
        %3173 = vmatpush1.msra.mxu0 0.0
        %3174 = vmatprep.mubr.f32.mxu0 0.0
        %3175 = vmatmul.mubr.f32.gmra.mrb[0].mxu0 %v3108
        %v3176 = vpop.f32.mrb[0].mxu0
        %v3177 = vadd.f32 %v2791, %v3176
        %v3178 = vpop.f32.mrb[0].mxu0
        %3179 = vdwg.mxu0
        %vm3180 = vcmp.gt.f32.partialorder %v3177, 0.0
        %v3181 = vmul.f32 %v3177, 0.01
        %v3182 = vsel %vm3180, %v3177, %v3181
        %v3184 = vsel %vm1738, %v3182, 0
        %3186 = vmatprep.subr.mxu0 0.0
        %3187 = vmatpush1.msra.mxu0 %v2530
        %3188 = vmatprep.subr.mxu0 0.0
        %3189 = vmatpush1.msra.mxu0 %v2531
        %3190 = vmatprep.subr.mxu0 0.0
        %3191 = vmatpush1.msra.mxu0 0.0
        %3192 = vmatprep.subr.mxu0 0.0
        %3193 = vmatpush1.msra.mxu0 0.0
        %3194 = vmatprep.subr.mxu0 0.0
        %3195 = vmatpush1.msra.mxu0 0.0
        %3196 = vmatprep.subr.mxu0 0.0
        %3197 = vmatpush1.msra.mxu0 0.0
        %3198 = vmatprep.subr.mxu0 0.0
        %3199 = vmatpush1.msra.mxu0 0.0
        %3200 = vmatprep.subr.mxu0 0.0
        %3201 = vmatpush1.msra.mxu0 0.0
        %3202 = vmatprep.subr.mxu0 0.0
        %3203 = vmatpush1.msra.mxu0 0.0
        %3204 = vmatprep.subr.mxu0 0.0
        %3205 = vmatpush1.msra.mxu0 0.0
        %3206 = vmatprep.subr.mxu0 0.0
        %3207 = vmatpush1.msra.mxu0 0.0
        %3208 = vmatprep.subr.mxu0 0.0
        %3209 = vmatpush1.msra.mxu0 0.0
        %3210 = vmatprep.subr.mxu0 0.0
        %3211 = vmatpush1.msra.mxu0 0.0
        %3212 = vmatprep.subr.mxu0 0.0
        %3213 = vmatpush1.msra.mxu0 0.0
        %3214 = vmatprep.subr.mxu0 0.0
        %3215 = vmatpush1.msra.mxu0 0.0
        %3216 = vmatprep.subr.mxu0 0.0
        %3217 = vmatpush1.msra.mxu0 0.0
        %3218 = vmatprep.subr.mxu0 0.0
        %3219 = vmatpush1.msra.mxu0 0.0
        %3220 = vmatprep.subr.mxu0 0.0
        %3221 = vmatpush1.msra.mxu0 0.0
        %3222 = vmatprep.subr.mxu0 0.0
        %3223 = vmatpush1.msra.mxu0 0.0
        %3224 = vmatprep.subr.mxu0 0.0
        %3225 = vmatpush1.msra.mxu0 0.0
        %3226 = vmatprep.subr.mxu0 0.0
        %3227 = vmatpush1.msra.mxu0 0.0
        %3228 = vmatprep.subr.mxu0 0.0
        %3229 = vmatpush1.msra.mxu0 0.0
        %3230 = vmatprep.subr.mxu0 0.0
        %3231 = vmatpush1.msra.mxu0 0.0
        %3232 = vmatprep.subr.mxu0 0.0
        %3233 = vmatpush1.msra.mxu0 0.0
        %3234 = vmatprep.subr.mxu0 0.0
        %3235 = vmatpush1.msra.mxu0 0.0
        %3236 = vmatprep.subr.mxu0 0.0
        %3237 = vmatpush1.msra.mxu0 0.0
        %3238 = vmatprep.subr.mxu0 0.0
        %3239 = vmatpush1.msra.mxu0 0.0
        %3240 = vmatprep.subr.mxu0 0.0
        %3241 = vmatpush1.msra.mxu0 0.0
        %3242 = vmatprep.subr.mxu0 0.0
        %3243 = vmatpush1.msra.mxu0 0.0
        %3244 = vmatprep.subr.mxu0 0.0
        %3245 = vmatpush1.msra.mxu0 0.0
        %3246 = vmatprep.subr.mxu0 0.0
        %3247 = vmatpush1.msra.mxu0 0.0
        %3248 = vmatprep.subr.mxu0 0.0
        %3249 = vmatpush1.msra.mxu0 0.0
        %3250 = vmatprep.mubr.f32.mxu0 0.0
        %3251 = vmatmul.mubr.f32.gmra.mrb[0].mxu0 %v3184
        %v3252 = vpop.f32.mrb[0].mxu0
        %v3253 = vadd.f32 %v2873, %v3252
        %v3254 = vpop.f32.mrb[0].mxu0
        %3255 = vdwg.mxu0
        %vm3256 = vcmp.gt.f32.partialorder %v3253, 0.0
        %v3257 = vmul.f32 %v3253, 0.01
        %v3258 = vsel %vm3256, %v3253, %v3257
        %v3260 = vsel %vm1738, %v3258, 0
        %3262 = vmatprep.subr.mxu0 0.0
        %3263 = vmatpush1.msra.mxu0 %v2533
        %3264 = vmatprep.subr.mxu0 0.0
        %3265 = vmatpush1.msra.mxu0 %v2534
        %3266 = vmatprep.subr.mxu0 0.0
        %3267 = vmatpush1.msra.mxu0 0.0
        %3268 = vmatprep.subr.mxu0 0.0
        %3269 = vmatpush1.msra.mxu0 0.0
        %3270 = vmatprep.subr.mxu0 0.0
        %3271 = vmatpush1.msra.mxu0 0.0
        %3272 = vmatprep.subr.mxu0 0.0
        %3273 = vmatpush1.msra.mxu0 0.0
        %3274 = vmatprep.subr.mxu0 0.0
        %3275 = vmatpush1.msra.mxu0 0.0
        %3276 = vmatprep.subr.mxu0 0.0
        %3277 = vmatpush1.msra.mxu0 0.0
        %3278 = vmatprep.subr.mxu0 0.0
        %3279 = vmatpush1.msra.mxu0 0.0
        %3280 = vmatprep.subr.mxu0 0.0
        %3281 = vmatpush1.msra.mxu0 0.0
        %3282 = vmatprep.subr.mxu0 0.0
        %3283 = vmatpush1.msra.mxu0 0.0
        %3284 = vmatprep.subr.mxu0 0.0
        %3285 = vmatpush1.msra.mxu0 0.0
        %3286 = vmatprep.subr.mxu0 0.0
        %3287 = vmatpush1.msra.mxu0 0.0
        %3288 = vmatprep.subr.mxu0 0.0
        %3289 = vmatpush1.msra.mxu0 0.0
        %3290 = vmatprep.subr.mxu0 0.0
        %3291 = vmatpush1.msra.mxu0 0.0
        %3292 = vmatprep.subr.mxu0 0.0
        %3293 = vmatpush1.msra.mxu0 0.0
        %3294 = vmatprep.subr.mxu0 0.0
        %3295 = vmatpush1.msra.mxu0 0.0
        %3296 = vmatprep.subr.mxu0 0.0
        %3297 = vmatpush1.msra.mxu0 0.0
        %3298 = vmatprep.subr.mxu0 0.0
        %3299 = vmatpush1.msra.mxu0 0.0
        %3300 = vmatprep.subr.mxu0 0.0
        %3301 = vmatpush1.msra.mxu0 0.0
        %3302 = vmatprep.subr.mxu0 0.0
        %3303 = vmatpush1.msra.mxu0 0.0
        %3304 = vmatprep.subr.mxu0 0.0
        %3305 = vmatpush1.msra.mxu0 0.0
        %3306 = vmatprep.subr.mxu0 0.0
        %3307 = vmatpush1.msra.mxu0 0.0
        %3308 = vmatprep.subr.mxu0 0.0
        %3309 = vmatpush1.msra.mxu0 0.0
        %3310 = vmatprep.subr.mxu0 0.0
        %3311 = vmatpush1.msra.mxu0 0.0
        %3312 = vmatprep.subr.mxu0 0.0
        %3313 = vmatpush1.msra.mxu0 0.0
        %3314 = vmatprep.subr.mxu0 0.0
        %3315 = vmatpush1.msra.mxu0 0.0
        %3316 = vmatprep.subr.mxu0 0.0
        %3317 = vmatpush1.msra.mxu0 0.0
        %3318 = vmatprep.subr.mxu0 0.0
        %3319 = vmatpush1.msra.mxu0 0.0
        %3320 = vmatprep.subr.mxu0 0.0
        %3321 = vmatpush1.msra.mxu0 0.0
        %3322 = vmatprep.subr.mxu0 0.0
        %3323 = vmatpush1.msra.mxu0 0.0
        %3324 = vmatprep.subr.mxu0 0.0
        %3325 = vmatpush1.msra.mxu0 0.0
        %3326 = vmatprep.mubr.f32.mxu0 0.0
        %3327 = vmatmul.mubr.f32.gmra.mrb[0].mxu0 %v3260
        %v3328 = vpop.f32.mrb[0].mxu0
        %v3329 = vadd.f32 %v2955, %v3328
        %v3330 = vpop.f32.mrb[0].mxu0
        %3331 = vdwg.mxu0
        %vm3332 = vcmp.gt.f32.partialorder %v3329, 0.0
        %v3333 = vmul.f32 %v3329, 0.01
        %v3334 = vsel %vm3332, %v3329, %v3333
        %3335 = vmatprep.subr.mxu0 0.0
        %3336 = vmatpush1.msra.mxu0 %v3334
        %3337 = vmatprep.subr.mxu0 0.0
        %3338 = vmatpush1.msra.mxu0 0.0
        %3339 = vmatprep.subr.mxu0 0.0
        %3340 = vmatpush1.msra.mxu0 0.0
        %3341 = vmatprep.subr.mxu0 0.0
        %3342 = vmatpush1.msra.mxu0 0.0
        %3343 = vmatprep.subr.mxu0 0.0
        %3344 = vmatpush1.msra.mxu0 0.0
        %3345 = vmatprep.subr.mxu0 0.0
        %3346 = vmatpush1.msra.mxu0 0.0
        %3347 = vmatprep.subr.mxu0 0.0
        %3348 = vmatpush1.msra.mxu0 0.0
        %3349 = vmatprep.subr.mxu0 0.0
        %3350 = vmatpush1.msra.mxu0 0.0
        %3351 = vmatprep.subr.mxu0 0.0
        %3352 = vmatpush1.msra.mxu0 0.0
        %3353 = vmatprep.subr.mxu0 0.0
        %3354 = vmatpush1.msra.mxu0 0.0
        %3355 = vmatprep.subr.mxu0 0.0
        %3356 = vmatpush1.msra.mxu0 0.0
        %3357 = vmatprep.subr.mxu0 0.0
        %3358 = vmatpush1.msra.mxu0 0.0
        %3359 = vmatprep.subr.mxu0 0.0
        %3360 = vmatpush1.msra.mxu0 0.0
        %3361 = vmatprep.subr.mxu0 0.0
        %3362 = vmatpush1.msra.mxu0 0.0
        %3363 = vmatprep.subr.mxu0 0.0
        %3364 = vmatpush1.msra.mxu0 0.0
        %3365 = vmatprep.subr.mxu0 0.0
        %3366 = vmatpush1.msra.mxu0 0.0
        %3367 = vmatprep.subr.mxu0 0.0
        %3368 = vmatpush1.msra.mxu0 0.0
        %3369 = vmatprep.subr.mxu0 0.0
        %3370 = vmatpush1.msra.mxu0 0.0
        %3371 = vmatprep.subr.mxu0 0.0
        %3372 = vmatpush1.msra.mxu0 0.0
        %3373 = vmatprep.subr.mxu0 0.0
        %3374 = vmatpush1.msra.mxu0 0.0
        %3375 = vmatprep.subr.mxu0 0.0
        %3376 = vmatpush1.msra.mxu0 0.0
        %3377 = vmatprep.subr.mxu0 0.0
        %3378 = vmatpush1.msra.mxu0 0.0
        %3379 = vmatprep.subr.mxu0 0.0
        %3380 = vmatpush1.msra.mxu0 0.0
        %3381 = vmatprep.subr.mxu0 0.0
        %3382 = vmatpush1.msra.mxu0 0.0
        %3383 = vmatprep.subr.mxu0 0.0
        %3384 = vmatpush1.msra.mxu0 0.0
        %3385 = vmatprep.subr.mxu0 0.0
        %3386 = vmatpush1.msra.mxu0 0.0
        %3387 = vmatprep.subr.mxu0 0.0
        %3388 = vmatpush1.msra.mxu0 0.0
        %3389 = vmatprep.subr.mxu0 0.0
        %3390 = vmatpush1.msra.mxu0 0.0
        %3391 = vmatprep.subr.mxu0 0.0
        %3392 = vmatpush1.msra.mxu0 0.0
        %3393 = vmatprep.subr.mxu0 0.0
        %3394 = vmatpush1.msra.mxu0 0.0
        %3395 = vmatprep.subr.mxu0 0.0
        %3396 = vmatpush1.msra.mxu0 0.0
        %3397 = vmatprep.subr.mxu0 0.0
        %3398 = vmatpush1.msra.mxu0 0.0
        %3399 = vmatprep.mubr.f32.mxu0 0.0
        %3400 = vmatmul.mubr.f32.gmra.mrb[0].mxu0 %v3034
        %v3401 = vpop.f32.mrb[0].mxu0
        %v3402 = vadd.f32 0.0, %v3401
        %v3403 = vpop.f32.mrb[0].mxu0
        %3404 = vdwg.mxu0
        %v3405 = vadd.f32 %v3106, %v3402
        %3407 = vrot.lane.b32.xlu0 %v3405, 16
        %v3408 = vpop.permute.xlu0 %3407
        %v3410 = vsel %vm1738, %v2516, %v3408
        %v3411 = vld [vmem:[%s57] sm:$0xff]
        %v3412 = vld [vmem:[%s57 + $0x8] sm:$0xff]
        %v3413 = vld [vmem:[%s57 + $0x10] sm:$0xff]
        %v3414 = vld [vmem:[%s57 + $0x18] sm:$0xff]
        %v3415 = vld [vmem:[#allocation25] sm:$0x1]
        %v3416 = vld [vmem:[%s61] sm:$0xff]
        %v3417 = vld [vmem:[%s61 + $0x8] sm:$0xff]
        %v3418 = vld [vmem:[#allocation26] sm:$0x1]
        %v3419 = vld [vmem:[%s65] sm:$0xff]
        %v3420 = vld [vmem:[%s65 + $0x8] sm:$0xff]
        %v3421 = vld [vmem:[%s67] sm:$0x1]
        %v3422 = vld [vmem:[%s69] sm:$0xff]
        %v3423 = vld [vmem:[%s71] sm:$0x1]
        %v3424 = vld [vmem:[%s73] sm:$0xff]
        %v3425 = vld [vmem:[%s73 + $0x8] sm:$0xff]
        %v3426 = vld [vmem:[%s75] sm:$0x1]
        %v3427 = vld [vmem:[%s77] sm:$0xff]
        %v3428 = vld [vmem:[%s77 + $0x8] sm:$0xff]
        %v3429 = vld [vmem:[%s79] sm:$0x1]
        %v3430 = vld [vmem:[%s81] sm:$0xff]
        %v3431 = vld [vmem:[%s83] sm:$0x1]
        %v3432 = vld [vmem:[%s85] sm:$0xff]
        %v3433 = vld [vmem:[%s85 + $0x8] sm:$0xff]
        %v3434 = vld [vmem:[%s87] sm:$0x1]
        %v3435 = vld [vmem:[%s89] sm:$0xff]
        %v3436 = vld [vmem:[%s89 + $0x8] sm:$0xff]
        %v3437 = vld [vmem:[#allocation2] sm:$0x1]
        %v3439 = vlaneseq
        %v3440 = vshrl.u32 %v3439, 7
        %v3441 = vsub.s32 0, %v3440
        %v3442 = vrot.slane %v3415, %v3441
        %vm3444 = vcmask 261120
        %v3446 = vsel %vm3444, %v3410, 0
        %3448 = vmatprep.subr.mxu0 0.0
        %3449 = vmatpush1.msra.mxu0 %v3411
        %3450 = vmatprep.subr.mxu0 0.0
        %3451 = vmatpush1.msra.mxu0 %v3412
        %3452 = vmatprep.subr.mxu0 0.0
        %3453 = vmatpush1.msra.mxu0 %v3413
        %3454 = vmatprep.subr.mxu0 0.0
        %3455 = vmatpush1.msra.mxu0 %v3414
        %3456 = vmatprep.subr.mxu0 0.0
        %3457 = vmatpush1.msra.mxu0 0.0
        %3458 = vmatprep.subr.mxu0 0.0
        %3459 = vmatpush1.msra.mxu0 0.0
        %3460 = vmatprep.subr.mxu0 0.0
        %3461 = vmatpush1.msra.mxu0 0.0
        %3462 = vmatprep.subr.mxu0 0.0
        %3463 = vmatpush1.msra.mxu0 0.0
        %3464 = vmatprep.subr.mxu0 0.0
        %3465 = vmatpush1.msra.mxu0 0.0
        %3466 = vmatprep.subr.mxu0 0.0
        %3467 = vmatpush1.msra.mxu0 0.0
        %3468 = vmatprep.subr.mxu0 0.0
        %3469 = vmatpush1.msra.mxu0 0.0
        %3470 = vmatprep.subr.mxu0 0.0
        %3471 = vmatpush1.msra.mxu0 0.0
        %3472 = vmatprep.subr.mxu0 0.0
        %3473 = vmatpush1.msra.mxu0 0.0
        %3474 = vmatprep.subr.mxu0 0.0
        %3475 = vmatpush1.msra.mxu0 0.0
        %3476 = vmatprep.subr.mxu0 0.0
        %3477 = vmatpush1.msra.mxu0 0.0
        %3478 = vmatprep.subr.mxu0 0.0
        %3479 = vmatpush1.msra.mxu0 0.0
        %3480 = vmatprep.subr.mxu0 0.0
        %3481 = vmatpush1.msra.mxu0 0.0
        %3482 = vmatprep.subr.mxu0 0.0
        %3483 = vmatpush1.msra.mxu0 0.0
        %3484 = vmatprep.subr.mxu0 0.0
        %3485 = vmatpush1.msra.mxu0 0.0
        %3486 = vmatprep.subr.mxu0 0.0
        %3487 = vmatpush1.msra.mxu0 0.0
        %3488 = vmatprep.subr.mxu0 0.0
        %3489 = vmatpush1.msra.mxu0 0.0
        %3490 = vmatprep.subr.mxu0 0.0
        %3491 = vmatpush1.msra.mxu0 0.0
        %3492 = vmatprep.subr.mxu0 0.0
        %3493 = vmatpush1.msra.mxu0 0.0
        %3494 = vmatprep.subr.mxu0 0.0
        %3495 = vmatpush1.msra.mxu0 0.0
        %3496 = vmatprep.subr.mxu0 0.0
        %3497 = vmatpush1.msra.mxu0 0.0
        %3498 = vmatprep.subr.mxu0 0.0
        %3499 = vmatpush1.msra.mxu0 0.0
        %3500 = vmatprep.subr.mxu0 0.0
        %3501 = vmatpush1.msra.mxu0 0.0
        %3502 = vmatprep.subr.mxu0 0.0
        %3503 = vmatpush1.msra.mxu0 0.0
        %3504 = vmatprep.subr.mxu0 0.0
        %3505 = vmatpush1.msra.mxu0 0.0
        %3506 = vmatprep.subr.mxu0 0.0
        %3507 = vmatpush1.msra.mxu0 0.0
        %3508 = vmatprep.subr.mxu0 0.0
        %3509 = vmatpush1.msra.mxu0 0.0
        %3510 = vmatprep.subr.mxu0 0.0
        %3511 = vmatpush1.msra.mxu0 0.0
        %3512 = vmatprep.mubr.f32.mxu0 0.0
        %3513 = vmatmul.mubr.f32.gmra.mrb[0].mxu0 %v3446
        %v3514 = vpop.f32.mrb[0].mxu0
        %v3515 = vadd.f32 %v3442, %v3514
        %v3516 = vpop.f32.mrb[0].mxu0
        %3517 = vdwg.mxu0
        %vm3518 = vcmp.gt.f32.partialorder %v3515, 0.0
        %v3519 = vmul.f32 %v3515, 0.01
        %v3520 = vsel %vm3518, %v3515, %v3519
        %v3522 = vlaneseq
        %v3523 = vshrl.u32 %v3522, 7
        %v3524 = vsub.s32 0, %v3523
        %v3525 = vrot.slane %v3418, %v3524
        %v3528 = vsel %vm1738, %v3520, 0
        %3530 = vmatprep.subr.mxu0 0.0
        %3531 = vmatpush1.msra.mxu0 %v3416
        %3532 = vmatprep.subr.mxu0 0.0
        %3533 = vmatpush1.msra.mxu0 %v3417
        %3534 = vmatprep.subr.mxu0 0.0
        %3535 = vmatpush1.msra.mxu0 0.0
        %3536 = vmatprep.subr.mxu0 0.0
        %3537 = vmatpush1.msra.mxu0 0.0
        %3538 = vmatprep.subr.mxu0 0.0
        %3539 = vmatpush1.msra.mxu0 0.0
        %3540 = vmatprep.subr.mxu0 0.0
        %3541 = vmatpush1.msra.mxu0 0.0
        %3542 = vmatprep.subr.mxu0 0.0
        %3543 = vmatpush1.msra.mxu0 0.0
        %3544 = vmatprep.subr.mxu0 0.0
        %3545 = vmatpush1.msra.mxu0 0.0
        %3546 = vmatprep.subr.mxu0 0.0
        %3547 = vmatpush1.msra.mxu0 0.0
        %3548 = vmatprep.subr.mxu0 0.0
        %3549 = vmatpush1.msra.mxu0 0.0
        %3550 = vmatprep.subr.mxu0 0.0
        %3551 = vmatpush1.msra.mxu0 0.0
        %3552 = vmatprep.subr.mxu0 0.0
        %3553 = vmatpush1.msra.mxu0 0.0
        %3554 = vmatprep.subr.mxu0 0.0
        %3555 = vmatpush1.msra.mxu0 0.0
        %3556 = vmatprep.subr.mxu0 0.0
        %3557 = vmatpush1.msra.mxu0 0.0
        %3558 = vmatprep.subr.mxu0 0.0
        %3559 = vmatpush1.msra.mxu0 0.0
        %3560 = vmatprep.subr.mxu0 0.0
        %3561 = vmatpush1.msra.mxu0 0.0
        %3562 = vmatprep.subr.mxu0 0.0
        %3563 = vmatpush1.msra.mxu0 0.0
        %3564 = vmatprep.subr.mxu0 0.0
        %3565 = vmatpush1.msra.mxu0 0.0
        %3566 = vmatprep.subr.mxu0 0.0
        %3567 = vmatpush1.msra.mxu0 0.0
        %3568 = vmatprep.subr.mxu0 0.0
        %3569 = vmatpush1.msra.mxu0 0.0
        %3570 = vmatprep.subr.mxu0 0.0
        %3571 = vmatpush1.msra.mxu0 0.0
        %3572 = vmatprep.subr.mxu0 0.0
        %3573 = vmatpush1.msra.mxu0 0.0
        %3574 = vmatprep.subr.mxu0 0.0
        %3575 = vmatpush1.msra.mxu0 0.0
        %3576 = vmatprep.subr.mxu0 0.0
        %3577 = vmatpush1.msra.mxu0 0.0
        %3578 = vmatprep.subr.mxu0 0.0
        %3579 = vmatpush1.msra.mxu0 0.0
        %3580 = vmatprep.subr.mxu0 0.0
        %3581 = vmatpush1.msra.mxu0 0.0
        %3582 = vmatprep.subr.mxu0 0.0
        %3583 = vmatpush1.msra.mxu0 0.0
        %3584 = vmatprep.subr.mxu0 0.0
        %3585 = vmatpush1.msra.mxu0 0.0
        %3586 = vmatprep.subr.mxu0 0.0
        %3587 = vmatpush1.msra.mxu0 0.0
        %3588 = vmatprep.subr.mxu0 0.0
        %3589 = vmatpush1.msra.mxu0 0.0
        %3590 = vmatprep.subr.mxu0 0.0
        %3591 = vmatpush1.msra.mxu0 0.0
        %3592 = vmatprep.subr.mxu0 0.0
        %3593 = vmatpush1.msra.mxu0 0.0
        %3594 = vmatprep.mubr.f32.mxu0 0.0
        %3595 = vmatmul.mubr.f32.gmra.mrb[0].mxu0 %v3528
        %v3596 = vpop.f32.mrb[0].mxu0
        %v3597 = vadd.f32 %v3525, %v3596
        %v3598 = vpop.f32.mrb[0].mxu0
        %3599 = vdwg.mxu0
        %vm3600 = vcmp.gt.f32.partialorder %v3597, 0.0
        %v3601 = vmul.f32 %v3597, 0.01
        %v3602 = vsel %vm3600, %v3597, %v3601
        %v3604 = vlaneseq
        %v3605 = vshrl.u32 %v3604, 7
        %v3606 = vsub.s32 0, %v3605
        %v3607 = vrot.slane %v3421, %v3606
        %v3610 = vsel %vm1738, %v3602, 0
        %3612 = vmatprep.subr.mxu0 0.0
        %3613 = vmatpush1.msra.mxu0 %v3419
        %3614 = vmatprep.subr.mxu0 0.0
        %3615 = vmatpush1.msra.mxu0 %v3420
        %3616 = vmatprep.subr.mxu0 0.0
        %3617 = vmatpush1.msra.mxu0 0.0
        %3618 = vmatprep.subr.mxu0 0.0
        %3619 = vmatpush1.msra.mxu0 0.0
        %3620 = vmatprep.subr.mxu0 0.0
        %3621 = vmatpush1.msra.mxu0 0.0
        %3622 = vmatprep.subr.mxu0 0.0
        %3623 = vmatpush1.msra.mxu0 0.0
        %3624 = vmatprep.subr.mxu0 0.0
        %3625 = vmatpush1.msra.mxu0 0.0
        %3626 = vmatprep.subr.mxu0 0.0
        %3627 = vmatpush1.msra.mxu0 0.0
        %3628 = vmatprep.subr.mxu0 0.0
        %3629 = vmatpush1.msra.mxu0 0.0
        %3630 = vmatprep.subr.mxu0 0.0
        %3631 = vmatpush1.msra.mxu0 0.0
        %3632 = vmatprep.subr.mxu0 0.0
        %3633 = vmatpush1.msra.mxu0 0.0
        %3634 = vmatprep.subr.mxu0 0.0
        %3635 = vmatpush1.msra.mxu0 0.0
        %3636 = vmatprep.subr.mxu0 0.0
        %3637 = vmatpush1.msra.mxu0 0.0
        %3638 = vmatprep.subr.mxu0 0.0
        %3639 = vmatpush1.msra.mxu0 0.0
        %3640 = vmatprep.subr.mxu0 0.0
        %3641 = vmatpush1.msra.mxu0 0.0
        %3642 = vmatprep.subr.mxu0 0.0
        %3643 = vmatpush1.msra.mxu0 0.0
        %3644 = vmatprep.subr.mxu0 0.0
        %3645 = vmatpush1.msra.mxu0 0.0
        %3646 = vmatprep.subr.mxu0 0.0
        %3647 = vmatpush1.msra.mxu0 0.0
        %3648 = vmatprep.subr.mxu0 0.0
        %3649 = vmatpush1.msra.mxu0 0.0
        %3650 = vmatprep.subr.mxu0 0.0
        %3651 = vmatpush1.msra.mxu0 0.0
        %3652 = vmatprep.subr.mxu0 0.0
        %3653 = vmatpush1.msra.mxu0 0.0
        %3654 = vmatprep.subr.mxu0 0.0
        %3655 = vmatpush1.msra.mxu0 0.0
        %3656 = vmatprep.subr.mxu0 0.0
        %3657 = vmatpush1.msra.mxu0 0.0
        %3658 = vmatprep.subr.mxu0 0.0
        %3659 = vmatpush1.msra.mxu0 0.0
        %3660 = vmatprep.subr.mxu0 0.0
        %3661 = vmatpush1.msra.mxu0 0.0
        %3662 = vmatprep.subr.mxu0 0.0
        %3663 = vmatpush1.msra.mxu0 0.0
        %3664 = vmatprep.subr.mxu0 0.0
        %3665 = vmatpush1.msra.mxu0 0.0
        %3666 = vmatprep.subr.mxu0 0.0
        %3667 = vmatpush1.msra.mxu0 0.0
        %3668 = vmatprep.subr.mxu0 0.0
        %3669 = vmatpush1.msra.mxu0 0.0
        %3670 = vmatprep.subr.mxu0 0.0
        %3671 = vmatpush1.msra.mxu0 0.0
        %3672 = vmatprep.subr.mxu0 0.0
        %3673 = vmatpush1.msra.mxu0 0.0
        %3674 = vmatprep.subr.mxu0 0.0
        %3675 = vmatpush1.msra.mxu0 0.0
        %3676 = vmatprep.mubr.f32.mxu0 0.0
        %3677 = vmatmul.mubr.f32.gmra.mrb[0].mxu0 %v3610
        %v3678 = vpop.f32.mrb[0].mxu0
        %v3679 = vadd.f32 %v3607, %v3678
        %v3680 = vpop.f32.mrb[0].mxu0
        %3681 = vdwg.mxu0
        %vm3682 = vcmp.gt.f32.partialorder %v3679, 0.0
        %v3683 = vmul.f32 %v3679, 0.01
        %v3684 = vsel %vm3682, %v3679, %v3683
        %v3686 = vlaneseq
        %v3687 = vshrl.u32 %v3686, 7
        %v3688 = vsub.s32 0, %v3687
        %v3689 = vrot.slane %v3423, %v3688
        %v3692 = vsel %vm2143, %v3684, 0
        %3694 = vmatprep.subr.mxu0 0.0
        %3695 = vmatpush1.msra.mxu0 %v3422
        %3696 = vmatprep.subr.mxu0 0.0
        %3697 = vmatpush1.msra.mxu0 0.0
        %3698 = vmatprep.subr.mxu0 0.0
        %3699 = vmatpush1.msra.mxu0 0.0
        %3700 = vmatprep.subr.mxu0 0.0
        %3701 = vmatpush1.msra.mxu0 0.0
        %3702 = vmatprep.subr.mxu0 0.0
        %3703 = vmatpush1.msra.mxu0 0.0
        %3704 = vmatprep.subr.mxu0 0.0
        %3705 = vmatpush1.msra.mxu0 0.0
        %3706 = vmatprep.subr.mxu0 0.0
        %3707 = vmatpush1.msra.mxu0 0.0
        %3708 = vmatprep.subr.mxu0 0.0
        %3709 = vmatpush1.msra.mxu0 0.0
        %3710 = vmatprep.subr.mxu0 0.0
        %3711 = vmatpush1.msra.mxu0 0.0
        %3712 = vmatprep.subr.mxu0 0.0
        %3713 = vmatpush1.msra.mxu0 0.0
        %3714 = vmatprep.subr.mxu0 0.0
        %3715 = vmatpush1.msra.mxu0 0.0
        %3716 = vmatprep.subr.mxu0 0.0
        %3717 = vmatpush1.msra.mxu0 0.0
        %3718 = vmatprep.subr.mxu0 0.0
        %3719 = vmatpush1.msra.mxu0 0.0
        %3720 = vmatprep.subr.mxu0 0.0
        %3721 = vmatpush1.msra.mxu0 0.0
        %3722 = vmatprep.subr.mxu0 0.0
        %3723 = vmatpush1.msra.mxu0 0.0
        %3724 = vmatprep.subr.mxu0 0.0
        %3725 = vmatpush1.msra.mxu0 0.0
        %3726 = vmatprep.subr.mxu0 0.0
        %3727 = vmatpush1.msra.mxu0 0.0
        %3728 = vmatprep.subr.mxu0 0.0
        %3729 = vmatpush1.msra.mxu0 0.0
        %3730 = vmatprep.subr.mxu0 0.0
        %3731 = vmatpush1.msra.mxu0 0.0
        %3732 = vmatprep.subr.mxu0 0.0
        %3733 = vmatpush1.msra.mxu0 0.0
        %3734 = vmatprep.subr.mxu0 0.0
        %3735 = vmatpush1.msra.mxu0 0.0
        %3736 = vmatprep.subr.mxu0 0.0
        %3737 = vmatpush1.msra.mxu0 0.0
        %3738 = vmatprep.subr.mxu0 0.0
        %3739 = vmatpush1.msra.mxu0 0.0
        %3740 = vmatprep.subr.mxu0 0.0
        %3741 = vmatpush1.msra.mxu0 0.0
        %3742 = vmatprep.subr.mxu0 0.0
        %3743 = vmatpush1.msra.mxu0 0.0
        %3744 = vmatprep.subr.mxu0 0.0
        %3745 = vmatpush1.msra.mxu0 0.0
        %3746 = vmatprep.subr.mxu0 0.0
        %3747 = vmatpush1.msra.mxu0 0.0
        %3748 = vmatprep.subr.mxu0 0.0
        %3749 = vmatpush1.msra.mxu0 0.0
        %3750 = vmatprep.subr.mxu0 0.0
        %3751 = vmatpush1.msra.mxu0 0.0
        %3752 = vmatprep.subr.mxu0 0.0
        %3753 = vmatpush1.msra.mxu0 0.0
        %3754 = vmatprep.subr.mxu0 0.0
        %3755 = vmatpush1.msra.mxu0 0.0
        %3756 = vmatprep.subr.mxu0 0.0
        %3757 = vmatpush1.msra.mxu0 0.0
        %3758 = vmatprep.mubr.f32.mxu0 0.0
        %3759 = vmatmul.mubr.f32.gmra.mrb[0].mxu0 %v3692
        %v3760 = vpop.f32.mrb[0].mxu0
        %v3761 = vadd.f32 %v3689, %v3760
        %v3762 = vpop.f32.mrb[0].mxu0
        %3763 = vdwg.mxu0
        %vm3764 = vcmp.gt.f32.partialorder %v3761, 0.0
        %v3765 = vmul.f32 %v3761, 0.01
        %v3766 = vsel %vm3764, %v3761, %v3765
        %v3768 = vlaneseq
        %v3769 = vshrl.u32 %v3768, 7
        %v3770 = vsub.s32 0, %v3769
        %v3771 = vrot.slane %v3426, %v3770
        %v3774 = vsel %vm1738, %v3766, 0
        %3776 = vmatprep.subr.mxu0 0.0
        %3777 = vmatpush1.msra.mxu0 %v3424
        %3778 = vmatprep.subr.mxu0 0.0
        %3779 = vmatpush1.msra.mxu0 %v3425
        %3780 = vmatprep.subr.mxu0 0.0
        %3781 = vmatpush1.msra.mxu0 0.0
        %3782 = vmatprep.subr.mxu0 0.0
        %3783 = vmatpush1.msra.mxu0 0.0
        %3784 = vmatprep.subr.mxu0 0.0
        %3785 = vmatpush1.msra.mxu0 0.0
        %3786 = vmatprep.subr.mxu0 0.0
        %3787 = vmatpush1.msra.mxu0 0.0
        %3788 = vmatprep.subr.mxu0 0.0
        %3789 = vmatpush1.msra.mxu0 0.0
        %3790 = vmatprep.subr.mxu0 0.0
        %3791 = vmatpush1.msra.mxu0 0.0
        %3792 = vmatprep.subr.mxu0 0.0
        %3793 = vmatpush1.msra.mxu0 0.0
        %3794 = vmatprep.subr.mxu0 0.0
        %3795 = vmatpush1.msra.mxu0 0.0
        %3796 = vmatprep.subr.mxu0 0.0
        %3797 = vmatpush1.msra.mxu0 0.0
        %3798 = vmatprep.subr.mxu0 0.0
        %3799 = vmatpush1.msra.mxu0 0.0
        %3800 = vmatprep.subr.mxu0 0.0
        %3801 = vmatpush1.msra.mxu0 0.0
        %3802 = vmatprep.subr.mxu0 0.0
        %3803 = vmatpush1.msra.mxu0 0.0
        %3804 = vmatprep.subr.mxu0 0.0
        %3805 = vmatpush1.msra.mxu0 0.0
        %3806 = vmatprep.subr.mxu0 0.0
        %3807 = vmatpush1.msra.mxu0 0.0
        %3808 = vmatprep.subr.mxu0 0.0
        %3809 = vmatpush1.msra.mxu0 0.0
        %3810 = vmatprep.subr.mxu0 0.0
        %3811 = vmatpush1.msra.mxu0 0.0
        %3812 = vmatprep.subr.mxu0 0.0
        %3813 = vmatpush1.msra.mxu0 0.0
        %3814 = vmatprep.subr.mxu0 0.0
        %3815 = vmatpush1.msra.mxu0 0.0
        %3816 = vmatprep.subr.mxu0 0.0
        %3817 = vmatpush1.msra.mxu0 0.0
        %3818 = vmatprep.subr.mxu0 0.0
        %3819 = vmatpush1.msra.mxu0 0.0
        %3820 = vmatprep.subr.mxu0 0.0
        %3821 = vmatpush1.msra.mxu0 0.0
        %3822 = vmatprep.subr.mxu0 0.0
        %3823 = vmatpush1.msra.mxu0 0.0
        %3824 = vmatprep.subr.mxu0 0.0
        %3825 = vmatpush1.msra.mxu0 0.0
        %3826 = vmatprep.subr.mxu0 0.0
        %3827 = vmatpush1.msra.mxu0 0.0
        %3828 = vmatprep.subr.mxu0 0.0
        %3829 = vmatpush1.msra.mxu0 0.0
        %3830 = vmatprep.subr.mxu0 0.0
        %3831 = vmatpush1.msra.mxu0 0.0
        %3832 = vmatprep.subr.mxu0 0.0
        %3833 = vmatpush1.msra.mxu0 0.0
        %3834 = vmatprep.subr.mxu0 0.0
        %3835 = vmatpush1.msra.mxu0 0.0
        %3836 = vmatprep.subr.mxu0 0.0
        %3837 = vmatpush1.msra.mxu0 0.0
        %3838 = vmatprep.subr.mxu0 0.0
        %3839 = vmatpush1.msra.mxu0 0.0
        %3840 = vmatprep.mubr.f32.mxu0 0.0
        %3841 = vmatmul.mubr.f32.gmra.mrb[0].mxu0 %v3774
        %v3842 = vpop.f32.mrb[0].mxu0
        %v3843 = vadd.f32 %v3771, %v3842
        %v3844 = vpop.f32.mrb[0].mxu0
        %3845 = vdwg.mxu0
        %vm3846 = vcmp.gt.f32.partialorder %v3843, 0.0
        %v3847 = vmul.f32 %v3843, 0.01
        %v3848 = vsel %vm3846, %v3843, %v3847
        %v3850 = vlaneseq
        %v3851 = vshrl.u32 %v3850, 7
        %v3852 = vsub.s32 0, %v3851
        %v3853 = vrot.slane %v3429, %v3852
        %v3856 = vsel %vm1738, %v3848, 0
        %3858 = vmatprep.subr.mxu0 0.0
        %3859 = vmatpush1.msra.mxu0 %v3427
        %3860 = vmatprep.subr.mxu0 0.0
        %3861 = vmatpush1.msra.mxu0 %v3428
        %3862 = vmatprep.subr.mxu0 0.0
        %3863 = vmatpush1.msra.mxu0 0.0
        %3864 = vmatprep.subr.mxu0 0.0
        %3865 = vmatpush1.msra.mxu0 0.0
        %3866 = vmatprep.subr.mxu0 0.0
        %3867 = vmatpush1.msra.mxu0 0.0
        %3868 = vmatprep.subr.mxu0 0.0
        %3869 = vmatpush1.msra.mxu0 0.0
        %3870 = vmatprep.subr.mxu0 0.0
        %3871 = vmatpush1.msra.mxu0 0.0
        %3872 = vmatprep.subr.mxu0 0.0
        %3873 = vmatpush1.msra.mxu0 0.0
        %3874 = vmatprep.subr.mxu0 0.0
        %3875 = vmatpush1.msra.mxu0 0.0
        %3876 = vmatprep.subr.mxu0 0.0
        %3877 = vmatpush1.msra.mxu0 0.0
        %3878 = vmatprep.subr.mxu0 0.0
        %3879 = vmatpush1.msra.mxu0 0.0
        %3880 = vmatprep.subr.mxu0 0.0
        %3881 = vmatpush1.msra.mxu0 0.0
        %3882 = vmatprep.subr.mxu0 0.0
        %3883 = vmatpush1.msra.mxu0 0.0
        %3884 = vmatprep.subr.mxu0 0.0
        %3885 = vmatpush1.msra.mxu0 0.0
        %3886 = vmatprep.subr.mxu0 0.0
        %3887 = vmatpush1.msra.mxu0 0.0
        %3888 = vmatprep.subr.mxu0 0.0
        %3889 = vmatpush1.msra.mxu0 0.0
        %3890 = vmatprep.subr.mxu0 0.0
        %3891 = vmatpush1.msra.mxu0 0.0
        %3892 = vmatprep.subr.mxu0 0.0
        %3893 = vmatpush1.msra.mxu0 0.0
        %3894 = vmatprep.subr.mxu0 0.0
        %3895 = vmatpush1.msra.mxu0 0.0
        %3896 = vmatprep.subr.mxu0 0.0
        %3897 = vmatpush1.msra.mxu0 0.0
        %3898 = vmatprep.subr.mxu0 0.0
        %3899 = vmatpush1.msra.mxu0 0.0
        %3900 = vmatprep.subr.mxu0 0.0
        %3901 = vmatpush1.msra.mxu0 0.0
        %3902 = vmatprep.subr.mxu0 0.0
        %3903 = vmatpush1.msra.mxu0 0.0
        %3904 = vmatprep.subr.mxu0 0.0
        %3905 = vmatpush1.msra.mxu0 0.0
        %3906 = vmatprep.subr.mxu0 0.0
        %3907 = vmatpush1.msra.mxu0 0.0
        %3908 = vmatprep.subr.mxu0 0.0
        %3909 = vmatpush1.msra.mxu0 0.0
        %3910 = vmatprep.subr.mxu0 0.0
        %3911 = vmatpush1.msra.mxu0 0.0
        %3912 = vmatprep.subr.mxu0 0.0
        %3913 = vmatpush1.msra.mxu0 0.0
        %3914 = vmatprep.subr.mxu0 0.0
        %3915 = vmatpush1.msra.mxu0 0.0
        %3916 = vmatprep.subr.mxu0 0.0
        %3917 = vmatpush1.msra.mxu0 0.0
        %3918 = vmatprep.subr.mxu0 0.0
        %3919 = vmatpush1.msra.mxu0 0.0
        %3920 = vmatprep.subr.mxu0 0.0
        %3921 = vmatpush1.msra.mxu0 0.0
        %3922 = vmatprep.mubr.f32.mxu0 0.0
        %3923 = vmatmul.mubr.f32.gmra.mrb[0].mxu0 %v3856
        %v3924 = vpop.f32.mrb[0].mxu0
        %v3925 = vadd.f32 %v3853, %v3924
        %v3926 = vpop.f32.mrb[0].mxu0
        %3927 = vdwg.mxu0
        %vm3928 = vcmp.gt.f32.partialorder %v3925, 0.0
        %v3929 = vmul.f32 %v3925, 0.01
        %v3930 = vsel %vm3928, %v3925, %v3929
        %vm3931 = vcmask 60416
        %v3932 = vsel %vm3931, %v3930, 0.0
        %v3933 = vrot.slane %v3932, 4
        %v3934 = vadd.f32 %v3932, %v3933
        %v3935 = vrot.slane %v3934, 2
        %v3936 = vadd.f32 %v3934, %v3935
        %v3937 = vrot.slane %v3936, 1
        %v3938 = vadd.f32 %v3936, %v3937
        %v3940 = vsel %vm2143, %v3938, 0
        %3942 = vmatprep.subr.mxu0 0.0
        %3943 = vmatpush1.msra.mxu0 %v3430
        %3944 = vmatprep.subr.mxu0 0.0
        %3945 = vmatpush1.msra.mxu0 0.0
        %3946 = vmatprep.subr.mxu0 0.0
        %3947 = vmatpush1.msra.mxu0 0.0
        %3948 = vmatprep.subr.mxu0 0.0
        %3949 = vmatpush1.msra.mxu0 0.0
        %3950 = vmatprep.subr.mxu0 0.0
        %3951 = vmatpush1.msra.mxu0 0.0
        %3952 = vmatprep.subr.mxu0 0.0
        %3953 = vmatpush1.msra.mxu0 0.0
        %3954 = vmatprep.subr.mxu0 0.0
        %3955 = vmatpush1.msra.mxu0 0.0
        %3956 = vmatprep.subr.mxu0 0.0
        %3957 = vmatpush1.msra.mxu0 0.0
        %3958 = vmatprep.subr.mxu0 0.0
        %3959 = vmatpush1.msra.mxu0 0.0
        %3960 = vmatprep.subr.mxu0 0.0
        %3961 = vmatpush1.msra.mxu0 0.0
        %3962 = vmatprep.subr.mxu0 0.0
        %3963 = vmatpush1.msra.mxu0 0.0
        %3964 = vmatprep.subr.mxu0 0.0
        %3965 = vmatpush1.msra.mxu0 0.0
        %3966 = vmatprep.subr.mxu0 0.0
        %3967 = vmatpush1.msra.mxu0 0.0
        %3968 = vmatprep.subr.mxu0 0.0
        %3969 = vmatpush1.msra.mxu0 0.0
        %3970 = vmatprep.subr.mxu0 0.0
        %3971 = vmatpush1.msra.mxu0 0.0
        %3972 = vmatprep.subr.mxu0 0.0
        %3973 = vmatpush1.msra.mxu0 0.0
        %3974 = vmatprep.subr.mxu0 0.0
        %3975 = vmatpush1.msra.mxu0 0.0
        %3976 = vmatprep.subr.mxu0 0.0
        %3977 = vmatpush1.msra.mxu0 0.0
        %3978 = vmatprep.subr.mxu0 0.0
        %3979 = vmatpush1.msra.mxu0 0.0
        %3980 = vmatprep.subr.mxu0 0.0
        %3981 = vmatpush1.msra.mxu0 0.0
        %3982 = vmatprep.subr.mxu0 0.0
        %3983 = vmatpush1.msra.mxu0 0.0
        %3984 = vmatprep.subr.mxu0 0.0
        %3985 = vmatpush1.msra.mxu0 0.0
        %3986 = vmatprep.subr.mxu0 0.0
        %3987 = vmatpush1.msra.mxu0 0.0
        %3988 = vmatprep.subr.mxu0 0.0
        %3989 = vmatpush1.msra.mxu0 0.0
        %3990 = vmatprep.subr.mxu0 0.0
        %3991 = vmatpush1.msra.mxu0 0.0
        %3992 = vmatprep.subr.mxu0 0.0
        %3993 = vmatpush1.msra.mxu0 0.0
        %3994 = vmatprep.subr.mxu0 0.0
        %3995 = vmatpush1.msra.mxu0 0.0
        %3996 = vmatprep.subr.mxu0 0.0
        %3997 = vmatpush1.msra.mxu0 0.0
        %3998 = vmatprep.subr.mxu0 0.0
        %3999 = vmatpush1.msra.mxu0 0.0
        %4000 = vmatprep.subr.mxu0 0.0
        %4001 = vmatpush1.msra.mxu0 0.0
        %4002 = vmatprep.subr.mxu0 0.0
        %4003 = vmatpush1.msra.mxu0 0.0
        %4004 = vmatprep.subr.mxu0 0.0
        %4005 = vmatpush1.msra.mxu0 0.0
        %4006 = vmatprep.mubr.f32.mxu0 0.0
        %4007 = vmatmul.mubr.f32.gmra.mrb[0].mxu0 %v3940
        %v4008 = vpop.f32.mrb[0].mxu0
        %v4009 = vadd.f32 %v3431, %v4008
        %v4010 = vpop.f32.mrb[0].mxu0
        %4011 = vdwg.mxu0
        %vm4012 = vcmp.gt.f32.partialorder %v4009, 0.0
        %v4013 = vmul.f32 %v4009, 0.01
        %v4014 = vsel %vm4012, %v4009, %v4013
        %v4016 = vsel %vm1738, %v4014, 0
        %4018 = vmatprep.subr.mxu0 0.0
        %4019 = vmatpush1.msra.mxu0 %v3432
        %4020 = vmatprep.subr.mxu0 0.0
        %4021 = vmatpush1.msra.mxu0 %v3433
        %4022 = vmatprep.subr.mxu0 0.0
        %4023 = vmatpush1.msra.mxu0 0.0
        %4024 = vmatprep.subr.mxu0 0.0
        %4025 = vmatpush1.msra.mxu0 0.0
        %4026 = vmatprep.subr.mxu0 0.0
        %4027 = vmatpush1.msra.mxu0 0.0
        %4028 = vmatprep.subr.mxu0 0.0
        %4029 = vmatpush1.msra.mxu0 0.0
        %4030 = vmatprep.subr.mxu0 0.0
        %4031 = vmatpush1.msra.mxu0 0.0
        %4032 = vmatprep.subr.mxu0 0.0
        %4033 = vmatpush1.msra.mxu0 0.0
        %4034 = vmatprep.subr.mxu0 0.0
        %4035 = vmatpush1.msra.mxu0 0.0
        %4036 = vmatprep.subr.mxu0 0.0
        %4037 = vmatpush1.msra.mxu0 0.0
        %4038 = vmatprep.subr.mxu0 0.0
        %4039 = vmatpush1.msra.mxu0 0.0
        %4040 = vmatprep.subr.mxu0 0.0
        %4041 = vmatpush1.msra.mxu0 0.0
        %4042 = vmatprep.subr.mxu0 0.0
        %4043 = vmatpush1.msra.mxu0 0.0
        %4044 = vmatprep.subr.mxu0 0.0
        %4045 = vmatpush1.msra.mxu0 0.0
        %4046 = vmatprep.subr.mxu0 0.0
        %4047 = vmatpush1.msra.mxu0 0.0
        %4048 = vmatprep.subr.mxu0 0.0
        %4049 = vmatpush1.msra.mxu0 0.0
        %4050 = vmatprep.subr.mxu0 0.0
        %4051 = vmatpush1.msra.mxu0 0.0
        %4052 = vmatprep.subr.mxu0 0.0
        %4053 = vmatpush1.msra.mxu0 0.0
        %4054 = vmatprep.subr.mxu0 0.0
        %4055 = vmatpush1.msra.mxu0 0.0
        %4056 = vmatprep.subr.mxu0 0.0
        %4057 = vmatpush1.msra.mxu0 0.0
        %4058 = vmatprep.subr.mxu0 0.0
        %4059 = vmatpush1.msra.mxu0 0.0
        %4060 = vmatprep.subr.mxu0 0.0
        %4061 = vmatpush1.msra.mxu0 0.0
        %4062 = vmatprep.subr.mxu0 0.0
        %4063 = vmatpush1.msra.mxu0 0.0
        %4064 = vmatprep.subr.mxu0 0.0
        %4065 = vmatpush1.msra.mxu0 0.0
        %4066 = vmatprep.subr.mxu0 0.0
        %4067 = vmatpush1.msra.mxu0 0.0
        %4068 = vmatprep.subr.mxu0 0.0
        %4069 = vmatpush1.msra.mxu0 0.0
        %4070 = vmatprep.subr.mxu0 0.0
        %4071 = vmatpush1.msra.mxu0 0.0
        %4072 = vmatprep.subr.mxu0 0.0
        %4073 = vmatpush1.msra.mxu0 0.0
        %4074 = vmatprep.subr.mxu0 0.0
        %4075 = vmatpush1.msra.mxu0 0.0
        %4076 = vmatprep.subr.mxu0 0.0
        %4077 = vmatpush1.msra.mxu0 0.0
        %4078 = vmatprep.subr.mxu0 0.0
        %4079 = vmatpush1.msra.mxu0 0.0
        %4080 = vmatprep.subr.mxu0 0.0
        %4081 = vmatpush1.msra.mxu0 0.0
        %4082 = vmatprep.mubr.f32.mxu0 0.0
        %4083 = vmatmul.mubr.f32.gmra.mrb[0].mxu0 %v4016
        %v4084 = vpop.f32.mrb[0].mxu0
        %v4085 = vadd.f32 %v3434, %v4084
        %v4086 = vpop.f32.mrb[0].mxu0
        %4087 = vdwg.mxu0
        %vm4088 = vcmp.gt.f32.partialorder %v4085, 0.0
        %v4089 = vmul.f32 %v4085, 0.01
        %v4090 = vsel %vm4088, %v4085, %v4089
        %v4092 = vsel %vm1738, %v4090, 0
        %4094 = vmatprep.subr.mxu0 0.0
        %4095 = vmatpush1.msra.mxu0 %v3435
        %4096 = vmatprep.subr.mxu0 0.0
        %4097 = vmatpush1.msra.mxu0 %v3436
        %4098 = vmatprep.subr.mxu0 0.0
        %4099 = vmatpush1.msra.mxu0 0.0
        %4100 = vmatprep.subr.mxu0 0.0
        %4101 = vmatpush1.msra.mxu0 0.0
        %4102 = vmatprep.subr.mxu0 0.0
        %4103 = vmatpush1.msra.mxu0 0.0
        %4104 = vmatprep.subr.mxu0 0.0
        %4105 = vmatpush1.msra.mxu0 0.0
        %4106 = vmatprep.subr.mxu0 0.0
        %4107 = vmatpush1.msra.mxu0 0.0
        %4108 = vmatprep.subr.mxu0 0.0
        %4109 = vmatpush1.msra.mxu0 0.0
        %4110 = vmatprep.subr.mxu0 0.0
        %4111 = vmatpush1.msra.mxu0 0.0
        %4112 = vmatprep.subr.mxu0 0.0
        %4113 = vmatpush1.msra.mxu0 0.0
        %4114 = vmatprep.subr.mxu0 0.0
        %4115 = vmatpush1.msra.mxu0 0.0
        %4116 = vmatprep.subr.mxu0 0.0
        %4117 = vmatpush1.msra.mxu0 0.0
        %4118 = vmatprep.subr.mxu0 0.0
        %4119 = vmatpush1.msra.mxu0 0.0
        %4120 = vmatprep.subr.mxu0 0.0
        %4121 = vmatpush1.msra.mxu0 0.0
        %4122 = vmatprep.subr.mxu0 0.0
        %4123 = vmatpush1.msra.mxu0 0.0
        %4124 = vmatprep.subr.mxu0 0.0
        %4125 = vmatpush1.msra.mxu0 0.0
        %4126 = vmatprep.subr.mxu0 0.0
        %4127 = vmatpush1.msra.mxu0 0.0
        %4128 = vmatprep.subr.mxu0 0.0
        %4129 = vmatpush1.msra.mxu0 0.0
        %4130 = vmatprep.subr.mxu0 0.0
        %4131 = vmatpush1.msra.mxu0 0.0
        %4132 = vmatprep.subr.mxu0 0.0
        %4133 = vmatpush1.msra.mxu0 0.0
        %4134 = vmatprep.subr.mxu0 0.0
        %4135 = vmatpush1.msra.mxu0 0.0
        %4136 = vmatprep.subr.mxu0 0.0
        %4137 = vmatpush1.msra.mxu0 0.0
        %4138 = vmatprep.subr.mxu0 0.0
        %4139 = vmatpush1.msra.mxu0 0.0
        %4140 = vmatprep.subr.mxu0 0.0
        %4141 = vmatpush1.msra.mxu0 0.0
        %4142 = vmatprep.subr.mxu0 0.0
        %4143 = vmatpush1.msra.mxu0 0.0
        %4144 = vmatprep.subr.mxu0 0.0
        %4145 = vmatpush1.msra.mxu0 0.0
        %4146 = vmatprep.subr.mxu0 0.0
        %4147 = vmatpush1.msra.mxu0 0.0
        %4148 = vmatprep.subr.mxu0 0.0
        %4149 = vmatpush1.msra.mxu0 0.0
        %4150 = vmatprep.subr.mxu0 0.0
        %4151 = vmatpush1.msra.mxu0 0.0
        %4152 = vmatprep.subr.mxu0 0.0
        %4153 = vmatpush1.msra.mxu0 0.0
        %4154 = vmatprep.subr.mxu0 0.0
        %4155 = vmatpush1.msra.mxu0 0.0
        %4156 = vmatprep.subr.mxu0 0.0
        %4157 = vmatpush1.msra.mxu0 0.0
        %4158 = vmatprep.mubr.f32.mxu0 0.0
        %4159 = vmatmul.mubr.f32.gmra.mrb[0].mxu0 %v4092
        %v4160 = vpop.f32.mrb[0].mxu0
        %v4161 = vadd.f32 %v3437, %v4160
        %v4162 = vpop.f32.mrb[0].mxu0
        %4163 = vdwg.mxu0
        %vm4164 = vcmask 0
        %4165 = vst.msk [vmem:[%s1625] sm:$0x1] %vm4164, %v4161
        %p4166 = scmp.lt.s32.totalorder %s115, 1
        %s4167 = scalar_select %p4166, %s115, 1
        %s4168 = scalar_lea.vmem %s93, %s4167
        // Predicated region
        $region269: #{tpu_custom_call.1} parent=203 // pred_check
          %p4169 = pneg %p1119
        $region270: #{tpu_custom_call.1} parent=203 // pred_check_branch
          %4171 = sbr.rel (%p4169) target = $region272
        $region271: #{tpu_custom_call.1} parent=203 // pred_region
          _
        $region272: #{tpu_custom_call.1} parent=203 // pred_fallthru
          _
      $region204: #{tpu_custom_call.1} parent=5 // pred_fallthru
        _
      %p4172 = scmp.le.s32.totalorder 2, %s110
      // Predicated region
      $region273: #{tpu_custom_call.1} parent=5 // pred_check
        %p4173 = pneg %p4172
      $region274: #{tpu_custom_call.1} parent=5 // pred_check_branch
        %4175 = sbr.rel (%p4173) target = $region276
      $region275: #{tpu_custom_call.1} parent=5 // pred_region
        %s4176 = ssub.s32 %s110, 2
        // Predicated region
        $region277: #{tpu_custom_call.1} parent=275 // pred_check
          %p4177 = pneg %p1125
        $region278: #{tpu_custom_call.1} parent=275 // pred_check_branch
          %4179 = sbr.rel (%p4177) target = $region280
        $region279: #{tpu_custom_call.1} parent=275 // pred_region
          %p4180 = scmp.lt.s32.totalorder %s116, 1
          %s4181 = scalar_select %p4180, %s116, 1
          %s4182 = scalar_lea.vmem %s93, %s4181
        $region280: #{tpu_custom_call.1} parent=275 // pred_fallthru
          _
      $region276: #{tpu_custom_call.1} parent=5 // pred_fallthru
        _
    $region6: #{tpu_custom_call.1} parent=1 // loop_footer
      %s114 = sadd.s32 1, %s110
    $region7: #{tpu_custom_call.1} parent=1 // loop_footer_branch
      %109 = sbr.rel target = $region3
    $region8: #{tpu_custom_call.1} parent=1 // loop_exit
      _
    %4183 = vsyncpa [#allocation4], 1
    %s4184 = scalar_lea.sflag [#allocation4], 1
    %4185 = vsyncpa %s4184, 1
    %4186 = vsyncpa [#allocation6], 1
    %4187 = vsyncpa [#allocation9], 1
    %4188 = vsyncpa [#allocation12], 1
    %4189 = vsyncpa [#allocation15], 1
    %4190 = vsyncpa [#allocation18], 1
    %4191 = vsyncpa [#allocation21], 1
    %4192 = vsyncpa [#allocation24], 1
    %4193 = vsyncpa [#allocation27], 1

</llo_original>
